<compile_context>
chip_gen: v7x
topology: tpu7x:2x2x1
jax: 0.10.0
libtpu: 0.0.40
codegen_flags: <defaults>
</compile_context>

<pallas_src>
import numpy as np

import jax
import jax.numpy as jnp
from jax.experimental import pallas as pl
from jax.experimental.pallas import tpu as pltpu

NEG = -1e30  # finite "-inf": 0 * NEG == 0, so selection matmuls stay exact.


# --------------------------------------------------------------------------
# output-size helpers (match torch Conv2d stride=1 / MaxPool2d ceil_mode)
# --------------------------------------------------------------------------
def _conv_out(size, k, p):
    return size + 2 * p - k + 1


def _pool_out(size, k, s, p, ceil):
    if ceil:
        out = -(-(size + 2 * p - k) // s) + 1
        # torch rule: last window must start inside input or left padding
        if (out - 1) * s >= size + p:
            out -= 1
    else:
        out = (size + 2 * p - k) // s + 1
    return out


def _same_padding(k):
    return (k[0] // 2, k[1] // 2)


# --------------------------------------------------------------------------
# weight / constant preparation glue (tiny, weight-only; traced once)
# --------------------------------------------------------------------------
def _conv_band_mats(w_hwio, w_in, pad_w):
    """[KH,KW,Cin,Cout] -> [KH, Win*Cin, Wout*Cout] banded weight matrices.

    M[kh, w*Cin+ci, wo*Cout+co] = W[kh, w-wo+pad_w, ci, co]   (0 <= kw < KW)
    i.e. the kw / Cin loops and the W zero-padding of the conv are folded into
    a single MXU contraction per kh.
    """
    KH, KW, Cin, Cout = w_hwio.shape
    w_out = w_in + 2 * pad_w - KW + 1
    sel = np.zeros((KW, w_in, w_out), np.float32)
    for kw in range(KW):
        for wo in range(w_out):
            w = wo + kw - pad_w
            if 0 <= w < w_in:
                sel[kw, w, wo] = 1.0
    m = jnp.einsum("qwu,kqic->kwiuc", jnp.asarray(sel),
                   w_hwio.astype(jnp.float32))
    return m.reshape(KH, w_in * Cin, w_out * Cout)


def _tile_bias(b, w_out):
    # bias laid out along the lane axis as [wo*Cout + co] -> b[co]
    return jnp.tile(b.astype(jnp.float32), (w_out,)).reshape(1, -1)


def _pool_row_select(h_out, stride):
    h_sel = (h_out - 1) * stride + 1
    r = np.zeros((h_out, h_sel), np.float32)
    for ho in range(h_out):
        r[ho, ho * stride] = 1.0
    return jnp.asarray(r)


def _pool_col_select(w_out, stride, kw, c, w_cov_eff):
    m = np.zeros((kw, w_cov_eff * c, w_out * c), np.float32)
    for j in range(kw):
        for wo in range(w_out):
            q = stride * wo + j
            for ch in range(c):
                m[j, q * c + ch, wo * c + ch] = 1.0
    return jnp.asarray(m)


def _mask_stage_mat(t_in, k, s, p, ceil):
    t_out = _pool_out(t_in, k, s, p, ceil)
    m = np.zeros((k, t_in, t_out), np.float32)
    for j in range(k):
        for u in range(t_out):
            t = s * u + j - p
            if 0 <= t < t_in:
                m[j, t, u] = 1.0
    return jnp.asarray(m), t_out


# --------------------------------------------------------------------------
# full forward: one fused Pallas kernel
# --------------------------------------------------------------------------
def vgg4_forward(params, cfg, x, seq_mask=None):
    """x: [B, T, F] float32; seq_mask: [B, T] bool or None."""
    B, T, F = x.shape
    assert F == cfg["in_features"]

    ck = tuple(cfg["conv_kernel_size"])
    cp = cfg["conv_padding"]
    cp = tuple(cp) if cp is not None else _same_padding(ck)
    KH, KW = ck
    PH, PW = cp
    C1, C2 = cfg["conv1_channels"], cfg["conv2_channels"]
    C3, C4 = cfg["conv3_channels"], cfg["conv4_channels"]
    p1k = tuple(cfg["pool1_kernel_size"])
    p1s = tuple(cfg["pool1_stride"]) if cfg["pool1_stride"] is not None else p1k
    p1p = tuple(cfg["pool1_padding"]) if cfg["pool1_padding"] is not None else (0, 0)
    p2k = tuple(cfg["pool2_kernel_size"])
    p2s = tuple(cfg["pool2_stride"]) if cfg["pool2_stride"] is not None else p2k
    p2p = tuple(cfg["pool2_padding"]) if cfg["pool2_padding"] is not None else (0, 0)
    O = cfg["out_features"]

    # spatial size chain (H = time, W = features)
    H1, W1 = _conv_out(T, KH, PH), _conv_out(F, KW, PW)
    H2, W2 = _conv_out(H1, KH, PH), _conv_out(W1, KW, PW)
    H3 = _pool_out(H2, p1k[0], p1s[0], p1p[0], True)
    W3 = _pool_out(W2, p1k[1], p1s[1], p1p[1], True)
    H4, W4 = _conv_out(H3, KH, PH), _conv_out(W3, KW, PW)
    H5, W5 = _conv_out(H4, KH, PH), _conv_out(W4, KW, PW)
    H6 = _pool_out(H5, p2k[0], p2s[0], p2p[0], True)
    W6 = _pool_out(W5, p2k[1], p2s[1], p2p[1], True)

    # ---- conv weights as banded matrices + lane-tiled biases ----------------
    m1 = _conv_band_mats(params["w1"], F, PW)    # (KH, F*1,   W1*C1)
    m2 = _conv_band_mats(params["w2"], W1, PW)   # (KH, W1*C1, W2*C2)
    m3 = _conv_band_mats(params["w3"], W3, PW)   # (KH, W3*C2, W4*C3)
    m4 = _conv_band_mats(params["w4"], W4, PW)   # (KH, W4*C3, W5*C4)
    b1 = _tile_bias(params["b1"], W1)
    b2 = _tile_bias(params["b2"], W2)
    b3 = _tile_bias(params["b3"], W4)
    b4 = _tile_bias(params["b4"], W5)

    # ---- pooling selection constants ----------------------------------------
    hsel1 = (H3 - 1) * p1s[0] + 1
    hcov1 = max((H3 - 1) * p1s[0] + p1k[0], p1p[0] + H2)
    wcov1 = max((W3 - 1) * p1s[1] + p1k[1], p1p[1] + W2)
    r1 = _pool_row_select(H3, p1s[0])                       # (H3, hsel1)
    c1 = _pool_col_select(W3, p1s[1], p1k[1], C2, wcov1)    # (kw, wcov1*C2, W3*C2)
    hsel2 = (H6 - 1) * p2s[0] + 1
    hcov2 = max((H6 - 1) * p2s[0] + p2k[0], p2p[0] + H5)
    wcov2 = max((W6 - 1) * p2s[1] + p2k[1], p2p[1] + W5)
    r2 = _pool_row_select(H6, p2s[0])
    c2 = _pool_col_select(W6, p2s[1], p2k[1], C4, wcov2)

    # ---- linear: fold torch's transpose(1,2)+flatten into a weight permute --
    # canonical weight index: c4*W6 + w   ->  kernel layout index: w*C4 + c4
    wl = params["wl"].astype(jnp.float32)
    wl_perm = wl.reshape(C4, W6, O).transpose(1, 0, 2).reshape(W6 * C4, O)
    bl = params["bl"].astype(jnp.float32).reshape(1, O)

    # ---- sequence-mask pooling chain (same order / shortcut as torch) -------
    mask_mats = []
    t_cur = T
    for (k, s, p, ceil) in [
        (KH, 1, PH, False), (KH, 1, PH, False),          # conv1, conv2
        (p1k[0], p1s[0], p1p[0], True),                  # pool1
        (KH, 1, PH, False), (KH, 1, PH, False),          # conv3, conv4
        (p2k[0], p2s[0], p2p[0], True),                  # pool2
    ]:
        if s == 1 and 2 * p == k - 1:                    # mask_pool shortcut
            continue
        mat, t_cur = _mask_stage_mat(t_cur, k, s, p, ceil)
        mask_mats.append(mat)
    T_mask = t_cur
    n_mm = len(mask_mats)

    # lane-dense single-row mask per batch element (minimal HBM traffic)
    if seq_mask is None:
        mask_in = jnp.ones((B, 1, T), jnp.float32)
    else:
        mask_in = seq_mask.astype(jnp.float32)[:, None, :]

    x = x.astype(jnp.float32)

    # ------------------------------ the kernel -------------------------------
    def kernel(*refs):
        (x_ref, msk_ref,
         m1_ref, b1_ref, m2_ref, b2_ref, r1_ref, c1_ref,
         m3_ref, b3_ref, m4_ref, b4_ref, r2_ref, c2_ref,
         wl_ref, bl_ref) = refs[:16]
        mm_refs = refs[16:16 + n_mm]
        y_ref, mo_ref = refs[16 + n_mm:18 + n_mm]
        pad1, pad2, pad3, pad4, pool1_scr, pool2_scr = refs[18 + n_mm:]

        def conv(act, p_scr, m_ref, b_ref, h_out, relu):
            # H "same"-padding via VMEM scratch; only the PH pad rows are
            # zero-filled, the interior is stored exactly once.  W padding is
            # baked into the banded weight matrices.
            h_in, wc = act.shape
            if PH > 0:
                zpad = jnp.zeros((PH, wc), jnp.float32)
                p_scr[0:PH, :] = zpad
                p_scr[PH + h_in:2 * PH + h_in, :] = zpad
            p_scr[PH:PH + h_in, :] = act
            acc = jnp.dot(p_scr[0:h_out, :], m_ref[0],
                          preferred_element_type=jnp.float32)
            for kh in range(1, KH):
                acc = acc + jnp.dot(p_scr[kh:kh + h_out, :], m_ref[kh],
                                    preferred_element_type=jnp.float32)
            acc = acc + b_ref[...]
            if relu:
                acc = jnp.maximum(acc, 0.0)
            return acc

        def maxpool(act, s_scr, r_ref, c_ref, kh, kw, ph_p, pw_p, ch, h_sel):
            # torch MaxPool2d with ceil_mode: pad / overhang border is NEG.
            # Only the border rectangles are filled; the interior is written once.
            h_in, w_in = act.shape
            h_cov, w_cov = s_scr.shape
            top, left = ph_p, pw_p * ch
            bot = h_cov - top - h_in
            right = w_cov - left - w_in
            if top > 0:
                s_scr[0:top, :] = jnp.full((top, w_cov), NEG, jnp.float32)
            if bot > 0:
                s_scr[top + h_in:h_cov, :] = jnp.full((bot, w_cov), NEG,
                                                      jnp.float32)
            if left > 0:
                s_scr[top:top + h_in, 0:left] = jnp.full((h_in, left), NEG,
                                                         jnp.float32)
            if right > 0:
                s_scr[top:top + h_in, left + w_in:w_cov] = jnp.full(
                    (h_in, right), NEG, jnp.float32)
            s_scr[top:top + h_in, left:left + w_in] = act

            run = s_scr[0:h_sel, :]                       # running max over kh
            for i in range(1, kh):
                run = jnp.maximum(run, s_scr[i:i + h_sel, :])
            rows = jnp.dot(r_ref[...], run,               # strided row select
                           preferred_element_type=jnp.float32)
            out = jnp.dot(rows, c_ref[0],                 # strided col select
                          preferred_element_type=jnp.float32)
            for j in range(1, kw):
                out = jnp.maximum(
                    out, jnp.dot(rows, c_ref[j],
                                 preferred_element_type=jnp.float32))
            return out

        # ---- main tensor path (all VMEM-resident, lane-dense 2-D) ----
        a = x_ref[0]                                              # (T, F)
        a = conv(a, pad1, m1_ref, b1_ref, H1, relu=False)         # (H1, W1*C1)
        a = conv(a, pad2, m2_ref, b2_ref, H2, relu=True)          # (H2, W2*C2)
        a = maxpool(a, pool1_scr, r1_ref, c1_ref, p1k[0], p1k[1],
                    p1p[0], p1p[1], C2, hsel1)                    # (H3, W3*C2)
        a = conv(a, pad3, m3_ref, b3_ref, H4, relu=False)         # (H4, W4*C3)
        a = conv(a, pad4, m4_ref, b4_ref, H5, relu=True)          # (H5, W5*C4)
        a = maxpool(a, pool2_scr, r2_ref, c2_ref, p2k[0], p2k[1],
                    p2p[0], p2p[1], C4, hsel2)                    # (H6, W6*C4)
        y_ref[0] = (jnp.dot(a, wl_ref[...],
                            preferred_element_type=jnp.float32) + bl_ref[...])

        # ---- sequence-mask path (values in {0,1}; selection dots are exact) -
        m = msk_ref[0]                                            # (1, T)
        for mm in mm_refs:
            nk = mm.shape[0]
            nxt = jnp.dot(m, mm[0], preferred_element_type=jnp.float32)
            for j in range(1, nk):
                nxt = jnp.maximum(
                    nxt, jnp.dot(m, mm[j], preferred_element_type=jnp.float32))
            m = nxt
        mo_ref[0] = m

    # ------------------------------ pallas_call -------------------------------
    inputs = [x, mask_in, m1, b1, m2, b2, r1, c1, m3, b3, m4, b4, r2, c2,
              wl_perm, bl] + mask_mats

    def _const_spec(a):
        nd = a.ndim
        return pl.BlockSpec(a.shape, lambda i, _z=(0,) * nd: _z)

    in_specs = ([pl.BlockSpec((1, T, F), lambda i: (i, 0, 0)),
                 pl.BlockSpec((1, 1, T), lambda i: (i, 0, 0))]
                + [_const_spec(a) for a in inputs[2:]])

    out_shape = (jax.ShapeDtypeStruct((B, H6, O), jnp.float32),
                 jax.ShapeDtypeStruct((B, 1, T_mask), jnp.float32))
    out_specs = (pl.BlockSpec((1, H6, O), lambda i: (i, 0, 0)),
                 pl.BlockSpec((1, 1, T_mask), lambda i: (i, 0, 0)))

    scratch_shapes = [
        pltpu.VMEM((T + 2 * PH, F * 1), jnp.float32),      # pad1 (H-padded in)
        pltpu.VMEM((H1 + 2 * PH, W1 * C1), jnp.float32),   # pad2
        pltpu.VMEM((H3 + 2 * PH, W3 * C2), jnp.float32),   # pad3
        pltpu.VMEM((H4 + 2 * PH, W4 * C3), jnp.float32),   # pad4
        pltpu.VMEM((hcov1, wcov1 * C2), jnp.float32),      # pool1 (-inf border)
        pltpu.VMEM((hcov2, wcov2 * C4), jnp.float32),      # pool2 (-inf border)
    ]

    y, mask_out_f = pl.pallas_call(
        kernel,
        out_shape=out_shape,
        grid=(B,),
        in_specs=in_specs,
        out_specs=out_specs,
        scratch_shapes=scratch_shapes,
        compiler_params=pltpu.CompilerParams(
            dimension_semantics=("parallel",)),
    )(*inputs)

    out_mask = None if seq_mask is None else (mask_out_f[:, 0, :] > 0.5)
    return y, out_mask


# --------------------------------------------------------------------------
# deterministic parameter construction (synthetic, no checkpoint)
# canonical layouts: conv weights HWIO [KH,KW,Cin,Cout]; linear [C4*F'', O]
# --------------------------------------------------------------------------
def linear_in_dim(cfg):
    ck = tuple(cfg["conv_kernel_size"])
    cp = cfg["conv_padding"]
    cp = tuple(cp) if cp is not None else _same_padding(ck)
    p1k = tuple(cfg["pool1_kernel_size"])
    p1s = tuple(cfg["pool1_stride"]) if cfg["pool1_stride"] is not None else p1k
    p1p = tuple(cfg["pool1_padding"]) if cfg["pool1_padding"] is not None else (0, 0)
    p2k = tuple(cfg["pool2_kernel_size"])
    p2s = tuple(cfg["pool2_stride"]) if cfg["pool2_stride"] is not None else p2k
    p2p = tuple(cfg["pool2_padding"]) if cfg["pool2_padding"] is not None else (0, 0)
    f = cfg["in_features"]
    f = _conv_out(f, ck[1], cp[1])
    f = _conv_out(f, ck[1], cp[1])
    f = _pool_out(f, p1k[1], p1s[1], p1p[1], True)
    f = _conv_out(f, ck[1], cp[1])
    f = _conv_out(f, ck[1], cp[1])
    f = _pool_out(f, p2k[1], p2s[1], p2p[1], True)
    return f * cfg["conv4_channels"]


def init_params(key, cfg):
    kh, kw = cfg["conv_kernel_size"]
    chans = [1, cfg["conv1_channels"], cfg["conv2_channels"],
             cfg["conv3_channels"], cfg["conv4_channels"]]
    keys = jax.random.split(key, 10)
    params = {}
    for n in range(4):
        cin, cout = chans[n], chans[n + 1]
        params[f"w{n+1}"] = 0.1 * jax.random.normal(
            keys[2 * n], (kh, kw, cin, cout), jnp.float32)
        params[f"b{n+1}"] = 0.01 * jax.random.normal(
            keys[2 * n + 1], (cout,), jnp.float32)
    d_in = linear_in_dim(cfg)
    params["wl"] = 0.1 * jax.random.normal(
        keys[8], (d_in, cfg["out_features"]), jnp.float32)
    params["bl"] = 0.01 * jax.random.normal(
        keys[9], (cfg["out_features"],), jnp.float32)
    return params


# --------------------------------------------------------------------------
# pure-JAX reference (test only)
# --------------------------------------------------------------------------
def vgg4_reference(params, cfg, x, seq_mask):
    ck = tuple(cfg["conv_kernel_size"])
    cp = cfg["conv_padding"]
    cp = tuple(cp) if cp is not None else _same_padding(ck)
    p1k = tuple(cfg["pool1_kernel_size"])
    p1s = tuple(cfg["pool1_stride"]) if cfg["pool1_stride"] is not None else p1k
    p1p = tuple(cfg["pool1_padding"]) if cfg["pool1_padding"] is not None else (0, 0)
    p2k = tuple(cfg["pool2_kernel_size"])
    p2s = tuple(cfg["pool2_stride"]) if cfg["pool2_stride"] is not None else p2k
    p2p = tuple(cfg["pool2_padding"]) if cfg["pool2_padding"] is not None else (0, 0)

    def conv(v, w_hwio, b):
        w_oihw = jnp.transpose(w_hwio, (3, 2, 0, 1))
        y = jax.lax.conv_general_dilated(
            v, w_oihw, window_strides=(1, 1),
            padding=[(cp[0], cp[0]), (cp[1], cp[1])],
            dimension_numbers=("NCHW", "OIHW", "NCHW"))
        return y + b[None, :, None, None]

    def pool(v, k, s, p):
        _, _, H, W = v.shape
        Ho = _pool_out(H, k[0], s[0], p[0], True)
        Wo = _pool_out(W, k[1], s[1], p[1], True)
        pad_h = (Ho - 1) * s[0] + k[0] - p[0] - H
        pad_w = (Wo - 1) * s[1] + k[1] - p[1] - W
        return jax.lax.reduce_window(
            v, -jnp.inf, jax.lax.max, (1, 1, k[0], k[1]), (1, 1, s[0], s[1]),
            ((0, 0), (0, 0), (p[0], pad_h), (p[1], pad_w)))

    def mask_pool_ref(m, k, s, p, ceil):
        if s == 1 and 2 * p == k - 1:
            return m
        T_ = m.shape[1]
        To = _pool_out(T_, k, s, p, ceil)
        pad_hi = (To - 1) * s + k - p - T_
        mf = m.astype(jnp.float32)[:, None, :]
        o = jax.lax.reduce_window(mf, -jnp.inf, jax.lax.max,
                                  (1, 1, k), (1, 1, s),
                                  ((0, 0), (0, 0), (p, pad_hi)))
        return o[:, 0, :] > 0.5

    v = x[:, None, :, :]
    v = conv(v, params["w1"], params["b1"])
    v = conv(v, params["w2"], params["b2"])
    v = jnp.maximum(v, 0.0)
    v = pool(v, p1k, p1s, p1p)
    v = conv(v, params["w3"], params["b3"])
    v = conv(v, params["w4"], params["b4"])
    v = jnp.maximum(v, 0.0)
    v = pool(v, p2k, p2s, p2p)
    B, C4, Tp, Fp = v.shape
    v = jnp.transpose(v, (0, 2, 1, 3)).reshape(B, Tp, C4 * Fp)
    y = v @ params["wl"] + params["bl"]

    m = seq_mask
    m = mask_pool_ref(m, ck[0], 1, cp[0], False)
    m = mask_pool_ref(m, ck[0], 1, cp[0], False)
    m = mask_pool_ref(m, p1k[0], p1s[0], p1p[0], True)
    m = mask_pool_ref(m, ck[0], 1, cp[0], False)
    m = mask_pool_ref(m, ck[0], 1, cp[0], False)
    m = mask_pool_ref(m, p2k[0], p2s[0], p2p[0], True)
    return y, m


if __name__ == "__main__":
    cfg = dict(
        in_features=16,
        conv1_channels=4,
        conv2_channels=8,
        conv3_channels=8,
        conv4_channels=8,
        conv_kernel_size=(3, 3),
        conv_padding=(1, 1),            # "same" padding (conv_padding=None case)
        pool1_kernel_size=(3, 2),
        pool1_stride=(2, 2),
        pool1_padding=(0, 0),
        pool2_kernel_size=(3, 2),
        pool2_stride=(2, 2),
        pool2_padding=(0, 0),
        out_features=32,
    )

    key = jax.random.PRNGKey(0)
    k_p, k_x = jax.random.split(key)
    params = init_params(k_p, cfg)

    B, T, F = 2, 16, cfg["in_features"]
    x = jax.random.normal(k_x, (B, T, F), jnp.float32)
    lengths = jnp.array([16, 11], jnp.int32)
    seq_mask = jnp.arange(T)[None, :] < lengths[:, None]      # [B, T] bool

    fwd = jax.jit(lambda p, xx, mm: vgg4_forward(p, cfg, xx, mm))
    out, out_mask = fwd(params, x, seq_mask)
    out = jax.block_until_ready(out)
    out_mask = jax.block_until_ready(out_mask)

    # T: 16 -pool1-> 8 -pool2-> 4 ; F: 16 -> 8 -> 4 ; linear in = 4*8 = 32
    assert out.shape == (B, 4, cfg["out_features"]), out.shape
    assert out_mask.shape == (B, 4), out_mask.shape

    # correctness check against a pure-JAX reference (loose tol: MXU f32 passes)
    ref_out, ref_mask = vgg4_reference(params, cfg, x, seq_mask)
    np.testing.assert_allclose(np.asarray(out), np.asarray(ref_out),
                               rtol=5e-2, atol=5e-2)
    assert bool(jnp.all(out_mask == ref_mask))

    print("KERNEL_OK")
</pallas_src>

<mosaic_0001>
module attributes {stable_mosaic.version = 11 : i64} {
  func.func @kernel(%arg0: i32, %arg1: memref<1x16x16xf32, #tpu.memory_space<vmem>>, %arg2: memref<1x1x16xf32, #tpu.memory_space<vmem>>, %arg3: memref<3x16x64xf32, #tpu.memory_space<vmem>>, %arg4: memref<1x64xf32, #tpu.memory_space<vmem>>, %arg5: memref<3x64x128xf32, #tpu.memory_space<vmem>>, %arg6: memref<1x128xf32, #tpu.memory_space<vmem>>, %arg7: memref<8x15xf32, #tpu.memory_space<vmem>>, %arg8: memref<2x128x64xf32, #tpu.memory_space<vmem>>, %arg9: memref<3x64x64xf32, #tpu.memory_space<vmem>>, %arg10: memref<1x64xf32, #tpu.memory_space<vmem>>, %arg11: memref<3x64x64xf32, #tpu.memory_space<vmem>>, %arg12: memref<1x64xf32, #tpu.memory_space<vmem>>, %arg13: memref<4x7xf32, #tpu.memory_space<vmem>>, %arg14: memref<2x64x32xf32, #tpu.memory_space<vmem>>, %arg15: memref<32x32xf32, #tpu.memory_space<vmem>>, %arg16: memref<1x32xf32, #tpu.memory_space<vmem>>, %arg17: memref<3x16x8xf32, #tpu.memory_space<vmem>>, %arg18: memref<3x8x4xf32, #tpu.memory_space<vmem>>, %arg19: memref<1x4x32xf32, #tpu.memory_space<vmem>>, %arg20: memref<1x1x4xf32, #tpu.memory_space<vmem>>, %arg21: memref<18x16xf32, #tpu.memory_space<vmem>>, %arg22: memref<18x64xf32, #tpu.memory_space<vmem>>, %arg23: memref<10x64xf32, #tpu.memory_space<vmem>>, %arg24: memref<10x64xf32, #tpu.memory_space<vmem>>, %arg25: memref<17x128xf32, #tpu.memory_space<vmem>>, %arg26: memref<9x64xf32, #tpu.memory_space<vmem>>) attributes {dimension_semantics = [#tpu.dimension_semantics<parallel>], iteration_bounds = array<i64: 2>, scalar_prefetch = 0 : i64, scratch_operands = 6 : i64, tpu.core_type = #tpu.core_type<tc>, window_params = [{transform_indices = @transform_0, window_bounds = array<i64: 1, 16, 16>}, {transform_indices = @transform_1, window_bounds = array<i64: 1, 1, 16>}, {pipeline_mode = #tpu.pipeline_mode<synchronous>, transform_indices = @transform_2, window_bounds = array<i64: 3, 16, 64>}, {pipeline_mode = #tpu.pipeline_mode<synchronous>, transform_indices = @transform_3, window_bounds = array<i64: 1, 64>}, {pipeline_mode = #tpu.pipeline_mode<synchronous>, transform_indices = @transform_4, window_bounds = array<i64: 3, 64, 128>}, {pipeline_mode = #tpu.pipeline_mode<synchronous>, transform_indices = @transform_5, window_bounds = array<i64: 1, 128>}, {pipeline_mode = #tpu.pipeline_mode<synchronous>, transform_indices = @transform_6, window_bounds = array<i64: 8, 15>}, {pipeline_mode = #tpu.pipeline_mode<synchronous>, transform_indices = @transform_7, window_bounds = array<i64: 2, 128, 64>}, {pipeline_mode = #tpu.pipeline_mode<synchronous>, transform_indices = @transform_8, window_bounds = array<i64: 3, 64, 64>}, {pipeline_mode = #tpu.pipeline_mode<synchronous>, transform_indices = @transform_9, window_bounds = array<i64: 1, 64>}, {pipeline_mode = #tpu.pipeline_mode<synchronous>, transform_indices = @transform_10, window_bounds = array<i64: 3, 64, 64>}, {pipeline_mode = #tpu.pipeline_mode<synchronous>, transform_indices = @transform_11, window_bounds = array<i64: 1, 64>}, {pipeline_mode = #tpu.pipeline_mode<synchronous>, transform_indices = @transform_12, window_bounds = array<i64: 4, 7>}, {pipeline_mode = #tpu.pipeline_mode<synchronous>, transform_indices = @transform_13, window_bounds = array<i64: 2, 64, 32>}, {pipeline_mode = #tpu.pipeline_mode<synchronous>, transform_indices = @transform_14, window_bounds = array<i64: 32, 32>}, {pipeline_mode = #tpu.pipeline_mode<synchronous>, transform_indices = @transform_15, window_bounds = array<i64: 1, 32>}, {pipeline_mode = #tpu.pipeline_mode<synchronous>, transform_indices = @transform_16, window_bounds = array<i64: 3, 16, 8>}, {pipeline_mode = #tpu.pipeline_mode<synchronous>, transform_indices = @transform_17, window_bounds = array<i64: 3, 8, 4>}, {transform_indices = @transform_18, window_bounds = array<i64: 1, 4, 32>}, {transform_indices = @transform_19, window_bounds = array<i64: 1, 1, 4>}]} {
    %c0 = arith.constant 0 : index
    %c0_0 = arith.constant 0 : index
    %c0_1 = arith.constant 0 : index
    %0 = vector.load %arg1[%c0, %c0_0, %c0_1] : memref<1x16x16xf32, #tpu.memory_space<vmem>>, vector<1x16x16xf32>
    %1 = vector.shape_cast %0 : vector<1x16x16xf32> to vector<16x16xf32>
    %cst = arith.constant 0.000000e+00 : f32
    %2 = vector.broadcast %cst : f32 to vector<1x16xf32>
    %c0_2 = arith.constant 0 : index
    %c0_3 = arith.constant 0 : index
    %3 = vector.load %arg21[%c0_2, %c0_3] : memref<18x16xf32, #tpu.memory_space<vmem>>, vector<1x16xf32>
    tpu.vector_store %arg21[%c0_2, %c0_3], %2 {strides = array<i32>} : memref<18x16xf32, #tpu.memory_space<vmem>>, vector<1x16xf32>,
    %c17 = arith.constant 17 : index
    %c0_4 = arith.constant 0 : index
    %4 = vector.load %arg21[%c17, %c0_4] : memref<18x16xf32, #tpu.memory_space<vmem>>, vector<1x16xf32>
    tpu.vector_store %arg21[%c17, %c0_4], %2 {strides = array<i32>} : memref<18x16xf32, #tpu.memory_space<vmem>>, vector<1x16xf32>,
    %c1 = arith.constant 1 : index
    %c0_5 = arith.constant 0 : index
    %5 = vector.load %arg21[%c1, %c0_5] : memref<18x16xf32, #tpu.memory_space<vmem>>, vector<16x16xf32>
    tpu.vector_store %arg21[%c1, %c0_5], %1 {strides = array<i32>} : memref<18x16xf32, #tpu.memory_space<vmem>>, vector<16x16xf32>,
    %c0_6 = arith.constant 0 : index
    %c0_7 = arith.constant 0 : index
    %6 = vector.load %arg21[%c0_6, %c0_7] : memref<18x16xf32, #tpu.memory_space<vmem>>, vector<16x16xf32>
    %c0_8 = arith.constant 0 : index
    %c0_9 = arith.constant 0 : index
    %c0_10 = arith.constant 0 : index
    %7 = vector.load %arg3[%c0_8, %c0_9, %c0_10] : memref<3x16x64xf32, #tpu.memory_space<vmem>>, vector<1x16x64xf32>
    %8 = vector.shape_cast %7 : vector<1x16x64xf32> to vector<16x64xf32>
    %cst_11 = arith.constant dense<0.000000e+00> : vector<16x64xf32>
    %9 = tpu.matmul %6, %8, %cst_11 {dimension_numbers = #tpu.dot_dimension_numbers<[1], [0], [0], [1], [0, 0, 1, 1], [], []>} : vector<16x16xf32>, vector<16x64xf32>, vector<16x64xf32> -> vector<16x64xf32>
    %c1_12 = arith.constant 1 : index
    %c0_13 = arith.constant 0 : index
    %10 = vector.load %arg21[%c1_12, %c0_13] : memref<18x16xf32, #tpu.memory_space<vmem>>, vector<16x16xf32>
    %c1_14 = arith.constant 1 : index
    %c0_15 = arith.constant 0 : index
    %c0_16 = arith.constant 0 : index
    %11 = vector.load %arg3[%c1_14, %c0_15, %c0_16] : memref<3x16x64xf32, #tpu.memory_space<vmem>>, vector<1x16x64xf32>
    %12 = vector.shape_cast %11 : vector<1x16x64xf32> to vector<16x64xf32>
    %cst_17 = arith.constant dense<0.000000e+00> : vector<16x64xf32>
    %13 = tpu.matmul %10, %12, %cst_17 {dimension_numbers = #tpu.dot_dimension_numbers<[1], [0], [0], [1], [0, 0, 1, 1], [], []>} : vector<16x16xf32>, vector<16x64xf32>, vector<16x64xf32> -> vector<16x64xf32>
    %14 = arith.addf %9, %13 : vector<16x64xf32>
    %c2 = arith.constant 2 : index
    %c0_18 = arith.constant 0 : index
    %15 = vector.load %arg21[%c2, %c0_18] : memref<18x16xf32, #tpu.memory_space<vmem>>, vector<16x16xf32>
    %c2_19 = arith.constant 2 : index
    %c0_20 = arith.constant 0 : index
    %c0_21 = arith.constant 0 : index
    %16 = vector.load %arg3[%c2_19, %c0_20, %c0_21] : memref<3x16x64xf32, #tpu.memory_space<vmem>>, vector<1x16x64xf32>
    %17 = vector.shape_cast %16 : vector<1x16x64xf32> to vector<16x64xf32>
    %cst_22 = arith.constant dense<0.000000e+00> : vector<16x64xf32>
    %18 = tpu.matmul %15, %17, %cst_22 {dimension_numbers = #tpu.dot_dimension_numbers<[1], [0], [0], [1], [0, 0, 1, 1], [], []>} : vector<16x16xf32>, vector<16x64xf32>, vector<16x64xf32> -> vector<16x64xf32>
    %19 = arith.addf %14, %18 : vector<16x64xf32>
    %c0_23 = arith.constant 0 : index
    %c0_24 = arith.constant 0 : index
    %20 = vector.load %arg4[%c0_23, %c0_24] : memref<1x64xf32, #tpu.memory_space<vmem>>, vector<1x64xf32>
    %21 = vector.broadcast %20 : vector<1x64xf32> to vector<16x64xf32>
    %22 = arith.addf %19, %21 : vector<16x64xf32>
    %cst_25 = arith.constant 0.000000e+00 : f32
    %23 = vector.broadcast %cst_25 : f32 to vector<1x64xf32>
    %c0_26 = arith.constant 0 : index
    %c0_27 = arith.constant 0 : index
    %24 = vector.load %arg22[%c0_26, %c0_27] : memref<18x64xf32, #tpu.memory_space<vmem>>, vector<1x64xf32>
    tpu.vector_store %arg22[%c0_26, %c0_27], %23 {strides = array<i32>} : memref<18x64xf32, #tpu.memory_space<vmem>>, vector<1x64xf32>,
    %c17_28 = arith.constant 17 : index
    %c0_29 = arith.constant 0 : index
    %25 = vector.load %arg22[%c17_28, %c0_29] : memref<18x64xf32, #tpu.memory_space<vmem>>, vector<1x64xf32>
    tpu.vector_store %arg22[%c17_28, %c0_29], %23 {strides = array<i32>} : memref<18x64xf32, #tpu.memory_space<vmem>>, vector<1x64xf32>,
    %c1_30 = arith.constant 1 : index
    %c0_31 = arith.constant 0 : index
    %26 = vector.load %arg22[%c1_30, %c0_31] : memref<18x64xf32, #tpu.memory_space<vmem>>, vector<16x64xf32>
    tpu.vector_store %arg22[%c1_30, %c0_31], %22 {strides = array<i32>} : memref<18x64xf32, #tpu.memory_space<vmem>>, vector<16x64xf32>,
    %c0_32 = arith.constant 0 : index
    %c0_33 = arith.constant 0 : index
    %27 = vector.load %arg22[%c0_32, %c0_33] : memref<18x64xf32, #tpu.memory_space<vmem>>, vector<16x64xf32>
    %c0_34 = arith.constant 0 : index
    %c0_35 = arith.constant 0 : index
    %c0_36 = arith.constant 0 : index
    %28 = vector.load %arg5[%c0_34, %c0_35, %c0_36] : memref<3x64x128xf32, #tpu.memory_space<vmem>>, vector<1x64x128xf32>
    %29 = vector.shape_cast %28 : vector<1x64x128xf32> to vector<64x128xf32>
    %cst_37 = arith.constant dense<0.000000e+00> : vector<16x128xf32>
    %30 = tpu.matmul %27, %29, %cst_37 {dimension_numbers = #tpu.dot_dimension_numbers<[1], [0], [0], [1], [0, 0, 1, 1], [], []>} : vector<16x64xf32>, vector<64x128xf32>, vector<16x128xf32> -> vector<16x128xf32>
    %c1_38 = arith.constant 1 : index
    %c0_39 = arith.constant 0 : index
    %31 = vector.load %arg22[%c1_38, %c0_39] : memref<18x64xf32, #tpu.memory_space<vmem>>, vector<16x64xf32>
    %c1_40 = arith.constant 1 : index
    %c0_41 = arith.constant 0 : index
    %c0_42 = arith.constant 0 : index
    %32 = vector.load %arg5[%c1_40, %c0_41, %c0_42] : memref<3x64x128xf32, #tpu.memory_space<vmem>>, vector<1x64x128xf32>
    %33 = vector.shape_cast %32 : vector<1x64x128xf32> to vector<64x128xf32>
    %cst_43 = arith.constant dense<0.000000e+00> : vector<16x128xf32>
    %34 = tpu.matmul %31, %33, %cst_43 {dimension_numbers = #tpu.dot_dimension_numbers<[1], [0], [0], [1], [0, 0, 1, 1], [], []>} : vector<16x64xf32>, vector<64x128xf32>, vector<16x128xf32> -> vector<16x128xf32>
    %35 = arith.addf %30, %34 : vector<16x128xf32>
    %c2_44 = arith.constant 2 : index
    %c0_45 = arith.constant 0 : index
    %36 = vector.load %arg22[%c2_44, %c0_45] : memref<18x64xf32, #tpu.memory_space<vmem>>, vector<16x64xf32>
    %c2_46 = arith.constant 2 : index
    %c0_47 = arith.constant 0 : index
    %c0_48 = arith.constant 0 : index
    %37 = vector.load %arg5[%c2_46, %c0_47, %c0_48] : memref<3x64x128xf32, #tpu.memory_space<vmem>>, vector<1x64x128xf32>
    %38 = vector.shape_cast %37 : vector<1x64x128xf32> to vector<64x128xf32>
    %cst_49 = arith.constant dense<0.000000e+00> : vector<16x128xf32>
    %39 = tpu.matmul %36, %38, %cst_49 {dimension_numbers = #tpu.dot_dimension_numbers<[1], [0], [0], [1], [0, 0, 1, 1], [], []>} : vector<16x64xf32>, vector<64x128xf32>, vector<16x128xf32> -> vector<16x128xf32>
    %40 = arith.addf %35, %39 : vector<16x128xf32>
    %c0_50 = arith.constant 0 : index
    %c0_51 = arith.constant 0 : index
    %41 = vector.load %arg6[%c0_50, %c0_51] : memref<1x128xf32, #tpu.memory_space<vmem>>, vector<1x128xf32>
    %42 = vector.broadcast %41 : vector<1x128xf32> to vector<16x128xf32>
    %43 = arith.addf %40, %42 : vector<16x128xf32>
    %cst_52 = arith.constant 0.000000e+00 : f32
    %44 = vector.broadcast %cst_52 : f32 to vector<16x128xf32>
    %45 = arith.maximumf %43, %44 : vector<16x128xf32>
    %cst_53 = arith.constant -1.000000e+30 : f32
    %46 = vector.broadcast %cst_53 : f32 to vector<1x128xf32>
    %c16 = arith.constant 16 : index
    %c0_54 = arith.constant 0 : index
    %47 = vector.load %arg25[%c16, %c0_54] : memref<17x128xf32, #tpu.memory_space<vmem>>, vector<1x128xf32>
    tpu.vector_store %arg25[%c16, %c0_54], %46 {strides = array<i32>} : memref<17x128xf32, #tpu.memory_space<vmem>>, vector<1x128xf32>,
    %c0_55 = arith.constant 0 : index
    %c0_56 = arith.constant 0 : index
    %48 = vector.load %arg25[%c0_55, %c0_56] : memref<17x128xf32, #tpu.memory_space<vmem>>, vector<16x128xf32>
    tpu.vector_store %arg25[%c0_55, %c0_56], %45 {strides = array<i32>} : memref<17x128xf32, #tpu.memory_space<vmem>>, vector<16x128xf32>,
    %c0_57 = arith.constant 0 : index
    %c0_58 = arith.constant 0 : index
    %49 = vector.load %arg25[%c0_57, %c0_58] : memref<17x128xf32, #tpu.memory_space<vmem>>, vector<15x128xf32>
    %c1_59 = arith.constant 1 : index
    %c0_60 = arith.constant 0 : index
    %50 = vector.load %arg25[%c1_59, %c0_60] : memref<17x128xf32, #tpu.memory_space<vmem>>, vector<15x128xf32>
    %51 = arith.maximumf %49, %50 : vector<15x128xf32>
    %c2_61 = arith.constant 2 : index
    %c0_62 = arith.constant 0 : index
    %52 = vector.load %arg25[%c2_61, %c0_62] : memref<17x128xf32, #tpu.memory_space<vmem>>, vector<15x128xf32>
    %53 = arith.maximumf %51, %52 : vector<15x128xf32>
    %c0_63 = arith.constant 0 : index
    %c0_64 = arith.constant 0 : index
    %54 = vector.load %arg7[%c0_63, %c0_64] : memref<8x15xf32, #tpu.memory_space<vmem>>, vector<8x15xf32>
    %cst_65 = arith.constant dense<0.000000e+00> : vector<8x128xf32>
    %55 = tpu.matmul %54, %53, %cst_65 {dimension_numbers = #tpu.dot_dimension_numbers<[1], [0], [0], [1], [0, 0, 1, 1], [], []>} : vector<8x15xf32>, vector<15x128xf32>, vector<8x128xf32> -> vector<8x128xf32>
    %c0_66 = arith.constant 0 : index
    %c0_67 = arith.constant 0 : index
    %c0_68 = arith.constant 0 : index
    %56 = vector.load %arg8[%c0_66, %c0_67, %c0_68] : memref<2x128x64xf32, #tpu.memory_space<vmem>>, vector<1x128x64xf32>
    %57 = vector.shape_cast %56 : vector<1x128x64xf32> to vector<128x64xf32>
    %cst_69 = arith.constant dense<0.000000e+00> : vector<8x64xf32>
    %58 = tpu.matmul %55, %57, %cst_69 {dimension_numbers = #tpu.dot_dimension_numbers<[1], [0], [0], [1], [0, 0, 1, 1], [], []>} : vector<8x128xf32>, vector<128x64xf32>, vector<8x64xf32> -> vector<8x64xf32>
    %c1_70 = arith.constant 1 : index
    %c0_71 = arith.constant 0 : index
    %c0_72 = arith.constant 0 : index
    %59 = vector.load %arg8[%c1_70, %c0_71, %c0_72] : memref<2x128x64xf32, #tpu.memory_space<vmem>>, vector<1x128x64xf32>
    %60 = vector.shape_cast %59 : vector<1x128x64xf32> to vector<128x64xf32>
    %cst_73 = arith.constant dense<0.000000e+00> : vector<8x64xf32>
    %61 = tpu.matmul %55, %60, %cst_73 {dimension_numbers = #tpu.dot_dimension_numbers<[1], [0], [0], [1], [0, 0, 1, 1], [], []>} : vector<8x128xf32>, vector<128x64xf32>, vector<8x64xf32> -> vector<8x64xf32>
    %62 = arith.maximumf %58, %61 : vector<8x64xf32>
    %cst_74 = arith.constant 0.000000e+00 : f32
    %63 = vector.broadcast %cst_74 : f32 to vector<1x64xf32>
    %c0_75 = arith.constant 0 : index
    %c0_76 = arith.constant 0 : index
    %64 = vector.load %arg23[%c0_75, %c0_76] : memref<10x64xf32, #tpu.memory_space<vmem>>, vector<1x64xf32>
    tpu.vector_store %arg23[%c0_75, %c0_76], %63 {strides = array<i32>} : memref<10x64xf32, #tpu.memory_space<vmem>>, vector<1x64xf32>,
    %c9 = arith.constant 9 : index
    %c0_77 = arith.constant 0 : index
    %65 = vector.load %arg23[%c9, %c0_77] : memref<10x64xf32, #tpu.memory_space<vmem>>, vector<1x64xf32>
    tpu.vector_store %arg23[%c9, %c0_77], %63 {strides = array<i32>} : memref<10x64xf32, #tpu.memory_space<vmem>>, vector<1x64xf32>,
    %c1_78 = arith.constant 1 : index
    %c0_79 = arith.constant 0 : index
    %66 = vector.load %arg23[%c1_78, %c0_79] : memref<10x64xf32, #tpu.memory_space<vmem>>, vector<8x64xf32>
    tpu.vector_store %arg23[%c1_78, %c0_79], %62 {strides = array<i32>} : memref<10x64xf32, #tpu.memory_space<vmem>>, vector<8x64xf32>,
    %c0_80 = arith.constant 0 : index
    %c0_81 = arith.constant 0 : index
    %67 = vector.load %arg23[%c0_80, %c0_81] : memref<10x64xf32, #tpu.memory_space<vmem>>, vector<8x64xf32>
    %c0_82 = arith.constant 0 : index
    %c0_83 = arith.constant 0 : index
    %c0_84 = arith.constant 0 : index
    %68 = vector.load %arg9[%c0_82, %c0_83, %c0_84] : memref<3x64x64xf32, #tpu.memory_space<vmem>>, vector<1x64x64xf32>
    %69 = vector.shape_cast %68 : vector<1x64x64xf32> to vector<64x64xf32>
    %cst_85 = arith.constant dense<0.000000e+00> : vector<8x64xf32>
    %70 = tpu.matmul %67, %69, %cst_85 {dimension_numbers = #tpu.dot_dimension_numbers<[1], [0], [0], [1], [0, 0, 1, 1], [], []>} : vector<8x64xf32>, vector<64x64xf32>, vector<8x64xf32> -> vector<8x64xf32>
    %c1_86 = arith.constant 1 : index
    %c0_87 = arith.constant 0 : index
    %71 = vector.load %arg23[%c1_86, %c0_87] : memref<10x64xf32, #tpu.memory_space<vmem>>, vector<8x64xf32>
    %c1_88 = arith.constant 1 : index
    %c0_89 = arith.constant 0 : index
    %c0_90 = arith.constant 0 : index
    %72 = vector.load %arg9[%c1_88, %c0_89, %c0_90] : memref<3x64x64xf32, #tpu.memory_space<vmem>>, vector<1x64x64xf32>
    %73 = vector.shape_cast %72 : vector<1x64x64xf32> to vector<64x64xf32>
    %cst_91 = arith.constant dense<0.000000e+00> : vector<8x64xf32>
    %74 = tpu.matmul %71, %73, %cst_91 {dimension_numbers = #tpu.dot_dimension_numbers<[1], [0], [0], [1], [0, 0, 1, 1], [], []>} : vector<8x64xf32>, vector<64x64xf32>, vector<8x64xf32> -> vector<8x64xf32>
    %75 = arith.addf %70, %74 : vector<8x64xf32>
    %c2_92 = arith.constant 2 : index
    %c0_93 = arith.constant 0 : index
    %76 = vector.load %arg23[%c2_92, %c0_93] : memref<10x64xf32, #tpu.memory_space<vmem>>, vector<8x64xf32>
    %c2_94 = arith.constant 2 : index
    %c0_95 = arith.constant 0 : index
    %c0_96 = arith.constant 0 : index
    %77 = vector.load %arg9[%c2_94, %c0_95, %c0_96] : memref<3x64x64xf32, #tpu.memory_space<vmem>>, vector<1x64x64xf32>
    %78 = vector.shape_cast %77 : vector<1x64x64xf32> to vector<64x64xf32>
    %cst_97 = arith.constant dense<0.000000e+00> : vector<8x64xf32>
    %79 = tpu.matmul %76, %78, %cst_97 {dimension_numbers = #tpu.dot_dimension_numbers<[1], [0], [0], [1], [0, 0, 1, 1], [], []>} : vector<8x64xf32>, vector<64x64xf32>, vector<8x64xf32> -> vector<8x64xf32>
    %80 = arith.addf %75, %79 : vector<8x64xf32>
    %c0_98 = arith.constant 0 : index
    %c0_99 = arith.constant 0 : index
    %81 = vector.load %arg10[%c0_98, %c0_99] : memref<1x64xf32, #tpu.memory_space<vmem>>, vector<1x64xf32>
    %82 = vector.broadcast %81 : vector<1x64xf32> to vector<8x64xf32>
    %83 = arith.addf %80, %82 : vector<8x64xf32>
    %cst_100 = arith.constant 0.000000e+00 : f32
    %84 = vector.broadcast %cst_100 : f32 to vector<1x64xf32>
    %c0_101 = arith.constant 0 : index
    %c0_102 = arith.constant 0 : index
    %85 = vector.load %arg24[%c0_101, %c0_102] : memref<10x64xf32, #tpu.memory_space<vmem>>, vector<1x64xf32>
    tpu.vector_store %arg24[%c0_101, %c0_102], %84 {strides = array<i32>} : memref<10x64xf32, #tpu.memory_space<vmem>>, vector<1x64xf32>,
    %c9_103 = arith.constant 9 : index
    %c0_104 = arith.constant 0 : index
    %86 = vector.load %arg24[%c9_103, %c0_104] : memref<10x64xf32, #tpu.memory_space<vmem>>, vector<1x64xf32>
    tpu.vector_store %arg24[%c9_103, %c0_104], %84 {strides = array<i32>} : memref<10x64xf32, #tpu.memory_space<vmem>>, vector<1x64xf32>,
    %c1_105 = arith.constant 1 : index
    %c0_106 = arith.constant 0 : index
    %87 = vector.load %arg24[%c1_105, %c0_106] : memref<10x64xf32, #tpu.memory_space<vmem>>, vector<8x64xf32>
    tpu.vector_store %arg24[%c1_105, %c0_106], %83 {strides = array<i32>} : memref<10x64xf32, #tpu.memory_space<vmem>>, vector<8x64xf32>,
    %c0_107 = arith.constant 0 : index
    %c0_108 = arith.constant 0 : index
    %88 = vector.load %arg24[%c0_107, %c0_108] : memref<10x64xf32, #tpu.memory_space<vmem>>, vector<8x64xf32>
    %c0_109 = arith.constant 0 : index
    %c0_110 = arith.constant 0 : index
    %c0_111 = arith.constant 0 : index
    %89 = vector.load %arg11[%c0_109, %c0_110, %c0_111] : memref<3x64x64xf32, #tpu.memory_space<vmem>>, vector<1x64x64xf32>
    %90 = vector.shape_cast %89 : vector<1x64x64xf32> to vector<64x64xf32>
    %cst_112 = arith.constant dense<0.000000e+00> : vector<8x64xf32>
    %91 = tpu.matmul %88, %90, %cst_112 {dimension_numbers = #tpu.dot_dimension_numbers<[1], [0], [0], [1], [0, 0, 1, 1], [], []>} : vector<8x64xf32>, vector<64x64xf32>, vector<8x64xf32> -> vector<8x64xf32>
    %c1_113 = arith.constant 1 : index
    %c0_114 = arith.constant 0 : index
    %92 = vector.load %arg24[%c1_113, %c0_114] : memref<10x64xf32, #tpu.memory_space<vmem>>, vector<8x64xf32>
    %c1_115 = arith.constant 1 : index
    %c0_116 = arith.constant 0 : index
    %c0_117 = arith.constant 0 : index
    %93 = vector.load %arg11[%c1_115, %c0_116, %c0_117] : memref<3x64x64xf32, #tpu.memory_space<vmem>>, vector<1x64x64xf32>
    %94 = vector.shape_cast %93 : vector<1x64x64xf32> to vector<64x64xf32>
    %cst_118 = arith.constant dense<0.000000e+00> : vector<8x64xf32>
    %95 = tpu.matmul %92, %94, %cst_118 {dimension_numbers = #tpu.dot_dimension_numbers<[1], [0], [0], [1], [0, 0, 1, 1], [], []>} : vector<8x64xf32>, vector<64x64xf32>, vector<8x64xf32> -> vector<8x64xf32>
    %96 = arith.addf %91, %95 : vector<8x64xf32>
    %c2_119 = arith.constant 2 : index
    %c0_120 = arith.constant 0 : index
    %97 = vector.load %arg24[%c2_119, %c0_120] : memref<10x64xf32, #tpu.memory_space<vmem>>, vector<8x64xf32>
    %c2_121 = arith.constant 2 : index
    %c0_122 = arith.constant 0 : index
    %c0_123 = arith.constant 0 : index
    %98 = vector.load %arg11[%c2_121, %c0_122, %c0_123] : memref<3x64x64xf32, #tpu.memory_space<vmem>>, vector<1x64x64xf32>
    %99 = vector.shape_cast %98 : vector<1x64x64xf32> to vector<64x64xf32>
    %cst_124 = arith.constant dense<0.000000e+00> : vector<8x64xf32>
    %100 = tpu.matmul %97, %99, %cst_124 {dimension_numbers = #tpu.dot_dimension_numbers<[1], [0], [0], [1], [0, 0, 1, 1], [], []>} : vector<8x64xf32>, vector<64x64xf32>, vector<8x64xf32> -> vector<8x64xf32>
    %101 = arith.addf %96, %100 : vector<8x64xf32>
    %c0_125 = arith.constant 0 : index
    %c0_126 = arith.constant 0 : index
    %102 = vector.load %arg12[%c0_125, %c0_126] : memref<1x64xf32, #tpu.memory_space<vmem>>, vector<1x64xf32>
    %103 = vector.broadcast %102 : vector<1x64xf32> to vector<8x64xf32>
    %104 = arith.addf %101, %103 : vector<8x64xf32>
    %cst_127 = arith.constant 0.000000e+00 : f32
    %105 = vector.broadcast %cst_127 : f32 to vector<8x64xf32>
    %106 = arith.maximumf %104, %105 : vector<8x64xf32>
    %cst_128 = arith.constant -1.000000e+30 : f32
    %107 = vector.broadcast %cst_128 : f32 to vector<1x64xf32>
    %c8 = arith.constant 8 : index
    %c0_129 = arith.constant 0 : index
    %108 = vector.load %arg26[%c8, %c0_129] : memref<9x64xf32, #tpu.memory_space<vmem>>, vector<1x64xf32>
    tpu.vector_store %arg26[%c8, %c0_129], %107 {strides = array<i32>} : memref<9x64xf32, #tpu.memory_space<vmem>>, vector<1x64xf32>,
    %c0_130 = arith.constant 0 : index
    %c0_131 = arith.constant 0 : index
    %109 = vector.load %arg26[%c0_130, %c0_131] : memref<9x64xf32, #tpu.memory_space<vmem>>, vector<8x64xf32>
    tpu.vector_store %arg26[%c0_130, %c0_131], %106 {strides = array<i32>} : memref<9x64xf32, #tpu.memory_space<vmem>>, vector<8x64xf32>,
    %c0_132 = arith.constant 0 : index
    %c0_133 = arith.constant 0 : index
    %110 = vector.load %arg26[%c0_132, %c0_133] : memref<9x64xf32, #tpu.memory_space<vmem>>, vector<7x64xf32>
    %c1_134 = arith.constant 1 : index
    %c0_135 = arith.constant 0 : index
    %111 = vector.load %arg26[%c1_134, %c0_135] : memref<9x64xf32, #tpu.memory_space<vmem>>, vector<7x64xf32>
    %112 = arith.maximumf %110, %111 : vector<7x64xf32>
    %c2_136 = arith.constant 2 : index
    %c0_137 = arith.constant 0 : index
    %113 = vector.load %arg26[%c2_136, %c0_137] : memref<9x64xf32, #tpu.memory_space<vmem>>, vector<7x64xf32>
    %114 = arith.maximumf %112, %113 : vector<7x64xf32>
    %c0_138 = arith.constant 0 : index
    %c0_139 = arith.constant 0 : index
    %115 = vector.load %arg13[%c0_138, %c0_139] : memref<4x7xf32, #tpu.memory_space<vmem>>, vector<4x7xf32>
    %cst_140 = arith.constant dense<0.000000e+00> : vector<4x64xf32>
    %116 = tpu.matmul %115, %114, %cst_140 {dimension_numbers = #tpu.dot_dimension_numbers<[1], [0], [0], [1], [0, 0, 1, 1], [], []>} : vector<4x7xf32>, vector<7x64xf32>, vector<4x64xf32> -> vector<4x64xf32>
    %c0_141 = arith.constant 0 : index
    %c0_142 = arith.constant 0 : index
    %c0_143 = arith.constant 0 : index
    %117 = vector.load %arg14[%c0_141, %c0_142, %c0_143] : memref<2x64x32xf32, #tpu.memory_space<vmem>>, vector<1x64x32xf32>
    %118 = vector.shape_cast %117 : vector<1x64x32xf32> to vector<64x32xf32>
    %cst_144 = arith.constant dense<0.000000e+00> : vector<4x32xf32>
    %119 = tpu.matmul %116, %118, %cst_144 {dimension_numbers = #tpu.dot_dimension_numbers<[1], [0], [0], [1], [0, 0, 1, 1], [], []>} : vector<4x64xf32>, vector<64x32xf32>, vector<4x32xf32> -> vector<4x32xf32>
    %c1_145 = arith.constant 1 : index
    %c0_146 = arith.constant 0 : index
    %c0_147 = arith.constant 0 : index
    %120 = vector.load %arg14[%c1_145, %c0_146, %c0_147] : memref<2x64x32xf32, #tpu.memory_space<vmem>>, vector<1x64x32xf32>
    %121 = vector.shape_cast %120 : vector<1x64x32xf32> to vector<64x32xf32>
    %cst_148 = arith.constant dense<0.000000e+00> : vector<4x32xf32>
    %122 = tpu.matmul %116, %121, %cst_148 {dimension_numbers = #tpu.dot_dimension_numbers<[1], [0], [0], [1], [0, 0, 1, 1], [], []>} : vector<4x64xf32>, vector<64x32xf32>, vector<4x32xf32> -> vector<4x32xf32>
    %123 = arith.maximumf %119, %122 : vector<4x32xf32>
    %c0_149 = arith.constant 0 : index
    %c0_150 = arith.constant 0 : index
    %124 = vector.load %arg15[%c0_149, %c0_150] : memref<32x32xf32, #tpu.memory_space<vmem>>, vector<32x32xf32>
    %cst_151 = arith.constant dense<0.000000e+00> : vector<4x32xf32>
    %125 = tpu.matmul %123, %124, %cst_151 {dimension_numbers = #tpu.dot_dimension_numbers<[1], [0], [0], [1], [0, 0, 1, 1], [], []>} : vector<4x32xf32>, vector<32x32xf32>, vector<4x32xf32> -> vector<4x32xf32>
    %c0_152 = arith.constant 0 : index
    %c0_153 = arith.constant 0 : index
    %126 = vector.load %arg16[%c0_152, %c0_153] : memref<1x32xf32, #tpu.memory_space<vmem>>, vector<1x32xf32>
    %127 = vector.broadcast %126 : vector<1x32xf32> to vector<4x32xf32>
    %128 = arith.addf %125, %127 : vector<4x32xf32>
    %c0_154 = arith.constant 0 : index
    %c0_155 = arith.constant 0 : index
    %c0_156 = arith.constant 0 : index
    %129 = vector.load %arg19[%c0_154, %c0_155, %c0_156] : memref<1x4x32xf32, #tpu.memory_space<vmem>>, vector<1x4x32xf32>
    %130 = vector.shape_cast %129 : vector<1x4x32xf32> to vector<4x32xf32>
    %131 = vector.shape_cast %128 : vector<4x32xf32> to vector<1x4x32xf32>
    tpu.vector_store %arg19[%c0_154, %c0_155, %c0_156], %131 {strides = array<i32>} : memref<1x4x32xf32, #tpu.memory_space<vmem>>, vector<1x4x32xf32>,
    %c0_157 = arith.constant 0 : index
    %c0_158 = arith.constant 0 : index
    %c0_159 = arith.constant 0 : index
    %132 = vector.load %arg2[%c0_157, %c0_158, %c0_159] : memref<1x1x16xf32, #tpu.memory_space<vmem>>, vector<1x1x16xf32>
    %133 = vector.shape_cast %132 : vector<1x1x16xf32> to vector<1x16xf32>
    %c0_160 = arith.constant 0 : index
    %c0_161 = arith.constant 0 : index
    %c0_162 = arith.constant 0 : index
    %134 = vector.load %arg17[%c0_160, %c0_161, %c0_162] : memref<3x16x8xf32, #tpu.memory_space<vmem>>, vector<1x16x8xf32>
    %135 = vector.shape_cast %134 : vector<1x16x8xf32> to vector<16x8xf32>
    %cst_163 = arith.constant dense<0.000000e+00> : vector<1x8xf32>
    %136 = tpu.matmul %133, %135, %cst_163 {dimension_numbers = #tpu.dot_dimension_numbers<[1], [0], [0], [1], [0, 0, 1, 1], [], []>} : vector<1x16xf32>, vector<16x8xf32>, vector<1x8xf32> -> vector<1x8xf32>
    %c1_164 = arith.constant 1 : index
    %c0_165 = arith.constant 0 : index
    %c0_166 = arith.constant 0 : index
    %137 = vector.load %arg17[%c1_164, %c0_165, %c0_166] : memref<3x16x8xf32, #tpu.memory_space<vmem>>, vector<1x16x8xf32>
    %138 = vector.shape_cast %137 : vector<1x16x8xf32> to vector<16x8xf32>
    %cst_167 = arith.constant dense<0.000000e+00> : vector<1x8xf32>
    %139 = tpu.matmul %133, %138, %cst_167 {dimension_numbers = #tpu.dot_dimension_numbers<[1], [0], [0], [1], [0, 0, 1, 1], [], []>} : vector<1x16xf32>, vector<16x8xf32>, vector<1x8xf32> -> vector<1x8xf32>
    %140 = arith.maximumf %136, %139 : vector<1x8xf32>
    %c2_168 = arith.constant 2 : index
    %c0_169 = arith.constant 0 : index
    %c0_170 = arith.constant 0 : index
    %141 = vector.load %arg17[%c2_168, %c0_169, %c0_170] : memref<3x16x8xf32, #tpu.memory_space<vmem>>, vector<1x16x8xf32>
    %142 = vector.shape_cast %141 : vector<1x16x8xf32> to vector<16x8xf32>
    %cst_171 = arith.constant dense<0.000000e+00> : vector<1x8xf32>
    %143 = tpu.matmul %133, %142, %cst_171 {dimension_numbers = #tpu.dot_dimension_numbers<[1], [0], [0], [1], [0, 0, 1, 1], [], []>} : vector<1x16xf32>, vector<16x8xf32>, vector<1x8xf32> -> vector<1x8xf32>
    %144 = arith.maximumf %140, %143 : vector<1x8xf32>
    %c0_172 = arith.constant 0 : index
    %c0_173 = arith.constant 0 : index
    %c0_174 = arith.constant 0 : index
    %145 = vector.load %arg18[%c0_172, %c0_173, %c0_174] : memref<3x8x4xf32, #tpu.memory_space<vmem>>, vector<1x8x4xf32>
    %146 = vector.shape_cast %145 : vector<1x8x4xf32> to vector<8x4xf32>
    %cst_175 = arith.constant dense<0.000000e+00> : vector<1x4xf32>
    %147 = tpu.matmul %144, %146, %cst_175 {dimension_numbers = #tpu.dot_dimension_numbers<[1], [0], [0], [1], [0, 0, 1, 1], [], []>} : vector<1x8xf32>, vector<8x4xf32>, vector<1x4xf32> -> vector<1x4xf32>
    %c1_176 = arith.constant 1 : index
    %c0_177 = arith.constant 0 : index
    %c0_178 = arith.constant 0 : index
    %148 = vector.load %arg18[%c1_176, %c0_177, %c0_178] : memref<3x8x4xf32, #tpu.memory_space<vmem>>, vector<1x8x4xf32>
    %149 = vector.shape_cast %148 : vector<1x8x4xf32> to vector<8x4xf32>
    %cst_179 = arith.constant dense<0.000000e+00> : vector<1x4xf32>
    %150 = tpu.matmul %144, %149, %cst_179 {dimension_numbers = #tpu.dot_dimension_numbers<[1], [0], [0], [1], [0, 0, 1, 1], [], []>} : vector<1x8xf32>, vector<8x4xf32>, vector<1x4xf32> -> vector<1x4xf32>
    %151 = arith.maximumf %147, %150 : vector<1x4xf32>
    %c2_180 = arith.constant 2 : index
    %c0_181 = arith.constant 0 : index
    %c0_182 = arith.constant 0 : index
    %152 = vector.load %arg18[%c2_180, %c0_181, %c0_182] : memref<3x8x4xf32, #tpu.memory_space<vmem>>, vector<1x8x4xf32>
    %153 = vector.shape_cast %152 : vector<1x8x4xf32> to vector<8x4xf32>
    %cst_183 = arith.constant dense<0.000000e+00> : vector<1x4xf32>
    %154 = tpu.matmul %144, %153, %cst_183 {dimension_numbers = #tpu.dot_dimension_numbers<[1], [0], [0], [1], [0, 0, 1, 1], [], []>} : vector<1x8xf32>, vector<8x4xf32>, vector<1x4xf32> -> vector<1x4xf32>
    %155 = arith.maximumf %151, %154 : vector<1x4xf32>
    %c0_184 = arith.constant 0 : index
    %c0_185 = arith.constant 0 : index
    %c0_186 = arith.constant 0 : index
    %156 = vector.load %arg20[%c0_184, %c0_185, %c0_186] : memref<1x1x4xf32, #tpu.memory_space<vmem>>, vector<1x1x4xf32>
    %157 = vector.shape_cast %156 : vector<1x1x4xf32> to vector<1x4xf32>
    %158 = vector.shape_cast %155 : vector<1x4xf32> to vector<1x1x4xf32>
    tpu.vector_store %arg20[%c0_184, %c0_185, %c0_186], %158 {strides = array<i32>} : memref<1x1x4xf32, #tpu.memory_space<vmem>>, vector<1x1x4xf32>,
    return
  }
  func.func @transform_0(%arg0: i32) -> (i32, i32, i32) {
    %c0_i32 = arith.constant 0 : i32
    %c0_i32_0 = arith.constant 0 : i32
    %c0_i32_1 = arith.constant 0 : i32
    return %arg0, %c0_i32, %c0_i32_0 : i32, i32, i32
  }
  func.func @transform_1(%arg0: i32) -> (i32, i32, i32) {
    %c0_i32 = arith.constant 0 : i32
    %c0_i32_0 = arith.constant 0 : i32
    %c0_i32_1 = arith.constant 0 : i32
    return %arg0, %c0_i32, %c0_i32_0 : i32, i32, i32
  }
  func.func @transform_2(%arg0: i32) -> (i32, i32, i32) {
    %c0_i32 = arith.constant 0 : i32
    %c0_i32_0 = arith.constant 0 : i32
    %c0_i32_1 = arith.constant 0 : i32
    %c0_i32_2 = arith.constant 0 : i32
    return %c0_i32, %c0_i32_0, %c0_i32_1 : i32, i32, i32
  }
  func.func @transform_3(%arg0: i32) -> (i32, i32) {
    %c0_i32 = arith.constant 0 : i32
    %c0_i32_0 = arith.constant 0 : i32
    %c0_i32_1 = arith.constant 0 : i32
    return %c0_i32, %c0_i32_0 : i32, i32
  }
  func.func @transform_4(%arg0: i32) -> (i32, i32, i32) {
    %c0_i32 = arith.constant 0 : i32
    %c0_i32_0 = arith.constant 0 : i32
    %c0_i32_1 = arith.constant 0 : i32
    %c0_i32_2 = arith.constant 0 : i32
    return %c0_i32, %c0_i32_0, %c0_i32_1 : i32, i32, i32
  }
  func.func @transform_5(%arg0: i32) -> (i32, i32) {
    %c0_i32 = arith.constant 0 : i32
    %c0_i32_0 = arith.constant 0 : i32
    %c0_i32_1 = arith.constant 0 : i32
    return %c0_i32, %c0_i32_0 : i32, i32
  }
  func.func @transform_6(%arg0: i32) -> (i32, i32) {
    %c0_i32 = arith.constant 0 : i32
    %c0_i32_0 = arith.constant 0 : i32
    %c0_i32_1 = arith.constant 0 : i32
    return %c0_i32, %c0_i32_0 : i32, i32
  }
  func.func @transform_7(%arg0: i32) -> (i32, i32, i32) {
    %c0_i32 = arith.constant 0 : i32
    %c0_i32_0 = arith.constant 0 : i32
    %c0_i32_1 = arith.constant 0 : i32
    %c0_i32_2 = arith.constant 0 : i32
    return %c0_i32, %c0_i32_0, %c0_i32_1 : i32, i32, i32
  }
  func.func @transform_8(%arg0: i32) -> (i32, i32, i32) {
    %c0_i32 = arith.constant 0 : i32
    %c0_i32_0 = arith.constant 0 : i32
    %c0_i32_1 = arith.constant 0 : i32
    %c0_i32_2 = arith.constant 0 : i32
    return %c0_i32, %c0_i32_0, %c0_i32_1 : i32, i32, i32
  }
  func.func @transform_9(%arg0: i32) -> (i32, i32) {
    %c0_i32 = arith.constant 0 : i32
    %c0_i32_0 = arith.constant 0 : i32
    %c0_i32_1 = arith.constant 0 : i32
    return %c0_i32, %c0_i32_0 : i32, i32
  }
  func.func @transform_10(%arg0: i32) -> (i32, i32, i32) {
    %c0_i32 = arith.constant 0 : i32
    %c0_i32_0 = arith.constant 0 : i32
    %c0_i32_1 = arith.constant 0 : i32
    %c0_i32_2 = arith.constant 0 : i32
    return %c0_i32, %c0_i32_0, %c0_i32_1 : i32, i32, i32
  }
  func.func @transform_11(%arg0: i32) -> (i32, i32) {
    %c0_i32 = arith.constant 0 : i32
    %c0_i32_0 = arith.constant 0 : i32
    %c0_i32_1 = arith.constant 0 : i32
    return %c0_i32, %c0_i32_0 : i32, i32
  }
  func.func @transform_12(%arg0: i32) -> (i32, i32) {
    %c0_i32 = arith.constant 0 : i32
    %c0_i32_0 = arith.constant 0 : i32
    %c0_i32_1 = arith.constant 0 : i32
    return %c0_i32, %c0_i32_0 : i32, i32
  }
  func.func @transform_13(%arg0: i32) -> (i32, i32, i32) {
    %c0_i32 = arith.constant 0 : i32
    %c0_i32_0 = arith.constant 0 : i32
    %c0_i32_1 = arith.constant 0 : i32
    %c0_i32_2 = arith.constant 0 : i32
    return %c0_i32, %c0_i32_0, %c0_i32_1 : i32, i32, i32
  }
  func.func @transform_14(%arg0: i32) -> (i32, i32) {
    %c0_i32 = arith.constant 0 : i32
    %c0_i32_0 = arith.constant 0 : i32
    %c0_i32_1 = arith.constant 0 : i32
    return %c0_i32, %c0_i32_0 : i32, i32
  }
  func.func @transform_15(%arg0: i32) -> (i32, i32) {
    %c0_i32 = arith.constant 0 : i32
    %c0_i32_0 = arith.constant 0 : i32
    %c0_i32_1 = arith.constant 0 : i32
    return %c0_i32, %c0_i32_0 : i32, i32
  }
  func.func @transform_16(%arg0: i32) -> (i32, i32, i32) {
    %c0_i32 = arith.constant 0 : i32
    %c0_i32_0 = arith.constant 0 : i32
    %c0_i32_1 = arith.constant 0 : i32
    %c0_i32_2 = arith.constant 0 : i32
    return %c0_i32, %c0_i32_0, %c0_i32_1 : i32, i32, i32
  }
  func.func @transform_17(%arg0: i32) -> (i32, i32, i32) {
    %c0_i32 = arith.constant 0 : i32
    %c0_i32_0 = arith.constant 0 : i32
    %c0_i32_1 = arith.constant 0 : i32
    %c0_i32_2 = arith.constant 0 : i32
    return %c0_i32, %c0_i32_0, %c0_i32_1 : i32, i32, i32
  }
  func.func @transform_18(%arg0: i32) -> (i32, i32, i32) {
    %c0_i32 = arith.constant 0 : i32
    %c0_i32_0 = arith.constant 0 : i32
    %c0_i32_1 = arith.constant 0 : i32
    return %arg0, %c0_i32, %c0_i32_0 : i32, i32, i32
  }
  func.func @transform_19(%arg0: i32) -> (i32, i32, i32) {
    %c0_i32 = arith.constant 0 : i32
    %c0_i32_0 = arith.constant 0 : i32
    %c0_i32_1 = arith.constant 0 : i32
    return %arg0, %c0_i32, %c0_i32_0 : i32, i32, i32
  }
}

</mosaic_0001>

<llo_original>
// kernel: tile.23
$region0: #{tile.23}
  #allocation0 [shape = 's32[1]{0}', space=sflag, size = 0x4, scoped, tag = 'scoped memory for tile.23']
  %s0 = inlined_call_operand.vmem [shape: f32[4], index: 0, kind: input, shape index: {}]
  %s1 = inlined_call_operand.vmem [shape: f32[16,4], index: 1, kind: output, shape index: {}]
  // Predicated region
  $region2: #{tile.23} parent=0 // pred_check
    _
  $region3: #{tile.23} parent=0 // pred_check_branch
    %3 = sbr.rel (0) target = $region5
  $region4: #{tile.23} parent=0 // pred_region
    _
  $region5: #{tile.23} parent=0 // pred_fallthru
    _
  %v4 = vld [vmem:[%s0] ss:$0 sm:$0xff]
  %5 = vst [vmem:[%s1] sm:$0xff] %v4
  %s6 = scalar_lea.vmem %s1, 8
  %7 = vst [vmem:[%s6] sm:$0xff] %v4

// kernel: tile.24
$region0: #{tile.24}
  %s0 = inlined_call_operand.vmem [shape: f32[16,4], index: 0, kind: input, shape index: {}]
  %s1 = inlined_call_operand.vmem [shape: f32[1,64], index: 1, kind: output, shape index: {}]
  $region1: #{tile.24} parent=0
    #allocation0 [shape = 'u8[4096]{0}', space=vmem, size = 0x1000, scoped, tag = 'scoped mem for output reshape']
    %v2 = vld [vmem:[%s0] sm:$0x1]
    %vm3 = vcmask 31744
    %4 = vst.msk [vmem:[#allocation0] sm:$0x1] %vm3, %v2
    %s5 = scalar_lea.vmem %s0, 15
    %v6 = vld [vmem:[%s5] sm:$0x1]
    %7 = vrot.lane.b32.xlu0 %v6, 60
    %v8 = vpop.permute.xlu0 %7
    %vm9 = vcmask 523744
    %10 = vst.msk [vmem:[#allocation0] sm:$0x1] %vm9, %v8
    %s11 = scalar_lea.vmem %s0, 14
    %v12 = vld [vmem:[%s11] sm:$0x1]
    %13 = vrot.lane.b32.xlu0 %v12, 56
    %v14 = vpop.permute.xlu0 %13
    %vm15 = vcmask 490944
    %16 = vst.msk [vmem:[#allocation0] sm:$0x1] %vm15, %v14
    %s17 = scalar_lea.vmem %s0, 13
    %v18 = vld [vmem:[%s17] sm:$0x1]
    %19 = vrot.lane.b32.xlu0 %v18, 52
    %v20 = vpop.permute.xlu0 %19
    %vm21 = vcmask 458144
    %22 = vst.msk [vmem:[#allocation0] sm:$0x1] %vm21, %v20
    %s23 = scalar_lea.vmem %s0, 12
    %v24 = vld [vmem:[%s23] sm:$0x1]
    %25 = vrot.lane.b32.xlu0 %v24, 48
    %v26 = vpop.permute.xlu0 %25
    %vm27 = vcmask 425344
    %28 = vst.msk [vmem:[#allocation0] sm:$0x1] %vm27, %v26
    %s29 = scalar_lea.vmem %s0, 11
    %v30 = vld [vmem:[%s29] sm:$0x1]
    %31 = vrot.lane.b32.xlu0 %v30, 44
    %v32 = vpop.permute.xlu0 %31
    %vm33 = vcmask 392544
    %34 = vst.msk [vmem:[#allocation0] sm:$0x1] %vm33, %v32
    %s35 = scalar_lea.vmem %s0, 10
    %v36 = vld [vmem:[%s35] sm:$0x1]
    %37 = vrot.lane.b32.xlu0 %v36, 40
    %v38 = vpop.permute.xlu0 %37
    %vm39 = vcmask 359744
    %40 = vst.msk [vmem:[#allocation0] sm:$0x1] %vm39, %v38
    %s41 = scalar_lea.vmem %s0, 9
    %v42 = vld [vmem:[%s41] sm:$0x1]
    %43 = vrot.lane.b32.xlu0 %v42, 36
    %v44 = vpop.permute.xlu0 %43
    %vm45 = vcmask 326944
    %46 = vst.msk [vmem:[#allocation0] sm:$0x1] %vm45, %v44
    %s47 = scalar_lea.vmem %s0, 8
    %v48 = vld [vmem:[%s47] sm:$0x1]
    %49 = vrot.lane.b32.xlu0 %v48, 32
    %v50 = vpop.permute.xlu0 %49
    %vm51 = vcmask 294144
    %52 = vst.msk [vmem:[#allocation0] sm:$0x1] %vm51, %v50
    %s53 = scalar_lea.vmem %s0, 7
    %v54 = vld [vmem:[%s53] sm:$0x1]
    %55 = vrot.lane.b32.xlu0 %v54, 28
    %v56 = vpop.permute.xlu0 %55
    %vm57 = vcmask 261344
    %58 = vst.msk [vmem:[#allocation0] sm:$0x1] %vm57, %v56
    %s59 = scalar_lea.vmem %s0, 6
    %v60 = vld [vmem:[%s59] sm:$0x1]
    %61 = vrot.lane.b32.xlu0 %v60, 24
    %v62 = vpop.permute.xlu0 %61
    %vm63 = vcmask 228544
    %64 = vst.msk [vmem:[#allocation0] sm:$0x1] %vm63, %v62
    %s65 = scalar_lea.vmem %s0, 5
    %v66 = vld [vmem:[%s65] sm:$0x1]
    %67 = vrot.lane.b32.xlu0 %v66, 20
    %v68 = vpop.permute.xlu0 %67
    %vm69 = vcmask 195744
    %70 = vst.msk [vmem:[#allocation0] sm:$0x1] %vm69, %v68
    %s71 = scalar_lea.vmem %s0, 4
    %v72 = vld [vmem:[%s71] sm:$0x1]
    %73 = vrot.lane.b32.xlu0 %v72, 16
    %v74 = vpop.permute.xlu0 %73
    %vm75 = vcmask 162944
    %76 = vst.msk [vmem:[#allocation0] sm:$0x1] %vm75, %v74
    %s77 = scalar_lea.vmem %s0, 3
    %v78 = vld [vmem:[%s77] sm:$0x1]
    %79 = vrot.lane.b32.xlu0 %v78, 12
    %v80 = vpop.permute.xlu0 %79
    %vm81 = vcmask 130144
    %82 = vst.msk [vmem:[#allocation0] sm:$0x1] %vm81, %v80
    %s83 = scalar_lea.vmem %s0, 2
    %v84 = vld [vmem:[%s83] sm:$0x1]
    %85 = vrot.lane.b32.xlu0 %v84, 8
    %v86 = vpop.permute.xlu0 %85
    %vm87 = vcmask 97344
    %88 = vst.msk [vmem:[#allocation0] sm:$0x1] %vm87, %v86
    %s89 = scalar_lea.vmem %s0, 1
    %v90 = vld [vmem:[%s89] sm:$0x1]
    %91 = vrot.lane.b32.xlu0 %v90, 4
    %v92 = vpop.permute.xlu0 %91
    %vm93 = vcmask 64544
    %94 = vst.msk [vmem:[#allocation0] sm:$0x1] %vm93, %v92
    %s96 = sshllo.u32 0, 1
    %v98 = vld [vmem:[#allocation0] sm:%s96]
    %s99 = sshllo.u32 0, 1
    %100 = vst [vmem:[%s1] sm:%s99] %v98

// kernel: tile.28
$region0: #{tile.28}
  #allocation0 [shape = 's32[1]{0}', space=sflag, size = 0x4, scoped, tag = 'scoped memory for tile.28']
  %s0 = inlined_call_operand.vmem [shape: f32[8], index: 0, kind: input, shape index: {}]
  %s1 = inlined_call_operand.vmem [shape: f32[16,8], index: 1, kind: output, shape index: {}]
  // Predicated region
  $region2: #{tile.28} parent=0 // pred_check
    _
  $region3: #{tile.28} parent=0 // pred_check_branch
    %3 = sbr.rel (0) target = $region5
  $region4: #{tile.28} parent=0 // pred_region
    _
  $region5: #{tile.28} parent=0 // pred_fallthru
    _
  %v4 = vld [vmem:[%s0] ss:$0 sm:$0xff]
  %5 = vst [vmem:[%s1] sm:$0xff] %v4
  %s6 = scalar_lea.vmem %s1, 8
  %7 = vst [vmem:[%s6] sm:$0xff] %v4

// kernel: tile.29
$region0: #{tile.29}
  %s0 = inlined_call_operand.vmem [shape: f32[16,8], index: 0, kind: input, shape index: {}]
  %s1 = inlined_call_operand.vmem [shape: f32[1,128], index: 1, kind: output, shape index: {}]
  $region1: #{tile.29} parent=0
    #allocation0 [shape = 'u8[4096]{0}', space=vmem, size = 0x1000, scoped, tag = 'scoped mem for output reshape']
    %v2 = vld [vmem:[%s0] sm:$0x1]
    %vm3 = vcmask 64512
    %4 = vst.msk [vmem:[#allocation0] sm:$0x1] %vm3, %v2
    %s5 = scalar_lea.vmem %s0, 15
    %v6 = vld [vmem:[%s5] sm:$0x1]
    %7 = vrot.lane.b32.xlu0 %v6, 120
    %v8 = vpop.permute.xlu0 %7
    %vm9 = vcmask 1048512
    %10 = vst.msk [vmem:[#allocation0] sm:$0x1] %vm9, %v8
    %s11 = scalar_lea.vmem %s0, 14
    %v12 = vld [vmem:[%s11] sm:$0x1]
    %13 = vrot.lane.b32.xlu0 %v12, 112
    %v14 = vpop.permute.xlu0 %13
    %vm15 = vcmask 982912
    %16 = vst.msk [vmem:[#allocation0] sm:$0x1] %vm15, %v14
    %s17 = scalar_lea.vmem %s0, 13
    %v18 = vld [vmem:[%s17] sm:$0x1]
    %19 = vrot.lane.b32.xlu0 %v18, 104
    %v20 = vpop.permute.xlu0 %19
    %vm21 = vcmask 917312
    %22 = vst.msk [vmem:[#allocation0] sm:$0x1] %vm21, %v20
    %s23 = scalar_lea.vmem %s0, 12
    %v24 = vld [vmem:[%s23] sm:$0x1]
    %25 = vrot.lane.b32.xlu0 %v24, 96
    %v26 = vpop.permute.xlu0 %25
    %vm27 = vcmask 851712
    %28 = vst.msk [vmem:[#allocation0] sm:$0x1] %vm27, %v26
    %s29 = scalar_lea.vmem %s0, 11
    %v30 = vld [vmem:[%s29] sm:$0x1]
    %31 = vrot.lane.b32.xlu0 %v30, 88
    %v32 = vpop.permute.xlu0 %31
    %vm33 = vcmask 786112
    %34 = vst.msk [vmem:[#allocation0] sm:$0x1] %vm33, %v32
    %s35 = scalar_lea.vmem %s0, 10
    %v36 = vld [vmem:[%s35] sm:$0x1]
    %37 = vrot.lane.b32.xlu0 %v36, 80
    %v38 = vpop.permute.xlu0 %37
    %vm39 = vcmask 720512
    %40 = vst.msk [vmem:[#allocation0] sm:$0x1] %vm39, %v38
    %s41 = scalar_lea.vmem %s0, 9
    %v42 = vld [vmem:[%s41] sm:$0x1]
    %43 = vrot.lane.b32.xlu0 %v42, 72
    %v44 = vpop.permute.xlu0 %43
    %vm45 = vcmask 654912
    %46 = vst.msk [vmem:[#allocation0] sm:$0x1] %vm45, %v44
    %s47 = scalar_lea.vmem %s0, 8
    %v48 = vld [vmem:[%s47] sm:$0x1]
    %49 = vrot.lane.b32.xlu0 %v48, 64
    %v50 = vpop.permute.xlu0 %49
    %vm51 = vcmask 589312
    %52 = vst.msk [vmem:[#allocation0] sm:$0x1] %vm51, %v50
    %s53 = scalar_lea.vmem %s0, 7
    %v54 = vld [vmem:[%s53] sm:$0x1]
    %55 = vrot.lane.b32.xlu0 %v54, 56
    %v56 = vpop.permute.xlu0 %55
    %vm57 = vcmask 523712
    %58 = vst.msk [vmem:[#allocation0] sm:$0x1] %vm57, %v56
    %s59 = scalar_lea.vmem %s0, 6
    %v60 = vld [vmem:[%s59] sm:$0x1]
    %61 = vrot.lane.b32.xlu0 %v60, 48
    %v62 = vpop.permute.xlu0 %61
    %vm63 = vcmask 458112
    %64 = vst.msk [vmem:[#allocation0] sm:$0x1] %vm63, %v62
    %s65 = scalar_lea.vmem %s0, 5
    %v66 = vld [vmem:[%s65] sm:$0x1]
    %67 = vrot.lane.b32.xlu0 %v66, 40
    %v68 = vpop.permute.xlu0 %67
    %vm69 = vcmask 392512
    %70 = vst.msk [vmem:[#allocation0] sm:$0x1] %vm69, %v68
    %s71 = scalar_lea.vmem %s0, 4
    %v72 = vld [vmem:[%s71] sm:$0x1]
    %73 = vrot.lane.b32.xlu0 %v72, 32
    %v74 = vpop.permute.xlu0 %73
    %vm75 = vcmask 326912
    %76 = vst.msk [vmem:[#allocation0] sm:$0x1] %vm75, %v74
    %s77 = scalar_lea.vmem %s0, 3
    %v78 = vld [vmem:[%s77] sm:$0x1]
    %79 = vrot.lane.b32.xlu0 %v78, 24
    %v80 = vpop.permute.xlu0 %79
    %vm81 = vcmask 261312
    %82 = vst.msk [vmem:[#allocation0] sm:$0x1] %vm81, %v80
    %s83 = scalar_lea.vmem %s0, 2
    %v84 = vld [vmem:[%s83] sm:$0x1]
    %85 = vrot.lane.b32.xlu0 %v84, 16
    %v86 = vpop.permute.xlu0 %85
    %vm87 = vcmask 195712
    %88 = vst.msk [vmem:[#allocation0] sm:$0x1] %vm87, %v86
    %s89 = scalar_lea.vmem %s0, 1
    %v90 = vld [vmem:[%s89] sm:$0x1]
    %91 = vrot.lane.b32.xlu0 %v90, 8
    %v92 = vpop.permute.xlu0 %91
    %vm93 = vcmask 130112
    %94 = vst.msk [vmem:[#allocation0] sm:$0x1] %vm93, %v92
    %s96 = sshllo.u32 0, 1
    %v98 = vld [vmem:[#allocation0] sm:%s96]
    %s99 = sshllo.u32 0, 1
    %100 = vst [vmem:[%s1] sm:%s99] %v98

// kernel: tile.33
$region0: #{tile.33}
  #allocation0 [shape = 's32[1]{0}', space=sflag, size = 0x4, scoped, tag = 'scoped memory for tile.33']
  %s0 = inlined_call_operand.vmem [shape: f32[8], index: 0, kind: input, shape index: {}]
  %s1 = inlined_call_operand.vmem [shape: f32[8,8], index: 1, kind: output, shape index: {}]
  // Predicated region
  $region2: #{tile.33} parent=0 // pred_check
    _
  $region3: #{tile.33} parent=0 // pred_check_branch
    %3 = sbr.rel (0) target = $region5
  $region4: #{tile.33} parent=0 // pred_region
    _
  $region5: #{tile.33} parent=0 // pred_fallthru
    _
  %v4 = vld [vmem:[%s0] ss:$0 sm:$0xff]
  %5 = vst [vmem:[%s1] sm:$0xff] %v4

// kernel: tile.34
$region0: #{tile.34}
  %s0 = inlined_call_operand.vmem [shape: f32[8,8], index: 0, kind: input, shape index: {}]
  %s1 = inlined_call_operand.vmem [shape: f32[1,64], index: 1, kind: output, shape index: {}]
  $region1: #{tile.34} parent=0
    #allocation0 [shape = 'u8[4096]{0}', space=vmem, size = 0x1000, scoped, tag = 'scoped mem for output reshape']
    %v2 = vld [vmem:[%s0] sm:$0x1]
    %vm3 = vcmask 64512
    %4 = vst.msk [vmem:[#allocation0] sm:$0x1] %vm3, %v2
    %s5 = scalar_lea.vmem %s0, 7
    %v6 = vld [vmem:[%s5] sm:$0x1]
    %7 = vrot.lane.b32.xlu0 %v6, 56
    %v8 = vpop.permute.xlu0 %7
    %vm9 = vcmask 523712
    %10 = vst.msk [vmem:[#allocation0] sm:$0x1] %vm9, %v8
    %s11 = scalar_lea.vmem %s0, 6
    %v12 = vld [vmem:[%s11] sm:$0x1]
    %13 = vrot.lane.b32.xlu0 %v12, 48
    %v14 = vpop.permute.xlu0 %13
    %vm15 = vcmask 458112
    %16 = vst.msk [vmem:[#allocation0] sm:$0x1] %vm15, %v14
    %s17 = scalar_lea.vmem %s0, 5
    %v18 = vld [vmem:[%s17] sm:$0x1]
    %19 = vrot.lane.b32.xlu0 %v18, 40
    %v20 = vpop.permute.xlu0 %19
    %vm21 = vcmask 392512
    %22 = vst.msk [vmem:[#allocation0] sm:$0x1] %vm21, %v20
    %s23 = scalar_lea.vmem %s0, 4
    %v24 = vld [vmem:[%s23] sm:$0x1]
    %25 = vrot.lane.b32.xlu0 %v24, 32
    %v26 = vpop.permute.xlu0 %25
    %vm27 = vcmask 326912
    %28 = vst.msk [vmem:[#allocation0] sm:$0x1] %vm27, %v26
    %s29 = scalar_lea.vmem %s0, 3
    %v30 = vld [vmem:[%s29] sm:$0x1]
    %31 = vrot.lane.b32.xlu0 %v30, 24
    %v32 = vpop.permute.xlu0 %31
    %vm33 = vcmask 261312
    %34 = vst.msk [vmem:[#allocation0] sm:$0x1] %vm33, %v32
    %s35 = scalar_lea.vmem %s0, 2
    %v36 = vld [vmem:[%s35] sm:$0x1]
    %37 = vrot.lane.b32.xlu0 %v36, 16
    %v38 = vpop.permute.xlu0 %37
    %vm39 = vcmask 195712
    %40 = vst.msk [vmem:[#allocation0] sm:$0x1] %vm39, %v38
    %s41 = scalar_lea.vmem %s0, 1
    %v42 = vld [vmem:[%s41] sm:$0x1]
    %43 = vrot.lane.b32.xlu0 %v42, 8
    %v44 = vpop.permute.xlu0 %43
    %vm45 = vcmask 130112
    %46 = vst.msk [vmem:[#allocation0] sm:$0x1] %vm45, %v44
    %s48 = sshllo.u32 0, 1
    %v50 = vld [vmem:[#allocation0] sm:%s48]
    %s51 = sshllo.u32 0, 1
    %52 = vst [vmem:[%s1] sm:%s51] %v50

// kernel: _lambda_.1
$region0: #{_lambda_.1}
  #allocation0 [shape = 'u32[]', space=smem, size = 0x4, offset = 0x4, fixed_abs, tag = 'smem constant byte address 0x4 - core index']
  #allocation1 [shape = 'u32[144,128]{1,0:T(1,128)}', space=vmem, size = 0x12000, scoped, tag = 'internal scratch']
  #allocation2 [shape = 'f32[18,16]{1,0:T(8,128)}', space=vmem, size = 0x3000, scoped, tag = 'scratch operand']
  #allocation3 [shape = 'f32[18,64]{1,0:T(8,128)}', space=vmem, size = 0x3000, scoped, tag = 'scratch operand']
  #allocation4 [shape = 'f32[10,64]{1,0:T(8,128)}', space=vmem, size = 0x2000, scoped, tag = 'scratch operand']
  #allocation5 [shape = 'f32[10,64]{1,0:T(8,128)}', space=vmem, size = 0x2000, scoped, tag = 'scratch operand']
  #allocation6 [shape = 'f32[17,128]{1,0:T(8,128)}', space=vmem, size = 0x3000, scoped, tag = 'scratch operand']
  #allocation7 [shape = 'f32[9,64]{1,0:T(8,128)}', space=vmem, size = 0x2000, scoped, tag = 'scratch operand']
  %s0 = inlined_call_operand.vmem [shape: f32[2,16,16], index: 0, kind: input, shape index: {}]
  %s1 = inlined_call_operand.vmem [shape: f32[2,1,16], index: 1, kind: input, shape index: {}]
  %s2 = inlined_call_operand.vmem [shape: f32[3,16,64], index: 2, kind: input, shape index: {}]
  %s3 = inlined_call_operand.vmem [shape: f32[1,64], index: 3, kind: input, shape index: {}]
  %s4 = inlined_call_operand.vmem [shape: f32[3,64,128], index: 4, kind: input, shape index: {}]
  %s5 = inlined_call_operand.vmem [shape: f32[1,128], index: 5, kind: input, shape index: {}]
  %s6 = inlined_call_operand.vmem [shape: f32[8,15], index: 6, kind: input, shape index: {}]
  %s7 = inlined_call_operand.vmem [shape: f32[2,128,64], index: 7, kind: input, shape index: {}]
  %s8 = inlined_call_operand.vmem [shape: f32[3,64,64], index: 8, kind: input, shape index: {}]
  %s9 = inlined_call_operand.vmem [shape: f32[1,64], index: 9, kind: input, shape index: {}]
  %s10 = inlined_call_operand.vmem [shape: f32[3,64,64], index: 10, kind: input, shape index: {}]
  %s11 = inlined_call_operand.vmem [shape: f32[1,64], index: 11, kind: input, shape index: {}]
  %s12 = inlined_call_operand.vmem [shape: f32[4,7], index: 12, kind: input, shape index: {}]
  %s13 = inlined_call_operand.vmem [shape: f32[2,64,32], index: 13, kind: input, shape index: {}]
  %s14 = inlined_call_operand.vmem [shape: f32[32,32], index: 14, kind: input, shape index: {}]
  %s15 = inlined_call_operand.vmem [shape: f32[1,32], index: 15, kind: input, shape index: {}]
  %s16 = inlined_call_operand.vmem [shape: f32[3,16,8], index: 16, kind: input, shape index: {}]
  %s17 = inlined_call_operand.vmem [shape: f32[3,8,4], index: 17, kind: input, shape index: {}]
  %s18 = inlined_call_operand.hbm [shape: f32[2,4,32], index: 18, kind: output, shape index: {0}]
  %s19 = inlined_call_operand.vmem [shape: f32[2,1,4], index: 19, kind: output, shape index: {1}]
  %20 = xla_tuple %s18, %s19
  %s21 = sld [smem:[#allocation0]]
  $region113: #{_lambda_.1} parent=0
    _
  %s23 = ssub.s32 1, %s21
  %s24 = scalar_select 0, %s23, %s21
  $region1: #{_lambda_.1} parent=0
    #allocation8 [shape = 'u8[4096]{0}', space=vmem, size = 0x1000, scoped, tag = 'output window, operand 0']
    #allocation9 [shape = 's32[2]{0}', space=sflag, size = 0x8, scoped, tag = 'scoped memory for _lambda_.1']
    %25 = vsyncpa [#allocation9], 0
    %s26 = scalar_lea.sflag [#allocation9], 1
    %27 = vsyncpa %s26, 0
    loop: start=0, step=1, limit=4
    $region2: #{_lambda_.1} parent=1 // loop_pre_header
      _
    $region3: #{_lambda_.1} parent=1 // loop_header
      %s29 = sphi 0, %s33
      %p30 = scmp.ge.s32.totalorder %s29, 4
      %s39 = sphi 0, %s41
      %s42 = sphi 0, %s39
      %s43 = sphi 0, %s42
      %s59 = sphi 0, %s43
      %s65 = sphi 0, %s67
      %s68 = sphi 0, %s65
      %s69 = sphi 0, %s68
      %s85 = sphi 0, %s69
      %s89 = sphi 0, %s89
      %s91 = sphi 0, %s89
      %s92 = sphi 0, %s91
      %s106 = sphi 0, %s92
      %s110 = sphi 0, %s110
      %s112 = sphi 0, %s110
      %s113 = sphi 0, %s112
      %s127 = sphi 0, %s113
      %s131 = sphi 0, %s131
      %s133 = sphi 0, %s131
      %s134 = sphi 0, %s133
      %s148 = sphi 0, %s134
      %s152 = sphi 0, %s152
      %s154 = sphi 0, %s152
      %s155 = sphi 0, %s154
      %s169 = sphi 0, %s155
      %s173 = sphi 0, %s173
      %s175 = sphi 0, %s173
      %s176 = sphi 0, %s175
      %s190 = sphi 0, %s176
      %s194 = sphi 0, %s194
      %s196 = sphi 0, %s194
      %s197 = sphi 0, %s196
      %s211 = sphi 0, %s197
      %s215 = sphi 0, %s215
      %s217 = sphi 0, %s215
      %s218 = sphi 0, %s217
      %s232 = sphi 0, %s218
      %s236 = sphi 0, %s236
      %s238 = sphi 0, %s236
      %s239 = sphi 0, %s238
      %s253 = sphi 0, %s239
      %s257 = sphi 0, %s257
      %s259 = sphi 0, %s257
      %s260 = sphi 0, %s259
      %s274 = sphi 0, %s260
      %s278 = sphi 0, %s278
      %s280 = sphi 0, %s278
      %s281 = sphi 0, %s280
      %s295 = sphi 0, %s281
      %s299 = sphi 0, %s299
      %s301 = sphi 0, %s299
      %s302 = sphi 0, %s301
      %s316 = sphi 0, %s302
      %s320 = sphi 0, %s320
      %s322 = sphi 0, %s320
      %s323 = sphi 0, %s322
      %s337 = sphi 0, %s323
      %s341 = sphi 0, %s341
      %s343 = sphi 0, %s341
      %s344 = sphi 0, %s343
      %s358 = sphi 0, %s344
      %s362 = sphi 0, %s362
      %s364 = sphi 0, %s362
      %s365 = sphi 0, %s364
      %s379 = sphi 0, %s365
      %s383 = sphi 0, %s383
      %s385 = sphi 0, %s383
      %s386 = sphi 0, %s385
      %s400 = sphi 0, %s386
      %s404 = sphi 0, %s404
      %s406 = sphi 0, %s404
      %s407 = sphi 0, %s406
      %s421 = sphi 0, %s407
      %s427 = sphi 0, %s429
      %s430 = sphi 0, %s427
      %s431 = sphi 0, %s430
      %s447 = sphi 0, %s431
      %s453 = sphi 0, %s455
      %s456 = sphi 0, %s453
      %s457 = sphi 0, %s456
      %s473 = sphi 0, %s457
    $region4: #{_lambda_.1} parent=1 // loop_header_branch
      %32 = sbr.rel (%p30) target = $region8
    $region5: #{_lambda_.1} parent=1 // loop_body
      %s34 = ssub.s32 %s29, 1
      %s35 = ssub.s32 %s29, 2
      %s36 = sadd.s32 %s29, 1
      %s37 = ssub.s32 %s29, %s36
      %p38 = scmp.eq.s32.totalorder %s37, 0
      %s40 = sadd.s32 %s39, 1
      %s41 = scalar_select %p38, %s39, %s40
      %p44 = pneg %p38
      %p45 = scmp.eq.s32.totalorder %s29, 1
      %p46 = por %p44, %p45
      %p47 = scmp.ne.s32.totalorder %s39, %s42
      %p48 = scmp.eq.s32.totalorder %s29, 0
      %p49 = por %p47, %p48
      %p50 = scmp.ne.s32.totalorder %s39, %s42
      %p51 = scmp.eq.s32.totalorder %s34, 1
      %p52 = por %p50, %p51
      %p53 = scmp.ne.s32.totalorder %s42, %s43
      %p54 = scmp.eq.s32.totalorder %s34, 0
      %p55 = por %p53, %p54
      %p56 = scmp.ne.s32.totalorder %s42, %s43
      %p57 = scmp.eq.s32.totalorder %s35, 1
      %p58 = por %p56, %p57
      %p60 = scmp.ne.s32.totalorder %s43, %s59
      %p61 = scmp.eq.s32.totalorder %s35, 0
      %p62 = por %p60, %p61
      %s63 = ssub.s32 %s29, %s36
      %p64 = scmp.eq.s32.totalorder %s63, 0
      %s66 = sadd.s32 %s65, 1
      %s67 = scalar_select %p64, %s65, %s66
      %p70 = pneg %p64
      %p71 = scmp.eq.s32.totalorder %s29, 1
      %p72 = por %p70, %p71
      %p73 = scmp.ne.s32.totalorder %s65, %s68
      %p74 = scmp.eq.s32.totalorder %s29, 0
      %p75 = por %p73, %p74
      %p76 = scmp.ne.s32.totalorder %s65, %s68
      %p77 = scmp.eq.s32.totalorder %s34, 1
      %p78 = por %p76, %p77
      %p79 = scmp.ne.s32.totalorder %s68, %s69
      %p80 = scmp.eq.s32.totalorder %s34, 0
      %p81 = por %p79, %p80
      %p82 = scmp.ne.s32.totalorder %s68, %s69
      %p83 = scmp.eq.s32.totalorder %s35, 1
      %p84 = por %p82, %p83
      %p86 = scmp.ne.s32.totalorder %s69, %s85
      %p87 = scmp.eq.s32.totalorder %s35, 0
      %p88 = por %p86, %p87
      %s90 = sadd.s32 %s89, 1
      %p93 = scmp.eq.s32.totalorder %s29, 1
      %p94 = scmp.ne.s32.totalorder %s89, %s91
      %p95 = scmp.eq.s32.totalorder %s29, 0
      %p96 = por %p94, %p95
      %p97 = scmp.ne.s32.totalorder %s89, %s91
      %p98 = scmp.eq.s32.totalorder %s34, 1
      %p99 = por %p97, %p98
      %p100 = scmp.ne.s32.totalorder %s91, %s92
      %p101 = scmp.eq.s32.totalorder %s34, 0
      %p102 = por %p100, %p101
      %p103 = scmp.ne.s32.totalorder %s91, %s92
      %p104 = scmp.eq.s32.totalorder %s35, 1
      %p105 = por %p103, %p104
      %p107 = scmp.ne.s32.totalorder %s92, %s106
      %p108 = scmp.eq.s32.totalorder %s35, 0
      %p109 = por %p107, %p108
      %s111 = sadd.s32 %s110, 1
      %p114 = scmp.eq.s32.totalorder %s29, 1
      %p115 = scmp.ne.s32.totalorder %s110, %s112
      %p116 = scmp.eq.s32.totalorder %s29, 0
      %p117 = por %p115, %p116
      %p118 = scmp.ne.s32.totalorder %s110, %s112
      %p119 = scmp.eq.s32.totalorder %s34, 1
      %p120 = por %p118, %p119
      %p121 = scmp.ne.s32.totalorder %s112, %s113
      %p122 = scmp.eq.s32.totalorder %s34, 0
      %p123 = por %p121, %p122
      %p124 = scmp.ne.s32.totalorder %s112, %s113
      %p125 = scmp.eq.s32.totalorder %s35, 1
      %p126 = por %p124, %p125
      %p128 = scmp.ne.s32.totalorder %s113, %s127
      %p129 = scmp.eq.s32.totalorder %s35, 0
      %p130 = por %p128, %p129
      %s132 = sadd.s32 %s131, 1
      %p135 = scmp.eq.s32.totalorder %s29, 1
      %p136 = scmp.ne.s32.totalorder %s131, %s133
      %p137 = scmp.eq.s32.totalorder %s29, 0
      %p138 = por %p136, %p137
      %p139 = scmp.ne.s32.totalorder %s131, %s133
      %p140 = scmp.eq.s32.totalorder %s34, 1
      %p141 = por %p139, %p140
      %p142 = scmp.ne.s32.totalorder %s133, %s134
      %p143 = scmp.eq.s32.totalorder %s34, 0
      %p144 = por %p142, %p143
      %p145 = scmp.ne.s32.totalorder %s133, %s134
      %p146 = scmp.eq.s32.totalorder %s35, 1
      %p147 = por %p145, %p146
      %p149 = scmp.ne.s32.totalorder %s134, %s148
      %p150 = scmp.eq.s32.totalorder %s35, 0
      %p151 = por %p149, %p150
      %s153 = sadd.s32 %s152, 1
      %p156 = scmp.eq.s32.totalorder %s29, 1
      %p157 = scmp.ne.s32.totalorder %s152, %s154
      %p158 = scmp.eq.s32.totalorder %s29, 0
      %p159 = por %p157, %p158
      %p160 = scmp.ne.s32.totalorder %s152, %s154
      %p161 = scmp.eq.s32.totalorder %s34, 1
      %p162 = por %p160, %p161
      %p163 = scmp.ne.s32.totalorder %s154, %s155
      %p164 = scmp.eq.s32.totalorder %s34, 0
      %p165 = por %p163, %p164
      %p166 = scmp.ne.s32.totalorder %s154, %s155
      %p167 = scmp.eq.s32.totalorder %s35, 1
      %p168 = por %p166, %p167
      %p170 = scmp.ne.s32.totalorder %s155, %s169
      %p171 = scmp.eq.s32.totalorder %s35, 0
      %p172 = por %p170, %p171
      %s174 = sadd.s32 %s173, 1
      %p177 = scmp.eq.s32.totalorder %s29, 1
      %p178 = scmp.ne.s32.totalorder %s173, %s175
      %p179 = scmp.eq.s32.totalorder %s29, 0
      %p180 = por %p178, %p179
      %p181 = scmp.ne.s32.totalorder %s173, %s175
      %p182 = scmp.eq.s32.totalorder %s34, 1
      %p183 = por %p181, %p182
      %p184 = scmp.ne.s32.totalorder %s175, %s176
      %p185 = scmp.eq.s32.totalorder %s34, 0
      %p186 = por %p184, %p185
      %p187 = scmp.ne.s32.totalorder %s175, %s176
      %p188 = scmp.eq.s32.totalorder %s35, 1
      %p189 = por %p187, %p188
      %p191 = scmp.ne.s32.totalorder %s176, %s190
      %p192 = scmp.eq.s32.totalorder %s35, 0
      %p193 = por %p191, %p192
      %s195 = sadd.s32 %s194, 1
      %p198 = scmp.eq.s32.totalorder %s29, 1
      %p199 = scmp.ne.s32.totalorder %s194, %s196
      %p200 = scmp.eq.s32.totalorder %s29, 0
      %p201 = por %p199, %p200
      %p202 = scmp.ne.s32.totalorder %s194, %s196
      %p203 = scmp.eq.s32.totalorder %s34, 1
      %p204 = por %p202, %p203
      %p205 = scmp.ne.s32.totalorder %s196, %s197
      %p206 = scmp.eq.s32.totalorder %s34, 0
      %p207 = por %p205, %p206
      %p208 = scmp.ne.s32.totalorder %s196, %s197
      %p209 = scmp.eq.s32.totalorder %s35, 1
      %p210 = por %p208, %p209
      %p212 = scmp.ne.s32.totalorder %s197, %s211
      %p213 = scmp.eq.s32.totalorder %s35, 0
      %p214 = por %p212, %p213
      %s216 = sadd.s32 %s215, 1
      %p219 = scmp.eq.s32.totalorder %s29, 1
      %p220 = scmp.ne.s32.totalorder %s215, %s217
      %p221 = scmp.eq.s32.totalorder %s29, 0
      %p222 = por %p220, %p221
      %p223 = scmp.ne.s32.totalorder %s215, %s217
      %p224 = scmp.eq.s32.totalorder %s34, 1
      %p225 = por %p223, %p224
      %p226 = scmp.ne.s32.totalorder %s217, %s218
      %p227 = scmp.eq.s32.totalorder %s34, 0
      %p228 = por %p226, %p227
      %p229 = scmp.ne.s32.totalorder %s217, %s218
      %p230 = scmp.eq.s32.totalorder %s35, 1
      %p231 = por %p229, %p230
      %p233 = scmp.ne.s32.totalorder %s218, %s232
      %p234 = scmp.eq.s32.totalorder %s35, 0
      %p235 = por %p233, %p234
      %s237 = sadd.s32 %s236, 1
      %p240 = scmp.eq.s32.totalorder %s29, 1
      %p241 = scmp.ne.s32.totalorder %s236, %s238
      %p242 = scmp.eq.s32.totalorder %s29, 0
      %p243 = por %p241, %p242
      %p244 = scmp.ne.s32.totalorder %s236, %s238
      %p245 = scmp.eq.s32.totalorder %s34, 1
      %p246 = por %p244, %p245
      %p247 = scmp.ne.s32.totalorder %s238, %s239
      %p248 = scmp.eq.s32.totalorder %s34, 0
      %p249 = por %p247, %p248
      %p250 = scmp.ne.s32.totalorder %s238, %s239
      %p251 = scmp.eq.s32.totalorder %s35, 1
      %p252 = por %p250, %p251
      %p254 = scmp.ne.s32.totalorder %s239, %s253
      %p255 = scmp.eq.s32.totalorder %s35, 0
      %p256 = por %p254, %p255
      %s258 = sadd.s32 %s257, 1
      %p261 = scmp.eq.s32.totalorder %s29, 1
      %p262 = scmp.ne.s32.totalorder %s257, %s259
      %p263 = scmp.eq.s32.totalorder %s29, 0
      %p264 = por %p262, %p263
      %p265 = scmp.ne.s32.totalorder %s257, %s259
      %p266 = scmp.eq.s32.totalorder %s34, 1
      %p267 = por %p265, %p266
      %p268 = scmp.ne.s32.totalorder %s259, %s260
      %p269 = scmp.eq.s32.totalorder %s34, 0
      %p270 = por %p268, %p269
      %p271 = scmp.ne.s32.totalorder %s259, %s260
      %p272 = scmp.eq.s32.totalorder %s35, 1
      %p273 = por %p271, %p272
      %p275 = scmp.ne.s32.totalorder %s260, %s274
      %p276 = scmp.eq.s32.totalorder %s35, 0
      %p277 = por %p275, %p276
      %s279 = sadd.s32 %s278, 1
      %p282 = scmp.eq.s32.totalorder %s29, 1
      %p283 = scmp.ne.s32.totalorder %s278, %s280
      %p284 = scmp.eq.s32.totalorder %s29, 0
      %p285 = por %p283, %p284
      %p286 = scmp.ne.s32.totalorder %s278, %s280
      %p287 = scmp.eq.s32.totalorder %s34, 1
      %p288 = por %p286, %p287
      %p289 = scmp.ne.s32.totalorder %s280, %s281
      %p290 = scmp.eq.s32.totalorder %s34, 0
      %p291 = por %p289, %p290
      %p292 = scmp.ne.s32.totalorder %s280, %s281
      %p293 = scmp.eq.s32.totalorder %s35, 1
      %p294 = por %p292, %p293
      %p296 = scmp.ne.s32.totalorder %s281, %s295
      %p297 = scmp.eq.s32.totalorder %s35, 0
      %p298 = por %p296, %p297
      %s300 = sadd.s32 %s299, 1
      %p303 = scmp.eq.s32.totalorder %s29, 1
      %p304 = scmp.ne.s32.totalorder %s299, %s301
      %p305 = scmp.eq.s32.totalorder %s29, 0
      %p306 = por %p304, %p305
      %p307 = scmp.ne.s32.totalorder %s299, %s301
      %p308 = scmp.eq.s32.totalorder %s34, 1
      %p309 = por %p307, %p308
      %p310 = scmp.ne.s32.totalorder %s301, %s302
      %p311 = scmp.eq.s32.totalorder %s34, 0
      %p312 = por %p310, %p311
      %p313 = scmp.ne.s32.totalorder %s301, %s302
      %p314 = scmp.eq.s32.totalorder %s35, 1
      %p315 = por %p313, %p314
      %p317 = scmp.ne.s32.totalorder %s302, %s316
      %p318 = scmp.eq.s32.totalorder %s35, 0
      %p319 = por %p317, %p318
      %s321 = sadd.s32 %s320, 1
      %p324 = scmp.eq.s32.totalorder %s29, 1
      %p325 = scmp.ne.s32.totalorder %s320, %s322
      %p326 = scmp.eq.s32.totalorder %s29, 0
      %p327 = por %p325, %p326
      %p328 = scmp.ne.s32.totalorder %s320, %s322
      %p329 = scmp.eq.s32.totalorder %s34, 1
      %p330 = por %p328, %p329
      %p331 = scmp.ne.s32.totalorder %s322, %s323
      %p332 = scmp.eq.s32.totalorder %s34, 0
      %p333 = por %p331, %p332
      %p334 = scmp.ne.s32.totalorder %s322, %s323
      %p335 = scmp.eq.s32.totalorder %s35, 1
      %p336 = por %p334, %p335
      %p338 = scmp.ne.s32.totalorder %s323, %s337
      %p339 = scmp.eq.s32.totalorder %s35, 0
      %p340 = por %p338, %p339
      %s342 = sadd.s32 %s341, 1
      %p345 = scmp.eq.s32.totalorder %s29, 1
      %p346 = scmp.ne.s32.totalorder %s341, %s343
      %p347 = scmp.eq.s32.totalorder %s29, 0
      %p348 = por %p346, %p347
      %p349 = scmp.ne.s32.totalorder %s341, %s343
      %p350 = scmp.eq.s32.totalorder %s34, 1
      %p351 = por %p349, %p350
      %p352 = scmp.ne.s32.totalorder %s343, %s344
      %p353 = scmp.eq.s32.totalorder %s34, 0
      %p354 = por %p352, %p353
      %p355 = scmp.ne.s32.totalorder %s343, %s344
      %p356 = scmp.eq.s32.totalorder %s35, 1
      %p357 = por %p355, %p356
      %p359 = scmp.ne.s32.totalorder %s344, %s358
      %p360 = scmp.eq.s32.totalorder %s35, 0
      %p361 = por %p359, %p360
      %s363 = sadd.s32 %s362, 1
      %p366 = scmp.eq.s32.totalorder %s29, 1
      %p367 = scmp.ne.s32.totalorder %s362, %s364
      %p368 = scmp.eq.s32.totalorder %s29, 0
      %p369 = por %p367, %p368
      %p370 = scmp.ne.s32.totalorder %s362, %s364
      %p371 = scmp.eq.s32.totalorder %s34, 1
      %p372 = por %p370, %p371
      %p373 = scmp.ne.s32.totalorder %s364, %s365
      %p374 = scmp.eq.s32.totalorder %s34, 0
      %p375 = por %p373, %p374
      %p376 = scmp.ne.s32.totalorder %s364, %s365
      %p377 = scmp.eq.s32.totalorder %s35, 1
      %p378 = por %p376, %p377
      %p380 = scmp.ne.s32.totalorder %s365, %s379
      %p381 = scmp.eq.s32.totalorder %s35, 0
      %p382 = por %p380, %p381
      %s384 = sadd.s32 %s383, 1
      %p387 = scmp.eq.s32.totalorder %s29, 1
      %p388 = scmp.ne.s32.totalorder %s383, %s385
      %p389 = scmp.eq.s32.totalorder %s29, 0
      %p390 = por %p388, %p389
      %p391 = scmp.ne.s32.totalorder %s383, %s385
      %p392 = scmp.eq.s32.totalorder %s34, 1
      %p393 = por %p391, %p392
      %p394 = scmp.ne.s32.totalorder %s385, %s386
      %p395 = scmp.eq.s32.totalorder %s34, 0
      %p396 = por %p394, %p395
      %p397 = scmp.ne.s32.totalorder %s385, %s386
      %p398 = scmp.eq.s32.totalorder %s35, 1
      %p399 = por %p397, %p398
      %p401 = scmp.ne.s32.totalorder %s386, %s400
      %p402 = scmp.eq.s32.totalorder %s35, 0
      %p403 = por %p401, %p402
      %s405 = sadd.s32 %s404, 1
      %p408 = scmp.eq.s32.totalorder %s29, 1
      %p409 = scmp.ne.s32.totalorder %s404, %s406
      %p410 = scmp.eq.s32.totalorder %s29, 0
      %p411 = por %p409, %p410
      %p412 = scmp.ne.s32.totalorder %s404, %s406
      %p413 = scmp.eq.s32.totalorder %s34, 1
      %p414 = por %p412, %p413
      %p415 = scmp.ne.s32.totalorder %s406, %s407
      %p416 = scmp.eq.s32.totalorder %s34, 0
      %p417 = por %p415, %p416
      %p418 = scmp.ne.s32.totalorder %s406, %s407
      %p419 = scmp.eq.s32.totalorder %s35, 1
      %p420 = por %p418, %p419
      %p422 = scmp.ne.s32.totalorder %s407, %s421
      %p423 = scmp.eq.s32.totalorder %s35, 0
      %p424 = por %p422, %p423
      %s425 = ssub.s32 %s29, %s36
      %p426 = scmp.eq.s32.totalorder %s425, 0
      %s428 = sadd.s32 %s427, 1
      %s429 = scalar_select %p426, %s427, %s428
      %p432 = pneg %p426
      %p433 = scmp.eq.s32.totalorder %s29, 1
      %p434 = por %p432, %p433
      %p435 = scmp.ne.s32.totalorder %s427, %s430
      %p436 = scmp.eq.s32.totalorder %s29, 0
      %p437 = por %p435, %p436
      %p438 = scmp.ne.s32.totalorder %s427, %s430
      %p439 = scmp.eq.s32.totalorder %s34, 1
      %p440 = por %p438, %p439
      %p441 = scmp.ne.s32.totalorder %s430, %s431
      %p442 = scmp.eq.s32.totalorder %s34, 0
      %p443 = por %p441, %p442
      %p444 = scmp.ne.s32.totalorder %s430, %s431
      %p445 = scmp.eq.s32.totalorder %s35, 1
      %p446 = por %p444, %p445
      %p448 = scmp.ne.s32.totalorder %s431, %s447
      %p449 = scmp.eq.s32.totalorder %s35, 0
      %p450 = por %p448, %p449
      %s451 = ssub.s32 %s29, %s36
      %p452 = scmp.eq.s32.totalorder %s451, 0
      %s454 = sadd.s32 %s453, 1
      %s455 = scalar_select %p452, %s453, %s454
      %p458 = pneg %p452
      %p459 = scmp.eq.s32.totalorder %s29, 1
      %p460 = por %p458, %p459
      %p461 = scmp.ne.s32.totalorder %s453, %s456
      %p462 = scmp.eq.s32.totalorder %s29, 0
      %p463 = por %p461, %p462
      %p464 = scmp.ne.s32.totalorder %s453, %s456
      %p465 = scmp.eq.s32.totalorder %s34, 1
      %p466 = por %p464, %p465
      %p467 = scmp.ne.s32.totalorder %s456, %s457
      %p468 = scmp.eq.s32.totalorder %s34, 0
      %p469 = por %p467, %p468
      %p470 = scmp.ne.s32.totalorder %s456, %s457
      %p471 = scmp.eq.s32.totalorder %s35, 1
      %p472 = por %p470, %p471
      %p474 = scmp.ne.s32.totalorder %s457, %s473
      %p475 = scmp.eq.s32.totalorder %s35, 0
      %p476 = por %p474, %p475
      %p477 = scmp.le.s32.totalorder 1, %s29
      %p478 = scmp.lt.s32.totalorder %s29, 3
      %p479 = pnand %p477, %p478
      %p480 = pneg %p479
      // Predicated region
      $region9: #{_lambda_.1} parent=5 // pred_check
        _
      $region10: #{_lambda_.1} parent=5 // pred_check_branch
        %482 = sbr.rel (%p479) target = $region12
      $region11: #{_lambda_.1} parent=5 // pred_region
        %s483 = ssub.s32 %s29, 1
        // Predicated region
        $region13: #{_lambda_.1} parent=11 // pred_check
          %p484 = pneg %p102
        $region14: #{_lambda_.1} parent=11 // pred_check_branch
          %486 = sbr.rel (%p484) target = $region16
        $region15: #{_lambda_.1} parent=11 // pred_region
          _
        $region16: #{_lambda_.1} parent=11 // pred_fallthru
          _
        // Predicated region
        $region17: #{_lambda_.1} parent=11 // pred_check
          %p487 = pneg %p123
        $region18: #{_lambda_.1} parent=11 // pred_check_branch
          %489 = sbr.rel (%p487) target = $region20
        $region19: #{_lambda_.1} parent=11 // pred_region
          _
        $region20: #{_lambda_.1} parent=11 // pred_fallthru
          _
        // Predicated region
        $region21: #{_lambda_.1} parent=11 // pred_check
          %p490 = pneg %p144
        $region22: #{_lambda_.1} parent=11 // pred_check_branch
          %492 = sbr.rel (%p490) target = $region24
        $region23: #{_lambda_.1} parent=11 // pred_region
          _
        $region24: #{_lambda_.1} parent=11 // pred_fallthru
          _
        // Predicated region
        $region25: #{_lambda_.1} parent=11 // pred_check
          %p493 = pneg %p165
        $region26: #{_lambda_.1} parent=11 // pred_check_branch
          %495 = sbr.rel (%p493) target = $region28
        $region27: #{_lambda_.1} parent=11 // pred_region
          _
        $region28: #{_lambda_.1} parent=11 // pred_fallthru
          _
        // Predicated region
        $region29: #{_lambda_.1} parent=11 // pred_check
          %p496 = pneg %p186
        $region30: #{_lambda_.1} parent=11 // pred_check_branch
          %498 = sbr.rel (%p496) target = $region32
        $region31: #{_lambda_.1} parent=11 // pred_region
          _
        $region32: #{_lambda_.1} parent=11 // pred_fallthru
          _
        // Predicated region
        $region33: #{_lambda_.1} parent=11 // pred_check
          %p499 = pneg %p207
        $region34: #{_lambda_.1} parent=11 // pred_check_branch
          %501 = sbr.rel (%p499) target = $region36
        $region35: #{_lambda_.1} parent=11 // pred_region
          _
        $region36: #{_lambda_.1} parent=11 // pred_fallthru
          _
        // Predicated region
        $region37: #{_lambda_.1} parent=11 // pred_check
          %p502 = pneg %p228
        $region38: #{_lambda_.1} parent=11 // pred_check_branch
          %504 = sbr.rel (%p502) target = $region40
        $region39: #{_lambda_.1} parent=11 // pred_region
          _
        $region40: #{_lambda_.1} parent=11 // pred_fallthru
          _
        // Predicated region
        $region41: #{_lambda_.1} parent=11 // pred_check
          %p505 = pneg %p249
        $region42: #{_lambda_.1} parent=11 // pred_check_branch
          %507 = sbr.rel (%p505) target = $region44
        $region43: #{_lambda_.1} parent=11 // pred_region
          _
        $region44: #{_lambda_.1} parent=11 // pred_fallthru
          _
        // Predicated region
        $region45: #{_lambda_.1} parent=11 // pred_check
          %p508 = pneg %p270
        $region46: #{_lambda_.1} parent=11 // pred_check_branch
          %510 = sbr.rel (%p508) target = $region48
        $region47: #{_lambda_.1} parent=11 // pred_region
          _
        $region48: #{_lambda_.1} parent=11 // pred_fallthru
          _
        // Predicated region
        $region49: #{_lambda_.1} parent=11 // pred_check
          %p511 = pneg %p291
        $region50: #{_lambda_.1} parent=11 // pred_check_branch
          %513 = sbr.rel (%p511) target = $region52
        $region51: #{_lambda_.1} parent=11 // pred_region
          _
        $region52: #{_lambda_.1} parent=11 // pred_fallthru
          _
        // Predicated region
        $region53: #{_lambda_.1} parent=11 // pred_check
          %p514 = pneg %p312
        $region54: #{_lambda_.1} parent=11 // pred_check_branch
          %516 = sbr.rel (%p514) target = $region56
        $region55: #{_lambda_.1} parent=11 // pred_region
          _
        $region56: #{_lambda_.1} parent=11 // pred_fallthru
          _
        // Predicated region
        $region57: #{_lambda_.1} parent=11 // pred_check
          %p517 = pneg %p333
        $region58: #{_lambda_.1} parent=11 // pred_check_branch
          %519 = sbr.rel (%p517) target = $region60
        $region59: #{_lambda_.1} parent=11 // pred_region
          _
        $region60: #{_lambda_.1} parent=11 // pred_fallthru
          _
        // Predicated region
        $region61: #{_lambda_.1} parent=11 // pred_check
          %p520 = pneg %p354
        $region62: #{_lambda_.1} parent=11 // pred_check_branch
          %522 = sbr.rel (%p520) target = $region64
        $region63: #{_lambda_.1} parent=11 // pred_region
          _
        $region64: #{_lambda_.1} parent=11 // pred_fallthru
          _
        // Predicated region
        $region65: #{_lambda_.1} parent=11 // pred_check
          %p523 = pneg %p375
        $region66: #{_lambda_.1} parent=11 // pred_check_branch
          %525 = sbr.rel (%p523) target = $region68
        $region67: #{_lambda_.1} parent=11 // pred_region
          _
        $region68: #{_lambda_.1} parent=11 // pred_fallthru
          _
        // Predicated region
        $region69: #{_lambda_.1} parent=11 // pred_check
          %p526 = pneg %p396
        $region70: #{_lambda_.1} parent=11 // pred_check_branch
          %528 = sbr.rel (%p526) target = $region72
        $region71: #{_lambda_.1} parent=11 // pred_region
          _
        $region72: #{_lambda_.1} parent=11 // pred_fallthru
          _
        // Predicated region
        $region73: #{_lambda_.1} parent=11 // pred_check
          %p529 = pneg %p417
        $region74: #{_lambda_.1} parent=11 // pred_check_branch
          %531 = sbr.rel (%p529) target = $region76
        $region75: #{_lambda_.1} parent=11 // pred_region
          _
        $region76: #{_lambda_.1} parent=11 // pred_fallthru
          _
      $region12: #{_lambda_.1} parent=5 // pred_fallthru
        _
      %p532 = scmp.lt.s32.totalorder %s29, 2
      // Predicated region
      $region77: #{_lambda_.1} parent=5 // pred_check
        %p533 = pneg %p532
      $region78: #{_lambda_.1} parent=5 // pred_check_branch
        %535 = sbr.rel (%p533) target = $region80
      $region79: #{_lambda_.1} parent=5 // pred_region
        // Predicated region
        $region81: #{_lambda_.1} parent=79 // pred_check
          %p536 = pneg %p49
        $region82: #{_lambda_.1} parent=79 // pred_check_branch
          %538 = sbr.rel (%p536) target = $region84
        $region83: #{_lambda_.1} parent=79 // pred_region
          %p539 = scmp.lt.s32.totalorder %s29, 1
          %s540 = scalar_select %p539, %s29, 1
          %s541 = smul.addr %s540, 2
          %s542 = smul.addr %s541, 8
          %s543 = scalar_lea.vmem %s0, %s542
        $region84: #{_lambda_.1} parent=79 // pred_fallthru
          _
        // Predicated region
        $region85: #{_lambda_.1} parent=79 // pred_check
          %p544 = pneg %p75
        $region86: #{_lambda_.1} parent=79 // pred_check_branch
          %546 = sbr.rel (%p544) target = $region88
        $region87: #{_lambda_.1} parent=79 // pred_region
          %p547 = scmp.lt.s32.totalorder %s29, 1
          %s548 = scalar_select %p547, %s29, 1
          %s549 = scalar_lea.vmem %s1, %s548
        $region88: #{_lambda_.1} parent=79 // pred_fallthru
          _
      $region80: #{_lambda_.1} parent=5 // pred_fallthru
        _
      %p550 = scmp.le.s32.totalorder 1, %s29
      %p551 = scmp.lt.s32.totalorder %s29, 3
      %p552 = pnand %p550, %p551
      %p553 = pneg %p552
      // Predicated region
      $region89: #{_lambda_.1} parent=5 // pred_check
        _
      $region90: #{_lambda_.1} parent=5 // pred_check_branch
        %555 = sbr.rel (%p552) target = $region92
      $region91: #{_lambda_.1} parent=5 // pred_region
        %s556 = ssub.s32 %s29, 1
        %p557 = scmp.lt.s32.totalorder %s34, 1
        %s558 = scalar_select %p557, %s34, 1
        %s559 = smul.addr %s558, 2
        %s560 = smul.addr %s559, 8
        %s561 = scalar_lea.vmem %s0, %s560
        %p562 = pneg %p55
        %p563 = pneg %p52
        %p564 = scmp.lt.s32.totalorder %s34, 1
        %s565 = scalar_select %p564, %s34, 1
        %s566 = scalar_lea.vmem %s1, %s565
        %p567 = pneg %p81
        %p568 = pneg %p78
        %p569 = pneg %p102
        %p570 = pneg %p99
        %p571 = pneg %p123
        %p572 = pneg %p120
        %p573 = pneg %p144
        %p574 = pneg %p141
        %p575 = pneg %p165
        %p576 = pneg %p162
        %p577 = pneg %p186
        %p578 = pneg %p183
        %p579 = pneg %p207
        %p580 = pneg %p204
        %p581 = pneg %p228
        %p582 = pneg %p225
        %p583 = pneg %p249
        %p584 = pneg %p246
        %p585 = pneg %p270
        %p586 = pneg %p267
        %p587 = pneg %p291
        %p588 = pneg %p288
        %p589 = pneg %p312
        %p590 = pneg %p309
        %p591 = pneg %p333
        %p592 = pneg %p330
        %p593 = pneg %p354
        %p594 = pneg %p351
        %p595 = pneg %p375
        %p596 = pneg %p372
        %p597 = pneg %p396
        %p598 = pneg %p393
        %p599 = pneg %p417
        %p600 = pneg %p414
        %p601 = pneg %p443
        %p602 = pneg %p440
        %s603 = sand.u32 %s430, 1
        %s604 = scalar_lea.sflag [#allocation9], %s603
        %s605 = sand.u32 %s430, 1
        %s606 = smul.addr %s605, 4
        %s607 = scalar_lea.vmem [#allocation8], %s606
        %p608 = pneg %p469
        %p609 = pneg %p466
        %p610 = scmp.lt.s32.totalorder %s34, 1
        %s611 = scalar_select %p610, %s34, 1
        %s612 = scalar_lea.vmem %s19, %s611
        %p613 = scmp.lt.s32.totalorder %s34, 1
        %s614 = scalar_select %p613, %s34, 1
        %s615 = smul.addr %s614, 2
        %s616 = smul.addr %s615, 8
        %s617 = scalar_lea.vmem %s0, %s616
        %p618 = scmp.lt.s32.totalorder %s34, 1
        %s619 = scalar_select %p618, %s34, 1
        %s620 = scalar_lea.vmem %s1, %s619
        %p621 = scmp.lt.s32.totalorder %s34, 1
        %s622 = scalar_select %p621, %s34, 1
        %s623 = scalar_lea.vmem %s19, %s622
        %v624 = vld [vmem:[%s617] sm:$0xff]
        %v625 = vld [vmem:[%s617 + $0x8] sm:$0xff]
        %vm626 = vcmask 122880
        %627 = vst.msk [vmem:[#allocation2] sm:$0x1] %vm626, 0.0
        %628 = vst.msk [vmem:[#allocation2 + $0x11] sm:$0x1] %vm626, 0.0
        %vm629 = vcmask 130048
        %630 = vst.msk [vmem:[#allocation2 + $0x1] sm:$0xff] %vm629, %v624
        %631 = vst.msk [vmem:[#allocation2 + $0x9] sm:$0xff] %vm629, %v625
        %v632 = vld [vmem:[#allocation2] sm:$0xff]
        %v633 = vld [vmem:[#allocation2 + $0x8] sm:$0xff]
        %v634 = vld [vmem:[%s2] sm:$0xff]
        %v635 = vld [vmem:[%s2 + $0x8] sm:$0xff]
        %v636 = vld [vmem:[#allocation2 + $0x1] sm:$0xff]
        %v637 = vld [vmem:[#allocation2 + $0x9] sm:$0xff]
        %s638 = scalar_lea.vmem %s2, 16
        %v639 = vld [vmem:[%s638] sm:$0xff]
        %v640 = vld [vmem:[%s638 + $0x8] sm:$0xff]
        %v642 = vsel %vm629, %v636, 0
        %v645 = vsel %vm629, %v637, 0
        %647 = vmatprep.subr.mxu0 0.0
        %648 = vmatpush1.msra.mxu0 %v639
        %649 = vmatprep.subr.mxu0 0.0
        %650 = vmatpush1.msra.mxu0 %v640
        %651 = vmatprep.subr.mxu0 0.0
        %652 = vmatpush1.msra.mxu0 0.0
        %653 = vmatprep.subr.mxu0 0.0
        %654 = vmatpush1.msra.mxu0 0.0
        %655 = vmatprep.subr.mxu0 0.0
        %656 = vmatpush1.msra.mxu0 0.0
        %657 = vmatprep.subr.mxu0 0.0
        %658 = vmatpush1.msra.mxu0 0.0
        %659 = vmatprep.subr.mxu0 0.0
        %660 = vmatpush1.msra.mxu0 0.0
        %661 = vmatprep.subr.mxu0 0.0
        %662 = vmatpush1.msra.mxu0 0.0
        %663 = vmatprep.subr.mxu0 0.0
        %664 = vmatpush1.msra.mxu0 0.0
        %665 = vmatprep.subr.mxu0 0.0
        %666 = vmatpush1.msra.mxu0 0.0
        %667 = vmatprep.subr.mxu0 0.0
        %668 = vmatpush1.msra.mxu0 0.0
        %669 = vmatprep.subr.mxu0 0.0
        %670 = vmatpush1.msra.mxu0 0.0
        %671 = vmatprep.subr.mxu0 0.0
        %672 = vmatpush1.msra.mxu0 0.0
        %673 = vmatprep.subr.mxu0 0.0
        %674 = vmatpush1.msra.mxu0 0.0
        %675 = vmatprep.subr.mxu0 0.0
        %676 = vmatpush1.msra.mxu0 0.0
        %677 = vmatprep.subr.mxu0 0.0
        %678 = vmatpush1.msra.mxu0 0.0
        %679 = vmatprep.subr.mxu0 0.0
        %680 = vmatpush1.msra.mxu0 0.0
        %681 = vmatprep.subr.mxu0 0.0
        %682 = vmatpush1.msra.mxu0 0.0
        %683 = vmatprep.subr.mxu0 0.0
        %684 = vmatpush1.msra.mxu0 0.0
        %685 = vmatprep.subr.mxu0 0.0
        %686 = vmatpush1.msra.mxu0 0.0
        %687 = vmatprep.subr.mxu0 0.0
        %688 = vmatpush1.msra.mxu0 0.0
        %689 = vmatprep.subr.mxu0 0.0
        %690 = vmatpush1.msra.mxu0 0.0
        %691 = vmatprep.subr.mxu0 0.0
        %692 = vmatpush1.msra.mxu0 0.0
        %693 = vmatprep.subr.mxu0 0.0
        %694 = vmatpush1.msra.mxu0 0.0
        %695 = vmatprep.subr.mxu0 0.0
        %696 = vmatpush1.msra.mxu0 0.0
        %697 = vmatprep.subr.mxu0 0.0
        %698 = vmatpush1.msra.mxu0 0.0
        %699 = vmatprep.subr.mxu0 0.0
        %700 = vmatpush1.msra.mxu0 0.0
        %701 = vmatprep.subr.mxu0 0.0
        %702 = vmatpush1.msra.mxu0 0.0
        %703 = vmatprep.subr.mxu0 0.0
        %704 = vmatpush1.msra.mxu0 0.0
        %705 = vmatprep.subr.mxu0 0.0
        %706 = vmatpush1.msra.mxu0 0.0
        %707 = vmatprep.subr.mxu0 0.0
        %708 = vmatpush1.msra.mxu0 0.0
        %709 = vmatprep.subr.mxu0 0.0
        %710 = vmatpush1.msra.mxu0 0.0
        %711 = vmatprep.mubr.f32.mxu0 0.0
        %712 = vmatmul.mubr.f32.gmra.mrb[0].mxu0 %v642
        %v713 = vpop.f32.mrb[0].mxu0
        %v714 = vadd.f32 0.0, %v713
        %v715 = vpop.f32.mrb[0].mxu0
        %716 = vmatprep.mubr.f32.mxu0 0.0
        %717 = vmatmul.mubr.f32.gmra.mrb[0].mxu0 %v645
        %v718 = vpop.f32.mrb[0].mxu0
        %v719 = vadd.f32 0.0, %v718
        %v720 = vpop.f32.mrb[0].mxu0
        %721 = vdwg.mxu0
        %v723 = vsel %vm629, %v632, 0
        %v726 = vsel %vm629, %v633, 0
        %728 = vmatprep.subr.mxu0 0.0
        %729 = vmatpush1.msra.mxu0 %v634
        %730 = vmatprep.subr.mxu0 0.0
        %731 = vmatpush1.msra.mxu0 %v635
        %732 = vmatprep.subr.mxu0 0.0
        %733 = vmatpush1.msra.mxu0 0.0
        %734 = vmatprep.subr.mxu0 0.0
        %735 = vmatpush1.msra.mxu0 0.0
        %736 = vmatprep.subr.mxu0 0.0
        %737 = vmatpush1.msra.mxu0 0.0
        %738 = vmatprep.subr.mxu0 0.0
        %739 = vmatpush1.msra.mxu0 0.0
        %740 = vmatprep.subr.mxu0 0.0
        %741 = vmatpush1.msra.mxu0 0.0
        %742 = vmatprep.subr.mxu0 0.0
        %743 = vmatpush1.msra.mxu0 0.0
        %744 = vmatprep.subr.mxu0 0.0
        %745 = vmatpush1.msra.mxu0 0.0
        %746 = vmatprep.subr.mxu0 0.0
        %747 = vmatpush1.msra.mxu0 0.0
        %748 = vmatprep.subr.mxu0 0.0
        %749 = vmatpush1.msra.mxu0 0.0
        %750 = vmatprep.subr.mxu0 0.0
        %751 = vmatpush1.msra.mxu0 0.0
        %752 = vmatprep.subr.mxu0 0.0
        %753 = vmatpush1.msra.mxu0 0.0
        %754 = vmatprep.subr.mxu0 0.0
        %755 = vmatpush1.msra.mxu0 0.0
        %756 = vmatprep.subr.mxu0 0.0
        %757 = vmatpush1.msra.mxu0 0.0
        %758 = vmatprep.subr.mxu0 0.0
        %759 = vmatpush1.msra.mxu0 0.0
        %760 = vmatprep.subr.mxu0 0.0
        %761 = vmatpush1.msra.mxu0 0.0
        %762 = vmatprep.subr.mxu0 0.0
        %763 = vmatpush1.msra.mxu0 0.0
        %764 = vmatprep.subr.mxu0 0.0
        %765 = vmatpush1.msra.mxu0 0.0
        %766 = vmatprep.subr.mxu0 0.0
        %767 = vmatpush1.msra.mxu0 0.0
        %768 = vmatprep.subr.mxu0 0.0
        %769 = vmatpush1.msra.mxu0 0.0
        %770 = vmatprep.subr.mxu0 0.0
        %771 = vmatpush1.msra.mxu0 0.0
        %772 = vmatprep.subr.mxu0 0.0
        %773 = vmatpush1.msra.mxu0 0.0
        %774 = vmatprep.subr.mxu0 0.0
        %775 = vmatpush1.msra.mxu0 0.0
        %776 = vmatprep.subr.mxu0 0.0
        %777 = vmatpush1.msra.mxu0 0.0
        %778 = vmatprep.subr.mxu0 0.0
        %779 = vmatpush1.msra.mxu0 0.0
        %780 = vmatprep.subr.mxu0 0.0
        %781 = vmatpush1.msra.mxu0 0.0
        %782 = vmatprep.subr.mxu0 0.0
        %783 = vmatpush1.msra.mxu0 0.0
        %784 = vmatprep.subr.mxu0 0.0
        %785 = vmatpush1.msra.mxu0 0.0
        %786 = vmatprep.subr.mxu0 0.0
        %787 = vmatpush1.msra.mxu0 0.0
        %788 = vmatprep.subr.mxu0 0.0
        %789 = vmatpush1.msra.mxu0 0.0
        %790 = vmatprep.subr.mxu0 0.0
        %791 = vmatpush1.msra.mxu0 0.0
        %792 = vmatprep.mubr.f32.mxu0 0.0
        %793 = vmatmul.mubr.f32.gmra.mrb[0].mxu0 %v723
        %v794 = vpop.f32.mrb[0].mxu0
        %v795 = vadd.f32 %v714, %v794
        %v796 = vpop.f32.mrb[0].mxu0
        %797 = vmatprep.mubr.f32.mxu0 0.0
        %798 = vmatmul.mubr.f32.gmra.mrb[0].mxu0 %v726
        %v799 = vpop.f32.mrb[0].mxu0
        %v800 = vadd.f32 %v719, %v799
        %v801 = vpop.f32.mrb[0].mxu0
        %802 = vdwg.mxu0
        %v803 = vld [vmem:[#allocation2 + $0x2] sm:$0xff]
        %v804 = vld [vmem:[#allocation2 + $0xa] sm:$0xff]
        %s805 = scalar_lea.vmem %s2, 32
        %v806 = vld [vmem:[%s805] sm:$0xff]
        %v807 = vld [vmem:[%s805 + $0x8] sm:$0xff]
        %v809 = vsel %vm629, %v803, 0
        %v812 = vsel %vm629, %v804, 0
        %814 = vmatprep.subr.mxu0 0.0
        %815 = vmatpush1.msra.mxu0 %v806
        %816 = vmatprep.subr.mxu0 0.0
        %817 = vmatpush1.msra.mxu0 %v807
        %818 = vmatprep.subr.mxu0 0.0
        %819 = vmatpush1.msra.mxu0 0.0
        %820 = vmatprep.subr.mxu0 0.0
        %821 = vmatpush1.msra.mxu0 0.0
        %822 = vmatprep.subr.mxu0 0.0
        %823 = vmatpush1.msra.mxu0 0.0
        %824 = vmatprep.subr.mxu0 0.0
        %825 = vmatpush1.msra.mxu0 0.0
        %826 = vmatprep.subr.mxu0 0.0
        %827 = vmatpush1.msra.mxu0 0.0
        %828 = vmatprep.subr.mxu0 0.0
        %829 = vmatpush1.msra.mxu0 0.0
        %830 = vmatprep.subr.mxu0 0.0
        %831 = vmatpush1.msra.mxu0 0.0
        %832 = vmatprep.subr.mxu0 0.0
        %833 = vmatpush1.msra.mxu0 0.0
        %834 = vmatprep.subr.mxu0 0.0
        %835 = vmatpush1.msra.mxu0 0.0
        %836 = vmatprep.subr.mxu0 0.0
        %837 = vmatpush1.msra.mxu0 0.0
        %838 = vmatprep.subr.mxu0 0.0
        %839 = vmatpush1.msra.mxu0 0.0
        %840 = vmatprep.subr.mxu0 0.0
        %841 = vmatpush1.msra.mxu0 0.0
        %842 = vmatprep.subr.mxu0 0.0
        %843 = vmatpush1.msra.mxu0 0.0
        %844 = vmatprep.subr.mxu0 0.0
        %845 = vmatpush1.msra.mxu0 0.0
        %846 = vmatprep.subr.mxu0 0.0
        %847 = vmatpush1.msra.mxu0 0.0
        %848 = vmatprep.subr.mxu0 0.0
        %849 = vmatpush1.msra.mxu0 0.0
        %850 = vmatprep.subr.mxu0 0.0
        %851 = vmatpush1.msra.mxu0 0.0
        %852 = vmatprep.subr.mxu0 0.0
        %853 = vmatpush1.msra.mxu0 0.0
        %854 = vmatprep.subr.mxu0 0.0
        %855 = vmatpush1.msra.mxu0 0.0
        %856 = vmatprep.subr.mxu0 0.0
        %857 = vmatpush1.msra.mxu0 0.0
        %858 = vmatprep.subr.mxu0 0.0
        %859 = vmatpush1.msra.mxu0 0.0
        %860 = vmatprep.subr.mxu0 0.0
        %861 = vmatpush1.msra.mxu0 0.0
        %862 = vmatprep.subr.mxu0 0.0
        %863 = vmatpush1.msra.mxu0 0.0
        %864 = vmatprep.subr.mxu0 0.0
        %865 = vmatpush1.msra.mxu0 0.0
        %866 = vmatprep.subr.mxu0 0.0
        %867 = vmatpush1.msra.mxu0 0.0
        %868 = vmatprep.subr.mxu0 0.0
        %869 = vmatpush1.msra.mxu0 0.0
        %870 = vmatprep.subr.mxu0 0.0
        %871 = vmatpush1.msra.mxu0 0.0
        %872 = vmatprep.subr.mxu0 0.0
        %873 = vmatpush1.msra.mxu0 0.0
        %874 = vmatprep.subr.mxu0 0.0
        %875 = vmatpush1.msra.mxu0 0.0
        %876 = vmatprep.subr.mxu0 0.0
        %877 = vmatpush1.msra.mxu0 0.0
        %878 = vmatprep.mubr.f32.mxu0 0.0
        %879 = vmatmul.mubr.f32.gmra.mrb[0].mxu0 %v809
        %v880 = vpop.f32.mrb[0].mxu0
        %v881 = vadd.f32 0.0, %v880
        %v882 = vpop.f32.mrb[0].mxu0
        %883 = vmatprep.mubr.f32.mxu0 0.0
        %884 = vmatmul.mubr.f32.gmra.mrb[0].mxu0 %v812
        %v885 = vpop.f32.mrb[0].mxu0
        %v886 = vadd.f32 0.0, %v885
        %v887 = vpop.f32.mrb[0].mxu0
        %888 = vdwg.mxu0
        %v889 = vadd.f32 %v795, %v881
        %v890 = vadd.f32 %v800, %v886
        %v891 = vld [vmem:[%s3] sm:$0x1]
        %v893 = vlaneseq
        %v894 = vshrl.u32 %v893, 7
        %v895 = vsub.s32 0, %v894
        %v896 = vrot.slane %v891, %v895
        %v898 = vadd.f32 %v889, %v896
        %v899 = vadd.f32 %v890, %v896
        %vm900 = vcmask 516096
        %901 = vst.msk [vmem:[#allocation3] sm:$0x1] %vm900, 0.0
        %902 = vst.msk [vmem:[#allocation3 + $0x11] sm:$0x1] %vm900, 0.0
        %vm903 = vcmask 523264
        %904 = vst.msk [vmem:[#allocation3 + $0x1] sm:$0xff] %vm903, %v898
        %905 = vst.msk [vmem:[#allocation3 + $0x9] sm:$0xff] %vm903, %v899
        %v906 = vld [vmem:[#allocation3] sm:$0xff]
        %v907 = vld [vmem:[#allocation3 + $0x8] sm:$0xff]
        %v908 = vld [vmem:[%s4] sm:$0xff]
        %v909 = vld [vmem:[%s4 + $0x8] sm:$0xff]
        %v910 = vld [vmem:[%s4 + $0x10] sm:$0xff]
        %v911 = vld [vmem:[%s4 + $0x18] sm:$0xff]
        %v912 = vld [vmem:[%s4 + $0x20] sm:$0xff]
        %v913 = vld [vmem:[%s4 + $0x28] sm:$0xff]
        %v914 = vld [vmem:[%s4 + $0x30] sm:$0xff]
        %v915 = vld [vmem:[%s4 + $0x38] sm:$0xff]
        %v916 = vld [vmem:[#allocation3 + $0x1] sm:$0xff]
        %v917 = vld [vmem:[#allocation3 + $0x9] sm:$0xff]
        %s918 = scalar_lea.vmem %s4, 64
        %v919 = vld [vmem:[%s918] sm:$0xff]
        %v920 = vld [vmem:[%s918 + $0x8] sm:$0xff]
        %v921 = vld [vmem:[%s918 + $0x10] sm:$0xff]
        %v922 = vld [vmem:[%s918 + $0x18] sm:$0xff]
        %v923 = vld [vmem:[%s918 + $0x20] sm:$0xff]
        %v924 = vld [vmem:[%s918 + $0x28] sm:$0xff]
        %v925 = vld [vmem:[%s918 + $0x30] sm:$0xff]
        %v926 = vld [vmem:[%s918 + $0x38] sm:$0xff]
        %v928 = vsel %vm903, %v916, 0
        %v931 = vsel %vm903, %v917, 0
        %933 = vmatprep.subr.mxu0 0.0
        %934 = vmatpush1.msra.mxu0 %v919
        %935 = vmatprep.subr.mxu0 0.0
        %936 = vmatpush1.msra.mxu0 %v920
        %937 = vmatprep.subr.mxu0 0.0
        %938 = vmatpush1.msra.mxu0 %v921
        %939 = vmatprep.subr.mxu0 0.0
        %940 = vmatpush1.msra.mxu0 %v922
        %941 = vmatprep.subr.mxu0 0.0
        %942 = vmatpush1.msra.mxu0 %v923
        %943 = vmatprep.subr.mxu0 0.0
        %944 = vmatpush1.msra.mxu0 %v924
        %945 = vmatprep.subr.mxu0 0.0
        %946 = vmatpush1.msra.mxu0 %v925
        %947 = vmatprep.subr.mxu0 0.0
        %948 = vmatpush1.msra.mxu0 %v926
        %949 = vmatprep.subr.mxu0 0.0
        %950 = vmatpush1.msra.mxu0 0.0
        %951 = vmatprep.subr.mxu0 0.0
        %952 = vmatpush1.msra.mxu0 0.0
        %953 = vmatprep.subr.mxu0 0.0
        %954 = vmatpush1.msra.mxu0 0.0
        %955 = vmatprep.subr.mxu0 0.0
        %956 = vmatpush1.msra.mxu0 0.0
        %957 = vmatprep.subr.mxu0 0.0
        %958 = vmatpush1.msra.mxu0 0.0
        %959 = vmatprep.subr.mxu0 0.0
        %960 = vmatpush1.msra.mxu0 0.0
        %961 = vmatprep.subr.mxu0 0.0
        %962 = vmatpush1.msra.mxu0 0.0
        %963 = vmatprep.subr.mxu0 0.0
        %964 = vmatpush1.msra.mxu0 0.0
        %965 = vmatprep.subr.mxu0 0.0
        %966 = vmatpush1.msra.mxu0 0.0
        %967 = vmatprep.subr.mxu0 0.0
        %968 = vmatpush1.msra.mxu0 0.0
        %969 = vmatprep.subr.mxu0 0.0
        %970 = vmatpush1.msra.mxu0 0.0
        %971 = vmatprep.subr.mxu0 0.0
        %972 = vmatpush1.msra.mxu0 0.0
        %973 = vmatprep.subr.mxu0 0.0
        %974 = vmatpush1.msra.mxu0 0.0
        %975 = vmatprep.subr.mxu0 0.0
        %976 = vmatpush1.msra.mxu0 0.0
        %977 = vmatprep.subr.mxu0 0.0
        %978 = vmatpush1.msra.mxu0 0.0
        %979 = vmatprep.subr.mxu0 0.0
        %980 = vmatpush1.msra.mxu0 0.0
        %981 = vmatprep.subr.mxu0 0.0
        %982 = vmatpush1.msra.mxu0 0.0
        %983 = vmatprep.subr.mxu0 0.0
        %984 = vmatpush1.msra.mxu0 0.0
        %985 = vmatprep.subr.mxu0 0.0
        %986 = vmatpush1.msra.mxu0 0.0
        %987 = vmatprep.subr.mxu0 0.0
        %988 = vmatpush1.msra.mxu0 0.0
        %989 = vmatprep.subr.mxu0 0.0
        %990 = vmatpush1.msra.mxu0 0.0
        %991 = vmatprep.subr.mxu0 0.0
        %992 = vmatpush1.msra.mxu0 0.0
        %993 = vmatprep.subr.mxu0 0.0
        %994 = vmatpush1.msra.mxu0 0.0
        %995 = vmatprep.subr.mxu0 0.0
        %996 = vmatpush1.msra.mxu0 0.0
        %997 = vmatprep.mubr.f32.mxu0 0.0
        %998 = vmatmul.mubr.f32.gmra.mrb[0].mxu0 %v928
        %v999 = vpop.f32.mrb[0].mxu0
        %v1000 = vadd.f32 0.0, %v999
        %v1001 = vpop.f32.mrb[0].mxu0
        %1002 = vmatprep.mubr.f32.mxu0 0.0
        %1003 = vmatmul.mubr.f32.gmra.mrb[0].mxu0 %v931
        %v1004 = vpop.f32.mrb[0].mxu0
        %v1005 = vadd.f32 0.0, %v1004
        %v1006 = vpop.f32.mrb[0].mxu0
        %1007 = vdwg.mxu0
        %v1009 = vsel %vm903, %v906, 0
        %v1012 = vsel %vm903, %v907, 0
        %1014 = vmatprep.subr.mxu0 0.0
        %1015 = vmatpush1.msra.mxu0 %v908
        %1016 = vmatprep.subr.mxu0 0.0
        %1017 = vmatpush1.msra.mxu0 %v909
        %1018 = vmatprep.subr.mxu0 0.0
        %1019 = vmatpush1.msra.mxu0 %v910
        %1020 = vmatprep.subr.mxu0 0.0
        %1021 = vmatpush1.msra.mxu0 %v911
        %1022 = vmatprep.subr.mxu0 0.0
        %1023 = vmatpush1.msra.mxu0 %v912
        %1024 = vmatprep.subr.mxu0 0.0
        %1025 = vmatpush1.msra.mxu0 %v913
        %1026 = vmatprep.subr.mxu0 0.0
        %1027 = vmatpush1.msra.mxu0 %v914
        %1028 = vmatprep.subr.mxu0 0.0
        %1029 = vmatpush1.msra.mxu0 %v915
        %1030 = vmatprep.subr.mxu0 0.0
        %1031 = vmatpush1.msra.mxu0 0.0
        %1032 = vmatprep.subr.mxu0 0.0
        %1033 = vmatpush1.msra.mxu0 0.0
        %1034 = vmatprep.subr.mxu0 0.0
        %1035 = vmatpush1.msra.mxu0 0.0
        %1036 = vmatprep.subr.mxu0 0.0
        %1037 = vmatpush1.msra.mxu0 0.0
        %1038 = vmatprep.subr.mxu0 0.0
        %1039 = vmatpush1.msra.mxu0 0.0
        %1040 = vmatprep.subr.mxu0 0.0
        %1041 = vmatpush1.msra.mxu0 0.0
        %1042 = vmatprep.subr.mxu0 0.0
        %1043 = vmatpush1.msra.mxu0 0.0
        %1044 = vmatprep.subr.mxu0 0.0
        %1045 = vmatpush1.msra.mxu0 0.0
        %1046 = vmatprep.subr.mxu0 0.0
        %1047 = vmatpush1.msra.mxu0 0.0
        %1048 = vmatprep.subr.mxu0 0.0
        %1049 = vmatpush1.msra.mxu0 0.0
        %1050 = vmatprep.subr.mxu0 0.0
        %1051 = vmatpush1.msra.mxu0 0.0
        %1052 = vmatprep.subr.mxu0 0.0
        %1053 = vmatpush1.msra.mxu0 0.0
        %1054 = vmatprep.subr.mxu0 0.0
        %1055 = vmatpush1.msra.mxu0 0.0
        %1056 = vmatprep.subr.mxu0 0.0
        %1057 = vmatpush1.msra.mxu0 0.0
        %1058 = vmatprep.subr.mxu0 0.0
        %1059 = vmatpush1.msra.mxu0 0.0
        %1060 = vmatprep.subr.mxu0 0.0
        %1061 = vmatpush1.msra.mxu0 0.0
        %1062 = vmatprep.subr.mxu0 0.0
        %1063 = vmatpush1.msra.mxu0 0.0
        %1064 = vmatprep.subr.mxu0 0.0
        %1065 = vmatpush1.msra.mxu0 0.0
        %1066 = vmatprep.subr.mxu0 0.0
        %1067 = vmatpush1.msra.mxu0 0.0
        %1068 = vmatprep.subr.mxu0 0.0
        %1069 = vmatpush1.msra.mxu0 0.0
        %1070 = vmatprep.subr.mxu0 0.0
        %1071 = vmatpush1.msra.mxu0 0.0
        %1072 = vmatprep.subr.mxu0 0.0
        %1073 = vmatpush1.msra.mxu0 0.0
        %1074 = vmatprep.subr.mxu0 0.0
        %1075 = vmatpush1.msra.mxu0 0.0
        %1076 = vmatprep.subr.mxu0 0.0
        %1077 = vmatpush1.msra.mxu0 0.0
        %1078 = vmatprep.mubr.f32.mxu0 0.0
        %1079 = vmatmul.mubr.f32.gmra.mrb[0].mxu0 %v1009
        %v1080 = vpop.f32.mrb[0].mxu0
        %v1081 = vadd.f32 %v1000, %v1080
        %v1082 = vpop.f32.mrb[0].mxu0
        %1083 = vmatprep.mubr.f32.mxu0 0.0
        %1084 = vmatmul.mubr.f32.gmra.mrb[0].mxu0 %v1012
        %v1085 = vpop.f32.mrb[0].mxu0
        %v1086 = vadd.f32 %v1005, %v1085
        %v1087 = vpop.f32.mrb[0].mxu0
        %1088 = vdwg.mxu0
        %v1089 = vld [vmem:[#allocation3 + $0x2] sm:$0xff]
        %v1090 = vld [vmem:[#allocation3 + $0xa] sm:$0xff]
        %s1091 = scalar_lea.vmem %s4, 128
        %v1092 = vld [vmem:[%s1091] sm:$0xff]
        %v1093 = vld [vmem:[%s1091 + $0x8] sm:$0xff]
        %v1094 = vld [vmem:[%s1091 + $0x10] sm:$0xff]
        %v1095 = vld [vmem:[%s1091 + $0x18] sm:$0xff]
        %v1096 = vld [vmem:[%s1091 + $0x20] sm:$0xff]
        %v1097 = vld [vmem:[%s1091 + $0x28] sm:$0xff]
        %v1098 = vld [vmem:[%s1091 + $0x30] sm:$0xff]
        %v1099 = vld [vmem:[%s1091 + $0x38] sm:$0xff]
        %v1101 = vsel %vm903, %v1089, 0
        %v1104 = vsel %vm903, %v1090, 0
        %1106 = vmatprep.subr.mxu0 0.0
        %1107 = vmatpush1.msra.mxu0 %v1092
        %1108 = vmatprep.subr.mxu0 0.0
        %1109 = vmatpush1.msra.mxu0 %v1093
        %1110 = vmatprep.subr.mxu0 0.0
        %1111 = vmatpush1.msra.mxu0 %v1094
        %1112 = vmatprep.subr.mxu0 0.0
        %1113 = vmatpush1.msra.mxu0 %v1095
        %1114 = vmatprep.subr.mxu0 0.0
        %1115 = vmatpush1.msra.mxu0 %v1096
        %1116 = vmatprep.subr.mxu0 0.0
        %1117 = vmatpush1.msra.mxu0 %v1097
        %1118 = vmatprep.subr.mxu0 0.0
        %1119 = vmatpush1.msra.mxu0 %v1098
        %1120 = vmatprep.subr.mxu0 0.0
        %1121 = vmatpush1.msra.mxu0 %v1099
        %1122 = vmatprep.subr.mxu0 0.0
        %1123 = vmatpush1.msra.mxu0 0.0
        %1124 = vmatprep.subr.mxu0 0.0
        %1125 = vmatpush1.msra.mxu0 0.0
        %1126 = vmatprep.subr.mxu0 0.0
        %1127 = vmatpush1.msra.mxu0 0.0
        %1128 = vmatprep.subr.mxu0 0.0
        %1129 = vmatpush1.msra.mxu0 0.0
        %1130 = vmatprep.subr.mxu0 0.0
        %1131 = vmatpush1.msra.mxu0 0.0
        %1132 = vmatprep.subr.mxu0 0.0
        %1133 = vmatpush1.msra.mxu0 0.0
        %1134 = vmatprep.subr.mxu0 0.0
        %1135 = vmatpush1.msra.mxu0 0.0
        %1136 = vmatprep.subr.mxu0 0.0
        %1137 = vmatpush1.msra.mxu0 0.0
        %1138 = vmatprep.subr.mxu0 0.0
        %1139 = vmatpush1.msra.mxu0 0.0
        %1140 = vmatprep.subr.mxu0 0.0
        %1141 = vmatpush1.msra.mxu0 0.0
        %1142 = vmatprep.subr.mxu0 0.0
        %1143 = vmatpush1.msra.mxu0 0.0
        %1144 = vmatprep.subr.mxu0 0.0
        %1145 = vmatpush1.msra.mxu0 0.0
        %1146 = vmatprep.subr.mxu0 0.0
        %1147 = vmatpush1.msra.mxu0 0.0
        %1148 = vmatprep.subr.mxu0 0.0
        %1149 = vmatpush1.msra.mxu0 0.0
        %1150 = vmatprep.subr.mxu0 0.0
        %1151 = vmatpush1.msra.mxu0 0.0
        %1152 = vmatprep.subr.mxu0 0.0
        %1153 = vmatpush1.msra.mxu0 0.0
        %1154 = vmatprep.subr.mxu0 0.0
        %1155 = vmatpush1.msra.mxu0 0.0
        %1156 = vmatprep.subr.mxu0 0.0
        %1157 = vmatpush1.msra.mxu0 0.0
        %1158 = vmatprep.subr.mxu0 0.0
        %1159 = vmatpush1.msra.mxu0 0.0
        %1160 = vmatprep.subr.mxu0 0.0
        %1161 = vmatpush1.msra.mxu0 0.0
        %1162 = vmatprep.subr.mxu0 0.0
        %1163 = vmatpush1.msra.mxu0 0.0
        %1164 = vmatprep.subr.mxu0 0.0
        %1165 = vmatpush1.msra.mxu0 0.0
        %1166 = vmatprep.subr.mxu0 0.0
        %1167 = vmatpush1.msra.mxu0 0.0
        %1168 = vmatprep.subr.mxu0 0.0
        %1169 = vmatpush1.msra.mxu0 0.0
        %1170 = vmatprep.mubr.f32.mxu0 0.0
        %1171 = vmatmul.mubr.f32.gmra.mrb[0].mxu0 %v1101
        %v1172 = vpop.f32.mrb[0].mxu0
        %v1173 = vadd.f32 0.0, %v1172
        %v1174 = vpop.f32.mrb[0].mxu0
        %1175 = vmatprep.mubr.f32.mxu0 0.0
        %1176 = vmatmul.mubr.f32.gmra.mrb[0].mxu0 %v1104
        %v1177 = vpop.f32.mrb[0].mxu0
        %v1178 = vadd.f32 0.0, %v1177
        %v1179 = vpop.f32.mrb[0].mxu0
        %1180 = vdwg.mxu0
        %v1181 = vadd.f32 %v1081, %v1173
        %v1182 = vadd.f32 %v1086, %v1178
        %v1183 = vld [vmem:[%s5] sm:$0x1]
        %v1185 = vlaneseq
        %v1186 = vshrl.u32 %v1185, 7
        %v1187 = vsub.s32 0, %v1186
        %v1188 = vrot.slane %v1183, %v1187
        %v1190 = vadd.f32 %v1181, %v1188
        %v1191 = vadd.f32 %v1182, %v1188
        %v1192 = vmax.f32 %v1190, 0.0
        %v1193 = vmax.f32 %v1191, 0.0
        %1194 = vst [vmem:[#allocation6 + $0x10] sm:$0x1] -1e+30
        %1195 = vst [vmem:[#allocation6] sm:$0xff] %v1192
        %1196 = vst [vmem:[#allocation6 + $0x8] sm:$0xff] %v1193
        %v1197 = vld [vmem:[#allocation6] sm:$0xff]
        %v1198 = vld [vmem:[#allocation6 + $0x8] sm:$0x7f]
        %v1199 = vld [vmem:[#allocation6 + $0x1] sm:$0xff]
        %v1200 = vld [vmem:[#allocation6 + $0x9] sm:$0x7f]
        %v1201 = vmax.f32 %v1197, %v1199
        %v1202 = vmax.f32 %v1198, %v1200
        %v1203 = vld [vmem:[#allocation6 + $0x2] sm:$0xff]
        %v1204 = vld [vmem:[#allocation6 + $0xa] sm:$0x7f]
        %v1205 = vmax.f32 %v1201, %v1203
        %v1206 = vmax.f32 %v1202, %v1204
        %v1207 = vld [vmem:[%s6] sm:$0xff]
        %vm1208 = vcmask 121856
        %v1210 = vsel %vm1208, %v1207, 0
        %vm1212 = vcmask 1046528
        %v1214 = vsel %vm1212, %v1206, 0
        %1216 = vmatprep.subr.mxu0 0.0
        %1217 = vmatpush1.msra.mxu0 %v1205
        %1218 = vmatprep.subr.mxu0 0.0
        %1219 = vmatpush1.msra.mxu0 %v1214
        %1220 = vmatprep.subr.mxu0 0.0
        %1221 = vmatpush1.msra.mxu0 0.0
        %1222 = vmatprep.subr.mxu0 0.0
        %1223 = vmatpush1.msra.mxu0 0.0
        %1224 = vmatprep.subr.mxu0 0.0
        %1225 = vmatpush1.msra.mxu0 0.0
        %1226 = vmatprep.subr.mxu0 0.0
        %1227 = vmatpush1.msra.mxu0 0.0
        %1228 = vmatprep.subr.mxu0 0.0
        %1229 = vmatpush1.msra.mxu0 0.0
        %1230 = vmatprep.subr.mxu0 0.0
        %1231 = vmatpush1.msra.mxu0 0.0
        %1232 = vmatprep.subr.mxu0 0.0
        %1233 = vmatpush1.msra.mxu0 0.0
        %1234 = vmatprep.subr.mxu0 0.0
        %1235 = vmatpush1.msra.mxu0 0.0
        %1236 = vmatprep.subr.mxu0 0.0
        %1237 = vmatpush1.msra.mxu0 0.0
        %1238 = vmatprep.subr.mxu0 0.0
        %1239 = vmatpush1.msra.mxu0 0.0
        %1240 = vmatprep.subr.mxu0 0.0
        %1241 = vmatpush1.msra.mxu0 0.0
        %1242 = vmatprep.subr.mxu0 0.0
        %1243 = vmatpush1.msra.mxu0 0.0
        %1244 = vmatprep.subr.mxu0 0.0
        %1245 = vmatpush1.msra.mxu0 0.0
        %1246 = vmatprep.subr.mxu0 0.0
        %1247 = vmatpush1.msra.mxu0 0.0
        %1248 = vmatprep.subr.mxu0 0.0
        %1249 = vmatpush1.msra.mxu0 0.0
        %1250 = vmatprep.subr.mxu0 0.0
        %1251 = vmatpush1.msra.mxu0 0.0
        %1252 = vmatprep.subr.mxu0 0.0
        %1253 = vmatpush1.msra.mxu0 0.0
        %1254 = vmatprep.subr.mxu0 0.0
        %1255 = vmatpush1.msra.mxu0 0.0
        %1256 = vmatprep.subr.mxu0 0.0
        %1257 = vmatpush1.msra.mxu0 0.0
        %1258 = vmatprep.subr.mxu0 0.0
        %1259 = vmatpush1.msra.mxu0 0.0
        %1260 = vmatprep.subr.mxu0 0.0
        %1261 = vmatpush1.msra.mxu0 0.0
        %1262 = vmatprep.subr.mxu0 0.0
        %1263 = vmatpush1.msra.mxu0 0.0
        %1264 = vmatprep.subr.mxu0 0.0
        %1265 = vmatpush1.msra.mxu0 0.0
        %1266 = vmatprep.subr.mxu0 0.0
        %1267 = vmatpush1.msra.mxu0 0.0
        %1268 = vmatprep.subr.mxu0 0.0
        %1269 = vmatpush1.msra.mxu0 0.0
        %1270 = vmatprep.subr.mxu0 0.0
        %1271 = vmatpush1.msra.mxu0 0.0
        %1272 = vmatprep.subr.mxu0 0.0
        %1273 = vmatpush1.msra.mxu0 0.0
        %1274 = vmatprep.subr.mxu0 0.0
        %1275 = vmatpush1.msra.mxu0 0.0
        %1276 = vmatprep.subr.mxu0 0.0
        %1277 = vmatpush1.msra.mxu0 0.0
        %1278 = vmatprep.subr.mxu0 0.0
        %1279 = vmatpush1.msra.mxu0 0.0
        %1280 = vmatprep.mubr.f32.mxu0 0.0
        %1281 = vmatmul.mubr.f32.gmra.mrb[0].mxu0 %v1210
        %v1282 = vpop.f32.mrb[0].mxu0
        %v1283 = vadd.f32 0.0, %v1282
        %v1284 = vpop.f32.mrb[0].mxu0
        %1285 = vdwg.mxu0
        %v1286 = vld [vmem:[%s7] sm:$0xff]
        %v1287 = vld [vmem:[%s7 + $0x8] sm:$0xff]
        %v1288 = vld [vmem:[%s7 + $0x10] sm:$0xff]
        %v1289 = vld [vmem:[%s7 + $0x18] sm:$0xff]
        %v1290 = vld [vmem:[%s7 + $0x20] sm:$0xff]
        %v1291 = vld [vmem:[%s7 + $0x28] sm:$0xff]
        %v1292 = vld [vmem:[%s7 + $0x30] sm:$0xff]
        %v1293 = vld [vmem:[%s7 + $0x38] sm:$0xff]
        %v1294 = vld [vmem:[%s7 + $0x40] sm:$0xff]
        %v1295 = vld [vmem:[%s7 + $0x48] sm:$0xff]
        %v1296 = vld [vmem:[%s7 + $0x50] sm:$0xff]
        %v1297 = vld [vmem:[%s7 + $0x58] sm:$0xff]
        %v1298 = vld [vmem:[%s7 + $0x60] sm:$0xff]
        %v1299 = vld [vmem:[%s7 + $0x68] sm:$0xff]
        %v1300 = vld [vmem:[%s7 + $0x70] sm:$0xff]
        %v1301 = vld [vmem:[%s7 + $0x78] sm:$0xff]
        %1302 = vmatprep.subr.mxu0 0.0
        %1303 = vmatpush1.msra.mxu0 %v1286
        %1304 = vmatprep.subr.mxu0 0.0
        %1305 = vmatpush1.msra.mxu0 %v1287
        %1306 = vmatprep.subr.mxu0 0.0
        %1307 = vmatpush1.msra.mxu0 %v1288
        %1308 = vmatprep.subr.mxu0 0.0
        %1309 = vmatpush1.msra.mxu0 %v1289
        %1310 = vmatprep.subr.mxu0 0.0
        %1311 = vmatpush1.msra.mxu0 %v1290
        %1312 = vmatprep.subr.mxu0 0.0
        %1313 = vmatpush1.msra.mxu0 %v1291
        %1314 = vmatprep.subr.mxu0 0.0
        %1315 = vmatpush1.msra.mxu0 %v1292
        %1316 = vmatprep.subr.mxu0 0.0
        %1317 = vmatpush1.msra.mxu0 %v1293
        %1318 = vmatprep.subr.mxu0 0.0
        %1319 = vmatpush1.msra.mxu0 %v1294
        %1320 = vmatprep.subr.mxu0 0.0
        %1321 = vmatpush1.msra.mxu0 %v1295
        %1322 = vmatprep.subr.mxu0 0.0
        %1323 = vmatpush1.msra.mxu0 %v1296
        %1324 = vmatprep.subr.mxu0 0.0
        %1325 = vmatpush1.msra.mxu0 %v1297
        %1326 = vmatprep.subr.mxu0 0.0
        %1327 = vmatpush1.msra.mxu0 %v1298
        %1328 = vmatprep.subr.mxu0 0.0
        %1329 = vmatpush1.msra.mxu0 %v1299
        %1330 = vmatprep.subr.mxu0 0.0
        %1331 = vmatpush1.msra.mxu0 %v1300
        %1332 = vmatprep.subr.mxu0 0.0
        %1333 = vmatpush1.msra.mxu0 %v1301
        %1334 = vmatprep.subr.mxu0 0.0
        %1335 = vmatpush1.msra.mxu0 0.0
        %1336 = vmatprep.subr.mxu0 0.0
        %1337 = vmatpush1.msra.mxu0 0.0
        %1338 = vmatprep.subr.mxu0 0.0
        %1339 = vmatpush1.msra.mxu0 0.0
        %1340 = vmatprep.subr.mxu0 0.0
        %1341 = vmatpush1.msra.mxu0 0.0
        %1342 = vmatprep.subr.mxu0 0.0
        %1343 = vmatpush1.msra.mxu0 0.0
        %1344 = vmatprep.subr.mxu0 0.0
        %1345 = vmatpush1.msra.mxu0 0.0
        %1346 = vmatprep.subr.mxu0 0.0
        %1347 = vmatpush1.msra.mxu0 0.0
        %1348 = vmatprep.subr.mxu0 0.0
        %1349 = vmatpush1.msra.mxu0 0.0
        %1350 = vmatprep.subr.mxu0 0.0
        %1351 = vmatpush1.msra.mxu0 0.0
        %1352 = vmatprep.subr.mxu0 0.0
        %1353 = vmatpush1.msra.mxu0 0.0
        %1354 = vmatprep.subr.mxu0 0.0
        %1355 = vmatpush1.msra.mxu0 0.0
        %1356 = vmatprep.subr.mxu0 0.0
        %1357 = vmatpush1.msra.mxu0 0.0
        %1358 = vmatprep.subr.mxu0 0.0
        %1359 = vmatpush1.msra.mxu0 0.0
        %1360 = vmatprep.subr.mxu0 0.0
        %1361 = vmatpush1.msra.mxu0 0.0
        %1362 = vmatprep.subr.mxu0 0.0
        %1363 = vmatpush1.msra.mxu0 0.0
        %1364 = vmatprep.subr.mxu0 0.0
        %1365 = vmatpush1.msra.mxu0 0.0
        %1366 = vmatprep.mubr.f32.mxu0 0.0
        %1367 = vmatmul.mubr.f32.gmra.mrb[0].mxu0 %v1283
        %v1368 = vpop.f32.mrb[0].mxu0
        %v1369 = vadd.f32 0.0, %v1368
        %v1370 = vpop.f32.mrb[0].mxu0
        %1371 = vdwg.mxu0
        %s1372 = scalar_lea.vmem %s7, 128
        %v1373 = vld [vmem:[%s1372] sm:$0xff]
        %v1374 = vld [vmem:[%s1372 + $0x8] sm:$0xff]
        %v1375 = vld [vmem:[%s1372 + $0x10] sm:$0xff]
        %v1376 = vld [vmem:[%s1372 + $0x18] sm:$0xff]
        %v1377 = vld [vmem:[%s1372 + $0x20] sm:$0xff]
        %v1378 = vld [vmem:[%s1372 + $0x28] sm:$0xff]
        %v1379 = vld [vmem:[%s1372 + $0x30] sm:$0xff]
        %v1380 = vld [vmem:[%s1372 + $0x38] sm:$0xff]
        %v1381 = vld [vmem:[%s1372 + $0x40] sm:$0xff]
        %v1382 = vld [vmem:[%s1372 + $0x48] sm:$0xff]
        %v1383 = vld [vmem:[%s1372 + $0x50] sm:$0xff]
        %v1384 = vld [vmem:[%s1372 + $0x58] sm:$0xff]
        %v1385 = vld [vmem:[%s1372 + $0x60] sm:$0xff]
        %v1386 = vld [vmem:[%s1372 + $0x68] sm:$0xff]
        %v1387 = vld [vmem:[%s1372 + $0x70] sm:$0xff]
        %v1388 = vld [vmem:[%s1372 + $0x78] sm:$0xff]
        %1389 = vmatprep.subr.mxu0 0.0
        %1390 = vmatpush1.msra.mxu0 %v1373
        %1391 = vmatprep.subr.mxu0 0.0
        %1392 = vmatpush1.msra.mxu0 %v1374
        %1393 = vmatprep.subr.mxu0 0.0
        %1394 = vmatpush1.msra.mxu0 %v1375
        %1395 = vmatprep.subr.mxu0 0.0
        %1396 = vmatpush1.msra.mxu0 %v1376
        %1397 = vmatprep.subr.mxu0 0.0
        %1398 = vmatpush1.msra.mxu0 %v1377
        %1399 = vmatprep.subr.mxu0 0.0
        %1400 = vmatpush1.msra.mxu0 %v1378
        %1401 = vmatprep.subr.mxu0 0.0
        %1402 = vmatpush1.msra.mxu0 %v1379
        %1403 = vmatprep.subr.mxu0 0.0
        %1404 = vmatpush1.msra.mxu0 %v1380
        %1405 = vmatprep.subr.mxu0 0.0
        %1406 = vmatpush1.msra.mxu0 %v1381
        %1407 = vmatprep.subr.mxu0 0.0
        %1408 = vmatpush1.msra.mxu0 %v1382
        %1409 = vmatprep.subr.mxu0 0.0
        %1410 = vmatpush1.msra.mxu0 %v1383
        %1411 = vmatprep.subr.mxu0 0.0
        %1412 = vmatpush1.msra.mxu0 %v1384
        %1413 = vmatprep.subr.mxu0 0.0
        %1414 = vmatpush1.msra.mxu0 %v1385
        %1415 = vmatprep.subr.mxu0 0.0
        %1416 = vmatpush1.msra.mxu0 %v1386
        %1417 = vmatprep.subr.mxu0 0.0
        %1418 = vmatpush1.msra.mxu0 %v1387
        %1419 = vmatprep.subr.mxu0 0.0
        %1420 = vmatpush1.msra.mxu0 %v1388
        %1421 = vmatprep.subr.mxu0 0.0
        %1422 = vmatpush1.msra.mxu0 0.0
        %1423 = vmatprep.subr.mxu0 0.0
        %1424 = vmatpush1.msra.mxu0 0.0
        %1425 = vmatprep.subr.mxu0 0.0
        %1426 = vmatpush1.msra.mxu0 0.0
        %1427 = vmatprep.subr.mxu0 0.0
        %1428 = vmatpush1.msra.mxu0 0.0
        %1429 = vmatprep.subr.mxu0 0.0
        %1430 = vmatpush1.msra.mxu0 0.0
        %1431 = vmatprep.subr.mxu0 0.0
        %1432 = vmatpush1.msra.mxu0 0.0
        %1433 = vmatprep.subr.mxu0 0.0
        %1434 = vmatpush1.msra.mxu0 0.0
        %1435 = vmatprep.subr.mxu0 0.0
        %1436 = vmatpush1.msra.mxu0 0.0
        %1437 = vmatprep.subr.mxu0 0.0
        %1438 = vmatpush1.msra.mxu0 0.0
        %1439 = vmatprep.subr.mxu0 0.0
        %1440 = vmatpush1.msra.mxu0 0.0
        %1441 = vmatprep.subr.mxu0 0.0
        %1442 = vmatpush1.msra.mxu0 0.0
        %1443 = vmatprep.subr.mxu0 0.0
        %1444 = vmatpush1.msra.mxu0 0.0
        %1445 = vmatprep.subr.mxu0 0.0
        %1446 = vmatpush1.msra.mxu0 0.0
        %1447 = vmatprep.subr.mxu0 0.0
        %1448 = vmatpush1.msra.mxu0 0.0
        %1449 = vmatprep.subr.mxu0 0.0
        %1450 = vmatpush1.msra.mxu0 0.0
        %1451 = vmatprep.subr.mxu0 0.0
        %1452 = vmatpush1.msra.mxu0 0.0
        %1453 = vmatprep.mubr.f32.mxu0 0.0
        %1454 = vmatmul.mubr.f32.gmra.mrb[0].mxu0 %v1283
        %v1455 = vpop.f32.mrb[0].mxu0
        %v1456 = vadd.f32 0.0, %v1455
        %v1457 = vpop.f32.mrb[0].mxu0
        %1458 = vdwg.mxu0
        %v1459 = vmax.f32 %v1369, %v1456
        %1460 = vst.msk [vmem:[#allocation4] sm:$0x1] %vm900, 0.0
        %1461 = vst.msk [vmem:[#allocation4 + $0x9] sm:$0x1] %vm900, 0.0
        %1462 = vst.msk [vmem:[#allocation4 + $0x1] sm:$0xff] %vm903, %v1459
        %v1463 = vld [vmem:[#allocation4] sm:$0xff]
        %v1464 = vld [vmem:[%s8] sm:$0xff]
        %v1465 = vld [vmem:[%s8 + $0x8] sm:$0xff]
        %v1466 = vld [vmem:[%s8 + $0x10] sm:$0xff]
        %v1467 = vld [vmem:[%s8 + $0x18] sm:$0xff]
        %v1468 = vld [vmem:[%s8 + $0x20] sm:$0xff]
        %v1469 = vld [vmem:[%s8 + $0x28] sm:$0xff]
        %v1470 = vld [vmem:[%s8 + $0x30] sm:$0xff]
        %v1471 = vld [vmem:[%s8 + $0x38] sm:$0xff]
        %v1472 = vld [vmem:[#allocation4 + $0x1] sm:$0xff]
        %s1473 = scalar_lea.vmem %s8, 64
        %v1474 = vld [vmem:[%s1473] sm:$0xff]
        %v1475 = vld [vmem:[%s1473 + $0x8] sm:$0xff]
        %v1476 = vld [vmem:[%s1473 + $0x10] sm:$0xff]
        %v1477 = vld [vmem:[%s1473 + $0x18] sm:$0xff]
        %v1478 = vld [vmem:[%s1473 + $0x20] sm:$0xff]
        %v1479 = vld [vmem:[%s1473 + $0x28] sm:$0xff]
        %v1480 = vld [vmem:[%s1473 + $0x30] sm:$0xff]
        %v1481 = vld [vmem:[%s1473 + $0x38] sm:$0xff]
        %v1483 = vsel %vm903, %v1472, 0
        %1485 = vmatprep.subr.mxu0 0.0
        %1486 = vmatpush1.msra.mxu0 %v1474
        %1487 = vmatprep.subr.mxu0 0.0
        %1488 = vmatpush1.msra.mxu0 %v1475
        %1489 = vmatprep.subr.mxu0 0.0
        %1490 = vmatpush1.msra.mxu0 %v1476
        %1491 = vmatprep.subr.mxu0 0.0
        %1492 = vmatpush1.msra.mxu0 %v1477
        %1493 = vmatprep.subr.mxu0 0.0
        %1494 = vmatpush1.msra.mxu0 %v1478
        %1495 = vmatprep.subr.mxu0 0.0
        %1496 = vmatpush1.msra.mxu0 %v1479
        %1497 = vmatprep.subr.mxu0 0.0
        %1498 = vmatpush1.msra.mxu0 %v1480
        %1499 = vmatprep.subr.mxu0 0.0
        %1500 = vmatpush1.msra.mxu0 %v1481
        %1501 = vmatprep.subr.mxu0 0.0
        %1502 = vmatpush1.msra.mxu0 0.0
        %1503 = vmatprep.subr.mxu0 0.0
        %1504 = vmatpush1.msra.mxu0 0.0
        %1505 = vmatprep.subr.mxu0 0.0
        %1506 = vmatpush1.msra.mxu0 0.0
        %1507 = vmatprep.subr.mxu0 0.0
        %1508 = vmatpush1.msra.mxu0 0.0
        %1509 = vmatprep.subr.mxu0 0.0
        %1510 = vmatpush1.msra.mxu0 0.0
        %1511 = vmatprep.subr.mxu0 0.0
        %1512 = vmatpush1.msra.mxu0 0.0
        %1513 = vmatprep.subr.mxu0 0.0
        %1514 = vmatpush1.msra.mxu0 0.0
        %1515 = vmatprep.subr.mxu0 0.0
        %1516 = vmatpush1.msra.mxu0 0.0
        %1517 = vmatprep.subr.mxu0 0.0
        %1518 = vmatpush1.msra.mxu0 0.0
        %1519 = vmatprep.subr.mxu0 0.0
        %1520 = vmatpush1.msra.mxu0 0.0
        %1521 = vmatprep.subr.mxu0 0.0
        %1522 = vmatpush1.msra.mxu0 0.0
        %1523 = vmatprep.subr.mxu0 0.0
        %1524 = vmatpush1.msra.mxu0 0.0
        %1525 = vmatprep.subr.mxu0 0.0
        %1526 = vmatpush1.msra.mxu0 0.0
        %1527 = vmatprep.subr.mxu0 0.0
        %1528 = vmatpush1.msra.mxu0 0.0
        %1529 = vmatprep.subr.mxu0 0.0
        %1530 = vmatpush1.msra.mxu0 0.0
        %1531 = vmatprep.subr.mxu0 0.0
        %1532 = vmatpush1.msra.mxu0 0.0
        %1533 = vmatprep.subr.mxu0 0.0
        %1534 = vmatpush1.msra.mxu0 0.0
        %1535 = vmatprep.subr.mxu0 0.0
        %1536 = vmatpush1.msra.mxu0 0.0
        %1537 = vmatprep.subr.mxu0 0.0
        %1538 = vmatpush1.msra.mxu0 0.0
        %1539 = vmatprep.subr.mxu0 0.0
        %1540 = vmatpush1.msra.mxu0 0.0
        %1541 = vmatprep.subr.mxu0 0.0
        %1542 = vmatpush1.msra.mxu0 0.0
        %1543 = vmatprep.subr.mxu0 0.0
        %1544 = vmatpush1.msra.mxu0 0.0
        %1545 = vmatprep.subr.mxu0 0.0
        %1546 = vmatpush1.msra.mxu0 0.0
        %1547 = vmatprep.subr.mxu0 0.0
        %1548 = vmatpush1.msra.mxu0 0.0
        %1549 = vmatprep.mubr.f32.mxu0 0.0
        %1550 = vmatmul.mubr.f32.gmra.mrb[0].mxu0 %v1483
        %v1551 = vpop.f32.mrb[0].mxu0
        %v1552 = vadd.f32 0.0, %v1551
        %v1553 = vpop.f32.mrb[0].mxu0
        %1554 = vdwg.mxu0
        %v1556 = vsel %vm903, %v1463, 0
        %1558 = vmatprep.subr.mxu0 0.0
        %1559 = vmatpush1.msra.mxu0 %v1464
        %1560 = vmatprep.subr.mxu0 0.0
        %1561 = vmatpush1.msra.mxu0 %v1465
        %1562 = vmatprep.subr.mxu0 0.0
        %1563 = vmatpush1.msra.mxu0 %v1466
        %1564 = vmatprep.subr.mxu0 0.0
        %1565 = vmatpush1.msra.mxu0 %v1467
        %1566 = vmatprep.subr.mxu0 0.0
        %1567 = vmatpush1.msra.mxu0 %v1468
        %1568 = vmatprep.subr.mxu0 0.0
        %1569 = vmatpush1.msra.mxu0 %v1469
        %1570 = vmatprep.subr.mxu0 0.0
        %1571 = vmatpush1.msra.mxu0 %v1470
        %1572 = vmatprep.subr.mxu0 0.0
        %1573 = vmatpush1.msra.mxu0 %v1471
        %1574 = vmatprep.subr.mxu0 0.0
        %1575 = vmatpush1.msra.mxu0 0.0
        %1576 = vmatprep.subr.mxu0 0.0
        %1577 = vmatpush1.msra.mxu0 0.0
        %1578 = vmatprep.subr.mxu0 0.0
        %1579 = vmatpush1.msra.mxu0 0.0
        %1580 = vmatprep.subr.mxu0 0.0
        %1581 = vmatpush1.msra.mxu0 0.0
        %1582 = vmatprep.subr.mxu0 0.0
        %1583 = vmatpush1.msra.mxu0 0.0
        %1584 = vmatprep.subr.mxu0 0.0
        %1585 = vmatpush1.msra.mxu0 0.0
        %1586 = vmatprep.subr.mxu0 0.0
        %1587 = vmatpush1.msra.mxu0 0.0
        %1588 = vmatprep.subr.mxu0 0.0
        %1589 = vmatpush1.msra.mxu0 0.0
        %1590 = vmatprep.subr.mxu0 0.0
        %1591 = vmatpush1.msra.mxu0 0.0
        %1592 = vmatprep.subr.mxu0 0.0
        %1593 = vmatpush1.msra.mxu0 0.0
        %1594 = vmatprep.subr.mxu0 0.0
        %1595 = vmatpush1.msra.mxu0 0.0
        %1596 = vmatprep.subr.mxu0 0.0
        %1597 = vmatpush1.msra.mxu0 0.0
        %1598 = vmatprep.subr.mxu0 0.0
        %1599 = vmatpush1.msra.mxu0 0.0
        %1600 = vmatprep.subr.mxu0 0.0
        %1601 = vmatpush1.msra.mxu0 0.0
        %1602 = vmatprep.subr.mxu0 0.0
        %1603 = vmatpush1.msra.mxu0 0.0
        %1604 = vmatprep.subr.mxu0 0.0
        %1605 = vmatpush1.msra.mxu0 0.0
        %1606 = vmatprep.subr.mxu0 0.0
        %1607 = vmatpush1.msra.mxu0 0.0
        %1608 = vmatprep.subr.mxu0 0.0
        %1609 = vmatpush1.msra.mxu0 0.0
        %1610 = vmatprep.subr.mxu0 0.0
        %1611 = vmatpush1.msra.mxu0 0.0
        %1612 = vmatprep.subr.mxu0 0.0
        %1613 = vmatpush1.msra.mxu0 0.0
        %1614 = vmatprep.subr.mxu0 0.0
        %1615 = vmatpush1.msra.mxu0 0.0
        %1616 = vmatprep.subr.mxu0 0.0
        %1617 = vmatpush1.msra.mxu0 0.0
        %1618 = vmatprep.subr.mxu0 0.0
        %1619 = vmatpush1.msra.mxu0 0.0
        %1620 = vmatprep.subr.mxu0 0.0
        %1621 = vmatpush1.msra.mxu0 0.0
        %1622 = vmatprep.mubr.f32.mxu0 0.0
        %1623 = vmatmul.mubr.f32.gmra.mrb[0].mxu0 %v1556
        %v1624 = vpop.f32.mrb[0].mxu0
        %v1625 = vadd.f32 %v1552, %v1624
        %v1626 = vpop.f32.mrb[0].mxu0
        %1627 = vdwg.mxu0
        %v1628 = vld [vmem:[#allocation4 + $0x2] sm:$0xff]
        %s1629 = scalar_lea.vmem %s8, 128
        %v1630 = vld [vmem:[%s1629] sm:$0xff]
        %v1631 = vld [vmem:[%s1629 + $0x8] sm:$0xff]
        %v1632 = vld [vmem:[%s1629 + $0x10] sm:$0xff]
        %v1633 = vld [vmem:[%s1629 + $0x18] sm:$0xff]
        %v1634 = vld [vmem:[%s1629 + $0x20] sm:$0xff]
        %v1635 = vld [vmem:[%s1629 + $0x28] sm:$0xff]
        %v1636 = vld [vmem:[%s1629 + $0x30] sm:$0xff]
        %v1637 = vld [vmem:[%s1629 + $0x38] sm:$0xff]
        %v1639 = vsel %vm903, %v1628, 0
        %1641 = vmatprep.subr.mxu0 0.0
        %1642 = vmatpush1.msra.mxu0 %v1630
        %1643 = vmatprep.subr.mxu0 0.0
        %1644 = vmatpush1.msra.mxu0 %v1631
        %1645 = vmatprep.subr.mxu0 0.0
        %1646 = vmatpush1.msra.mxu0 %v1632
        %1647 = vmatprep.subr.mxu0 0.0
        %1648 = vmatpush1.msra.mxu0 %v1633
        %1649 = vmatprep.subr.mxu0 0.0
        %1650 = vmatpush1.msra.mxu0 %v1634
        %1651 = vmatprep.subr.mxu0 0.0
        %1652 = vmatpush1.msra.mxu0 %v1635
        %1653 = vmatprep.subr.mxu0 0.0
        %1654 = vmatpush1.msra.mxu0 %v1636
        %1655 = vmatprep.subr.mxu0 0.0
        %1656 = vmatpush1.msra.mxu0 %v1637
        %1657 = vmatprep.subr.mxu0 0.0
        %1658 = vmatpush1.msra.mxu0 0.0
        %1659 = vmatprep.subr.mxu0 0.0
        %1660 = vmatpush1.msra.mxu0 0.0
        %1661 = vmatprep.subr.mxu0 0.0
        %1662 = vmatpush1.msra.mxu0 0.0
        %1663 = vmatprep.subr.mxu0 0.0
        %1664 = vmatpush1.msra.mxu0 0.0
        %1665 = vmatprep.subr.mxu0 0.0
        %1666 = vmatpush1.msra.mxu0 0.0
        %1667 = vmatprep.subr.mxu0 0.0
        %1668 = vmatpush1.msra.mxu0 0.0
        %1669 = vmatprep.subr.mxu0 0.0
        %1670 = vmatpush1.msra.mxu0 0.0
        %1671 = vmatprep.subr.mxu0 0.0
        %1672 = vmatpush1.msra.mxu0 0.0
        %1673 = vmatprep.subr.mxu0 0.0
        %1674 = vmatpush1.msra.mxu0 0.0
        %1675 = vmatprep.subr.mxu0 0.0
        %1676 = vmatpush1.msra.mxu0 0.0
        %1677 = vmatprep.subr.mxu0 0.0
        %1678 = vmatpush1.msra.mxu0 0.0
        %1679 = vmatprep.subr.mxu0 0.0
        %1680 = vmatpush1.msra.mxu0 0.0
        %1681 = vmatprep.subr.mxu0 0.0
        %1682 = vmatpush1.msra.mxu0 0.0
        %1683 = vmatprep.subr.mxu0 0.0
        %1684 = vmatpush1.msra.mxu0 0.0
        %1685 = vmatprep.subr.mxu0 0.0
        %1686 = vmatpush1.msra.mxu0 0.0
        %1687 = vmatprep.subr.mxu0 0.0
        %1688 = vmatpush1.msra.mxu0 0.0
        %1689 = vmatprep.subr.mxu0 0.0
        %1690 = vmatpush1.msra.mxu0 0.0
        %1691 = vmatprep.subr.mxu0 0.0
        %1692 = vmatpush1.msra.mxu0 0.0
        %1693 = vmatprep.subr.mxu0 0.0
        %1694 = vmatpush1.msra.mxu0 0.0
        %1695 = vmatprep.subr.mxu0 0.0
        %1696 = vmatpush1.msra.mxu0 0.0
        %1697 = vmatprep.subr.mxu0 0.0
        %1698 = vmatpush1.msra.mxu0 0.0
        %1699 = vmatprep.subr.mxu0 0.0
        %1700 = vmatpush1.msra.mxu0 0.0
        %1701 = vmatprep.subr.mxu0 0.0
        %1702 = vmatpush1.msra.mxu0 0.0
        %1703 = vmatprep.subr.mxu0 0.0
        %1704 = vmatpush1.msra.mxu0 0.0
        %1705 = vmatprep.mubr.f32.mxu0 0.0
        %1706 = vmatmul.mubr.f32.gmra.mrb[0].mxu0 %v1639
        %v1707 = vpop.f32.mrb[0].mxu0
        %v1708 = vadd.f32 0.0, %v1707
        %v1709 = vpop.f32.mrb[0].mxu0
        %1710 = vdwg.mxu0
        %v1711 = vadd.f32 %v1625, %v1708
        %v1712 = vld [vmem:[%s9] sm:$0x1]
        %v1714 = vlaneseq
        %v1715 = vshrl.u32 %v1714, 7
        %v1716 = vsub.s32 0, %v1715
        %v1717 = vrot.slane %v1712, %v1716
        %v1719 = vadd.f32 %v1711, %v1717
        %1720 = vst.msk [vmem:[#allocation5] sm:$0x1] %vm900, 0.0
        %1721 = vst.msk [vmem:[#allocation5 + $0x9] sm:$0x1] %vm900, 0.0
        %1722 = vst.msk [vmem:[#allocation5 + $0x1] sm:$0xff] %vm903, %v1719
        %v1723 = vld [vmem:[#allocation5] sm:$0xff]
        %v1724 = vld [vmem:[%s10] sm:$0xff]
        %v1725 = vld [vmem:[%s10 + $0x8] sm:$0xff]
        %v1726 = vld [vmem:[%s10 + $0x10] sm:$0xff]
        %v1727 = vld [vmem:[%s10 + $0x18] sm:$0xff]
        %v1728 = vld [vmem:[%s10 + $0x20] sm:$0xff]
        %v1729 = vld [vmem:[%s10 + $0x28] sm:$0xff]
        %v1730 = vld [vmem:[%s10 + $0x30] sm:$0xff]
        %v1731 = vld [vmem:[%s10 + $0x38] sm:$0xff]
        %v1732 = vld [vmem:[#allocation5 + $0x1] sm:$0xff]
        %s1733 = scalar_lea.vmem %s10, 64
        %v1734 = vld [vmem:[%s1733] sm:$0xff]
        %v1735 = vld [vmem:[%s1733 + $0x8] sm:$0xff]
        %v1736 = vld [vmem:[%s1733 + $0x10] sm:$0xff]
        %v1737 = vld [vmem:[%s1733 + $0x18] sm:$0xff]
        %v1738 = vld [vmem:[%s1733 + $0x20] sm:$0xff]
        %v1739 = vld [vmem:[%s1733 + $0x28] sm:$0xff]
        %v1740 = vld [vmem:[%s1733 + $0x30] sm:$0xff]
        %v1741 = vld [vmem:[%s1733 + $0x38] sm:$0xff]
        %v1743 = vsel %vm903, %v1732, 0
        %1745 = vmatprep.subr.mxu0 0.0
        %1746 = vmatpush1.msra.mxu0 %v1734
        %1747 = vmatprep.subr.mxu0 0.0
        %1748 = vmatpush1.msra.mxu0 %v1735
        %1749 = vmatprep.subr.mxu0 0.0
        %1750 = vmatpush1.msra.mxu0 %v1736
        %1751 = vmatprep.subr.mxu0 0.0
        %1752 = vmatpush1.msra.mxu0 %v1737
        %1753 = vmatprep.subr.mxu0 0.0
        %1754 = vmatpush1.msra.mxu0 %v1738
        %1755 = vmatprep.subr.mxu0 0.0
        %1756 = vmatpush1.msra.mxu0 %v1739
        %1757 = vmatprep.subr.mxu0 0.0
        %1758 = vmatpush1.msra.mxu0 %v1740
        %1759 = vmatprep.subr.mxu0 0.0
        %1760 = vmatpush1.msra.mxu0 %v1741
        %1761 = vmatprep.subr.mxu0 0.0
        %1762 = vmatpush1.msra.mxu0 0.0
        %1763 = vmatprep.subr.mxu0 0.0
        %1764 = vmatpush1.msra.mxu0 0.0
        %1765 = vmatprep.subr.mxu0 0.0
        %1766 = vmatpush1.msra.mxu0 0.0
        %1767 = vmatprep.subr.mxu0 0.0
        %1768 = vmatpush1.msra.mxu0 0.0
        %1769 = vmatprep.subr.mxu0 0.0
        %1770 = vmatpush1.msra.mxu0 0.0
        %1771 = vmatprep.subr.mxu0 0.0
        %1772 = vmatpush1.msra.mxu0 0.0
        %1773 = vmatprep.subr.mxu0 0.0
        %1774 = vmatpush1.msra.mxu0 0.0
        %1775 = vmatprep.subr.mxu0 0.0
        %1776 = vmatpush1.msra.mxu0 0.0
        %1777 = vmatprep.subr.mxu0 0.0
        %1778 = vmatpush1.msra.mxu0 0.0
        %1779 = vmatprep.subr.mxu0 0.0
        %1780 = vmatpush1.msra.mxu0 0.0
        %1781 = vmatprep.subr.mxu0 0.0
        %1782 = vmatpush1.msra.mxu0 0.0
        %1783 = vmatprep.subr.mxu0 0.0
        %1784 = vmatpush1.msra.mxu0 0.0
        %1785 = vmatprep.subr.mxu0 0.0
        %1786 = vmatpush1.msra.mxu0 0.0
        %1787 = vmatprep.subr.mxu0 0.0
        %1788 = vmatpush1.msra.mxu0 0.0
        %1789 = vmatprep.subr.mxu0 0.0
        %1790 = vmatpush1.msra.mxu0 0.0
        %1791 = vmatprep.subr.mxu0 0.0
        %1792 = vmatpush1.msra.mxu0 0.0
        %1793 = vmatprep.subr.mxu0 0.0
        %1794 = vmatpush1.msra.mxu0 0.0
        %1795 = vmatprep.subr.mxu0 0.0
        %1796 = vmatpush1.msra.mxu0 0.0
        %1797 = vmatprep.subr.mxu0 0.0
        %1798 = vmatpush1.msra.mxu0 0.0
        %1799 = vmatprep.subr.mxu0 0.0
        %1800 = vmatpush1.msra.mxu0 0.0
        %1801 = vmatprep.subr.mxu0 0.0
        %1802 = vmatpush1.msra.mxu0 0.0
        %1803 = vmatprep.subr.mxu0 0.0
        %1804 = vmatpush1.msra.mxu0 0.0
        %1805 = vmatprep.subr.mxu0 0.0
        %1806 = vmatpush1.msra.mxu0 0.0
        %1807 = vmatprep.subr.mxu0 0.0
        %1808 = vmatpush1.msra.mxu0 0.0
        %1809 = vmatprep.mubr.f32.mxu0 0.0
        %1810 = vmatmul.mubr.f32.gmra.mrb[0].mxu0 %v1743
        %v1811 = vpop.f32.mrb[0].mxu0
        %v1812 = vadd.f32 0.0, %v1811
        %v1813 = vpop.f32.mrb[0].mxu0
        %1814 = vdwg.mxu0
        %v1816 = vsel %vm903, %v1723, 0
        %1818 = vmatprep.subr.mxu0 0.0
        %1819 = vmatpush1.msra.mxu0 %v1724
        %1820 = vmatprep.subr.mxu0 0.0
        %1821 = vmatpush1.msra.mxu0 %v1725
        %1822 = vmatprep.subr.mxu0 0.0
        %1823 = vmatpush1.msra.mxu0 %v1726
        %1824 = vmatprep.subr.mxu0 0.0
        %1825 = vmatpush1.msra.mxu0 %v1727
        %1826 = vmatprep.subr.mxu0 0.0
        %1827 = vmatpush1.msra.mxu0 %v1728
        %1828 = vmatprep.subr.mxu0 0.0
        %1829 = vmatpush1.msra.mxu0 %v1729
        %1830 = vmatprep.subr.mxu0 0.0
        %1831 = vmatpush1.msra.mxu0 %v1730
        %1832 = vmatprep.subr.mxu0 0.0
        %1833 = vmatpush1.msra.mxu0 %v1731
        %1834 = vmatprep.subr.mxu0 0.0
        %1835 = vmatpush1.msra.mxu0 0.0
        %1836 = vmatprep.subr.mxu0 0.0
        %1837 = vmatpush1.msra.mxu0 0.0
        %1838 = vmatprep.subr.mxu0 0.0
        %1839 = vmatpush1.msra.mxu0 0.0
        %1840 = vmatprep.subr.mxu0 0.0
        %1841 = vmatpush1.msra.mxu0 0.0
        %1842 = vmatprep.subr.mxu0 0.0
        %1843 = vmatpush1.msra.mxu0 0.0
        %1844 = vmatprep.subr.mxu0 0.0
        %1845 = vmatpush1.msra.mxu0 0.0
        %1846 = vmatprep.subr.mxu0 0.0
        %1847 = vmatpush1.msra.mxu0 0.0
        %1848 = vmatprep.subr.mxu0 0.0
        %1849 = vmatpush1.msra.mxu0 0.0
        %1850 = vmatprep.subr.mxu0 0.0
        %1851 = vmatpush1.msra.mxu0 0.0
        %1852 = vmatprep.subr.mxu0 0.0
        %1853 = vmatpush1.msra.mxu0 0.0
        %1854 = vmatprep.subr.mxu0 0.0
        %1855 = vmatpush1.msra.mxu0 0.0
        %1856 = vmatprep.subr.mxu0 0.0
        %1857 = vmatpush1.msra.mxu0 0.0
        %1858 = vmatprep.subr.mxu0 0.0
        %1859 = vmatpush1.msra.mxu0 0.0
        %1860 = vmatprep.subr.mxu0 0.0
        %1861 = vmatpush1.msra.mxu0 0.0
        %1862 = vmatprep.subr.mxu0 0.0
        %1863 = vmatpush1.msra.mxu0 0.0
        %1864 = vmatprep.subr.mxu0 0.0
        %1865 = vmatpush1.msra.mxu0 0.0
        %1866 = vmatprep.subr.mxu0 0.0
        %1867 = vmatpush1.msra.mxu0 0.0
        %1868 = vmatprep.subr.mxu0 0.0
        %1869 = vmatpush1.msra.mxu0 0.0
        %1870 = vmatprep.subr.mxu0 0.0
        %1871 = vmatpush1.msra.mxu0 0.0
        %1872 = vmatprep.subr.mxu0 0.0
        %1873 = vmatpush1.msra.mxu0 0.0
        %1874 = vmatprep.subr.mxu0 0.0
        %1875 = vmatpush1.msra.mxu0 0.0
        %1876 = vmatprep.subr.mxu0 0.0
        %1877 = vmatpush1.msra.mxu0 0.0
        %1878 = vmatprep.subr.mxu0 0.0
        %1879 = vmatpush1.msra.mxu0 0.0
        %1880 = vmatprep.subr.mxu0 0.0
        %1881 = vmatpush1.msra.mxu0 0.0
        %1882 = vmatprep.mubr.f32.mxu0 0.0
        %1883 = vmatmul.mubr.f32.gmra.mrb[0].mxu0 %v1816
        %v1884 = vpop.f32.mrb[0].mxu0
        %v1885 = vadd.f32 %v1812, %v1884
        %v1886 = vpop.f32.mrb[0].mxu0
        %1887 = vdwg.mxu0
        %v1888 = vld [vmem:[#allocation5 + $0x2] sm:$0xff]
        %s1889 = scalar_lea.vmem %s10, 128
        %v1890 = vld [vmem:[%s1889] sm:$0xff]
        %v1891 = vld [vmem:[%s1889 + $0x8] sm:$0xff]
        %v1892 = vld [vmem:[%s1889 + $0x10] sm:$0xff]
        %v1893 = vld [vmem:[%s1889 + $0x18] sm:$0xff]
        %v1894 = vld [vmem:[%s1889 + $0x20] sm:$0xff]
        %v1895 = vld [vmem:[%s1889 + $0x28] sm:$0xff]
        %v1896 = vld [vmem:[%s1889 + $0x30] sm:$0xff]
        %v1897 = vld [vmem:[%s1889 + $0x38] sm:$0xff]
        %v1899 = vsel %vm903, %v1888, 0
        %1901 = vmatprep.subr.mxu0 0.0
        %1902 = vmatpush1.msra.mxu0 %v1890
        %1903 = vmatprep.subr.mxu0 0.0
        %1904 = vmatpush1.msra.mxu0 %v1891
        %1905 = vmatprep.subr.mxu0 0.0
        %1906 = vmatpush1.msra.mxu0 %v1892
        %1907 = vmatprep.subr.mxu0 0.0
        %1908 = vmatpush1.msra.mxu0 %v1893
        %1909 = vmatprep.subr.mxu0 0.0
        %1910 = vmatpush1.msra.mxu0 %v1894
        %1911 = vmatprep.subr.mxu0 0.0
        %1912 = vmatpush1.msra.mxu0 %v1895
        %1913 = vmatprep.subr.mxu0 0.0
        %1914 = vmatpush1.msra.mxu0 %v1896
        %1915 = vmatprep.subr.mxu0 0.0
        %1916 = vmatpush1.msra.mxu0 %v1897
        %1917 = vmatprep.subr.mxu0 0.0
        %1918 = vmatpush1.msra.mxu0 0.0
        %1919 = vmatprep.subr.mxu0 0.0
        %1920 = vmatpush1.msra.mxu0 0.0
        %1921 = vmatprep.subr.mxu0 0.0
        %1922 = vmatpush1.msra.mxu0 0.0
        %1923 = vmatprep.subr.mxu0 0.0
        %1924 = vmatpush1.msra.mxu0 0.0
        %1925 = vmatprep.subr.mxu0 0.0
        %1926 = vmatpush1.msra.mxu0 0.0
        %1927 = vmatprep.subr.mxu0 0.0
        %1928 = vmatpush1.msra.mxu0 0.0
        %1929 = vmatprep.subr.mxu0 0.0
        %1930 = vmatpush1.msra.mxu0 0.0
        %1931 = vmatprep.subr.mxu0 0.0
        %1932 = vmatpush1.msra.mxu0 0.0
        %1933 = vmatprep.subr.mxu0 0.0
        %1934 = vmatpush1.msra.mxu0 0.0
        %1935 = vmatprep.subr.mxu0 0.0
        %1936 = vmatpush1.msra.mxu0 0.0
        %1937 = vmatprep.subr.mxu0 0.0
        %1938 = vmatpush1.msra.mxu0 0.0
        %1939 = vmatprep.subr.mxu0 0.0
        %1940 = vmatpush1.msra.mxu0 0.0
        %1941 = vmatprep.subr.mxu0 0.0
        %1942 = vmatpush1.msra.mxu0 0.0
        %1943 = vmatprep.subr.mxu0 0.0
        %1944 = vmatpush1.msra.mxu0 0.0
        %1945 = vmatprep.subr.mxu0 0.0
        %1946 = vmatpush1.msra.mxu0 0.0
        %1947 = vmatprep.subr.mxu0 0.0
        %1948 = vmatpush1.msra.mxu0 0.0
        %1949 = vmatprep.subr.mxu0 0.0
        %1950 = vmatpush1.msra.mxu0 0.0
        %1951 = vmatprep.subr.mxu0 0.0
        %1952 = vmatpush1.msra.mxu0 0.0
        %1953 = vmatprep.subr.mxu0 0.0
        %1954 = vmatpush1.msra.mxu0 0.0
        %1955 = vmatprep.subr.mxu0 0.0
        %1956 = vmatpush1.msra.mxu0 0.0
        %1957 = vmatprep.subr.mxu0 0.0
        %1958 = vmatpush1.msra.mxu0 0.0
        %1959 = vmatprep.subr.mxu0 0.0
        %1960 = vmatpush1.msra.mxu0 0.0
        %1961 = vmatprep.subr.mxu0 0.0
        %1962 = vmatpush1.msra.mxu0 0.0
        %1963 = vmatprep.subr.mxu0 0.0
        %1964 = vmatpush1.msra.mxu0 0.0
        %1965 = vmatprep.mubr.f32.mxu0 0.0
        %1966 = vmatmul.mubr.f32.gmra.mrb[0].mxu0 %v1899
        %v1967 = vpop.f32.mrb[0].mxu0
        %v1968 = vadd.f32 0.0, %v1967
        %v1969 = vpop.f32.mrb[0].mxu0
        %1970 = vdwg.mxu0
        %v1971 = vadd.f32 %v1885, %v1968
        %v1972 = vld [vmem:[%s11] sm:$0x1]
        %v1974 = vlaneseq
        %v1975 = vshrl.u32 %v1974, 7
        %v1976 = vsub.s32 0, %v1975
        %v1977 = vrot.slane %v1972, %v1976
        %v1979 = vadd.f32 %v1971, %v1977
        %v1980 = vmax.f32 %v1979, 0.0
        %1981 = vst.msk [vmem:[#allocation7 + $0x8] sm:$0x1] %vm900, -1e+30
        %1982 = vst.msk [vmem:[#allocation7] sm:$0xff] %vm903, %v1980
        %v1983 = vld [vmem:[#allocation7] sm:$0x7f]
        %v1984 = vld [vmem:[#allocation7 + $0x1] sm:$0x7f]
        %v1985 = vmax.f32 %v1983, %v1984
        %v1986 = vld [vmem:[#allocation7 + $0x2] sm:$0x7f]
        %v1987 = vmax.f32 %v1985, %v1986
        %v1988 = vld [vmem:[%s12] sm:$0xf]
        %vm1989 = vcmask 56320
        %v1991 = vsel %vm1989, %v1988, 0
        %v1994 = vsel %vm1212, %v1987, 0
        %1996 = vmatprep.subr.mxu0 0.0
        %1997 = vmatpush1.msra.mxu0 %v1994
        %1998 = vmatprep.subr.mxu0 0.0
        %1999 = vmatpush1.msra.mxu0 0.0
        %2000 = vmatprep.subr.mxu0 0.0
        %2001 = vmatpush1.msra.mxu0 0.0
        %2002 = vmatprep.subr.mxu0 0.0
        %2003 = vmatpush1.msra.mxu0 0.0
        %2004 = vmatprep.subr.mxu0 0.0
        %2005 = vmatpush1.msra.mxu0 0.0
        %2006 = vmatprep.subr.mxu0 0.0
        %2007 = vmatpush1.msra.mxu0 0.0
        %2008 = vmatprep.subr.mxu0 0.0
        %2009 = vmatpush1.msra.mxu0 0.0
        %2010 = vmatprep.subr.mxu0 0.0
        %2011 = vmatpush1.msra.mxu0 0.0
        %2012 = vmatprep.subr.mxu0 0.0
        %2013 = vmatpush1.msra.mxu0 0.0
        %2014 = vmatprep.subr.mxu0 0.0
        %2015 = vmatpush1.msra.mxu0 0.0
        %2016 = vmatprep.subr.mxu0 0.0
        %2017 = vmatpush1.msra.mxu0 0.0
        %2018 = vmatprep.subr.mxu0 0.0
        %2019 = vmatpush1.msra.mxu0 0.0
        %2020 = vmatprep.subr.mxu0 0.0
        %2021 = vmatpush1.msra.mxu0 0.0
        %2022 = vmatprep.subr.mxu0 0.0
        %2023 = vmatpush1.msra.mxu0 0.0
        %2024 = vmatprep.subr.mxu0 0.0
        %2025 = vmatpush1.msra.mxu0 0.0
        %2026 = vmatprep.subr.mxu0 0.0
        %2027 = vmatpush1.msra.mxu0 0.0
        %2028 = vmatprep.subr.mxu0 0.0
        %2029 = vmatpush1.msra.mxu0 0.0
        %2030 = vmatprep.subr.mxu0 0.0
        %2031 = vmatpush1.msra.mxu0 0.0
        %2032 = vmatprep.subr.mxu0 0.0
        %2033 = vmatpush1.msra.mxu0 0.0
        %2034 = vmatprep.subr.mxu0 0.0
        %2035 = vmatpush1.msra.mxu0 0.0
        %2036 = vmatprep.subr.mxu0 0.0
        %2037 = vmatpush1.msra.mxu0 0.0
        %2038 = vmatprep.subr.mxu0 0.0
        %2039 = vmatpush1.msra.mxu0 0.0
        %2040 = vmatprep.subr.mxu0 0.0
        %2041 = vmatpush1.msra.mxu0 0.0
        %2042 = vmatprep.subr.mxu0 0.0
        %2043 = vmatpush1.msra.mxu0 0.0
        %2044 = vmatprep.subr.mxu0 0.0
        %2045 = vmatpush1.msra.mxu0 0.0
        %2046 = vmatprep.subr.mxu0 0.0
        %2047 = vmatpush1.msra.mxu0 0.0
        %2048 = vmatprep.subr.mxu0 0.0
        %2049 = vmatpush1.msra.mxu0 0.0
        %2050 = vmatprep.subr.mxu0 0.0
        %2051 = vmatpush1.msra.mxu0 0.0
        %2052 = vmatprep.subr.mxu0 0.0
        %2053 = vmatpush1.msra.mxu0 0.0
        %2054 = vmatprep.subr.mxu0 0.0
        %2055 = vmatpush1.msra.mxu0 0.0
        %2056 = vmatprep.subr.mxu0 0.0
        %2057 = vmatpush1.msra.mxu0 0.0
        %2058 = vmatprep.subr.mxu0 0.0
        %2059 = vmatpush1.msra.mxu0 0.0
        %2060 = vmatprep.mubr.f32.mxu0 0.0
        %2061 = vmatmul.mubr.f32.gmra.mrb[0].mxu0 %v1991
        %v2062 = vpop.f32.mrb[0].mxu0
        %v2063 = vadd.f32 0.0, %v2062
        %v2064 = vpop.f32.mrb[0].mxu0
        %2065 = vdwg.mxu0
        %v2066 = vld [vmem:[%s13] sm:$0xff]
        %v2067 = vld [vmem:[%s13 + $0x8] sm:$0xff]
        %v2068 = vld [vmem:[%s13 + $0x10] sm:$0xff]
        %v2069 = vld [vmem:[%s13 + $0x18] sm:$0xff]
        %v2070 = vld [vmem:[%s13 + $0x20] sm:$0xff]
        %v2071 = vld [vmem:[%s13 + $0x28] sm:$0xff]
        %v2072 = vld [vmem:[%s13 + $0x30] sm:$0xff]
        %v2073 = vld [vmem:[%s13 + $0x38] sm:$0xff]
        %v2075 = vsel %vm903, %v2063, 0
        %2077 = vmatprep.subr.mxu0 0.0
        %2078 = vmatpush1.msra.mxu0 %v2066
        %2079 = vmatprep.subr.mxu0 0.0
        %2080 = vmatpush1.msra.mxu0 %v2067
        %2081 = vmatprep.subr.mxu0 0.0
        %2082 = vmatpush1.msra.mxu0 %v2068
        %2083 = vmatprep.subr.mxu0 0.0
        %2084 = vmatpush1.msra.mxu0 %v2069
        %2085 = vmatprep.subr.mxu0 0.0
        %2086 = vmatpush1.msra.mxu0 %v2070
        %2087 = vmatprep.subr.mxu0 0.0
        %2088 = vmatpush1.msra.mxu0 %v2071
        %2089 = vmatprep.subr.mxu0 0.0
        %2090 = vmatpush1.msra.mxu0 %v2072
        %2091 = vmatprep.subr.mxu0 0.0
        %2092 = vmatpush1.msra.mxu0 %v2073
        %2093 = vmatprep.subr.mxu0 0.0
        %2094 = vmatpush1.msra.mxu0 0.0
        %2095 = vmatprep.subr.mxu0 0.0
        %2096 = vmatpush1.msra.mxu0 0.0
        %2097 = vmatprep.subr.mxu0 0.0
        %2098 = vmatpush1.msra.mxu0 0.0
        %2099 = vmatprep.subr.mxu0 0.0
        %2100 = vmatpush1.msra.mxu0 0.0
        %2101 = vmatprep.subr.mxu0 0.0
        %2102 = vmatpush1.msra.mxu0 0.0
        %2103 = vmatprep.subr.mxu0 0.0
        %2104 = vmatpush1.msra.mxu0 0.0
        %2105 = vmatprep.subr.mxu0 0.0
        %2106 = vmatpush1.msra.mxu0 0.0
        %2107 = vmatprep.subr.mxu0 0.0
        %2108 = vmatpush1.msra.mxu0 0.0
        %2109 = vmatprep.subr.mxu0 0.0
        %2110 = vmatpush1.msra.mxu0 0.0
        %2111 = vmatprep.subr.mxu0 0.0
        %2112 = vmatpush1.msra.mxu0 0.0
        %2113 = vmatprep.subr.mxu0 0.0
        %2114 = vmatpush1.msra.mxu0 0.0
        %2115 = vmatprep.subr.mxu0 0.0
        %2116 = vmatpush1.msra.mxu0 0.0
        %2117 = vmatprep.subr.mxu0 0.0
        %2118 = vmatpush1.msra.mxu0 0.0
        %2119 = vmatprep.subr.mxu0 0.0
        %2120 = vmatpush1.msra.mxu0 0.0
        %2121 = vmatprep.subr.mxu0 0.0
        %2122 = vmatpush1.msra.mxu0 0.0
        %2123 = vmatprep.subr.mxu0 0.0
        %2124 = vmatpush1.msra.mxu0 0.0
        %2125 = vmatprep.subr.mxu0 0.0
        %2126 = vmatpush1.msra.mxu0 0.0
        %2127 = vmatprep.subr.mxu0 0.0
        %2128 = vmatpush1.msra.mxu0 0.0
        %2129 = vmatprep.subr.mxu0 0.0
        %2130 = vmatpush1.msra.mxu0 0.0
        %2131 = vmatprep.subr.mxu0 0.0
        %2132 = vmatpush1.msra.mxu0 0.0
        %2133 = vmatprep.subr.mxu0 0.0
        %2134 = vmatpush1.msra.mxu0 0.0
        %2135 = vmatprep.subr.mxu0 0.0
        %2136 = vmatpush1.msra.mxu0 0.0
        %2137 = vmatprep.subr.mxu0 0.0
        %2138 = vmatpush1.msra.mxu0 0.0
        %2139 = vmatprep.subr.mxu0 0.0
        %2140 = vmatpush1.msra.mxu0 0.0
        %2141 = vmatprep.mubr.f32.mxu0 0.0
        %2142 = vmatmul.mubr.f32.gmra.mrb[0].mxu0 %v2075
        %v2143 = vpop.f32.mrb[0].mxu0
        %v2144 = vadd.f32 0.0, %v2143
        %v2145 = vpop.f32.mrb[0].mxu0
        %2146 = vdwg.mxu0
        %s2147 = scalar_lea.vmem %s13, 64
        %v2148 = vld [vmem:[%s2147] sm:$0xff]
        %v2149 = vld [vmem:[%s2147 + $0x8] sm:$0xff]
        %v2150 = vld [vmem:[%s2147 + $0x10] sm:$0xff]
        %v2151 = vld [vmem:[%s2147 + $0x18] sm:$0xff]
        %v2152 = vld [vmem:[%s2147 + $0x20] sm:$0xff]
        %v2153 = vld [vmem:[%s2147 + $0x28] sm:$0xff]
        %v2154 = vld [vmem:[%s2147 + $0x30] sm:$0xff]
        %v2155 = vld [vmem:[%s2147 + $0x38] sm:$0xff]
        %2156 = vmatprep.subr.mxu0 0.0
        %2157 = vmatpush1.msra.mxu0 %v2148
        %2158 = vmatprep.subr.mxu0 0.0
        %2159 = vmatpush1.msra.mxu0 %v2149
        %2160 = vmatprep.subr.mxu0 0.0
        %2161 = vmatpush1.msra.mxu0 %v2150
        %2162 = vmatprep.subr.mxu0 0.0
        %2163 = vmatpush1.msra.mxu0 %v2151
        %2164 = vmatprep.subr.mxu0 0.0
        %2165 = vmatpush1.msra.mxu0 %v2152
        %2166 = vmatprep.subr.mxu0 0.0
        %2167 = vmatpush1.msra.mxu0 %v2153
        %2168 = vmatprep.subr.mxu0 0.0
        %2169 = vmatpush1.msra.mxu0 %v2154
        %2170 = vmatprep.subr.mxu0 0.0
        %2171 = vmatpush1.msra.mxu0 %v2155
        %2172 = vmatprep.subr.mxu0 0.0
        %2173 = vmatpush1.msra.mxu0 0.0
        %2174 = vmatprep.subr.mxu0 0.0
        %2175 = vmatpush1.msra.mxu0 0.0
        %2176 = vmatprep.subr.mxu0 0.0
        %2177 = vmatpush1.msra.mxu0 0.0
        %2178 = vmatprep.subr.mxu0 0.0
        %2179 = vmatpush1.msra.mxu0 0.0
        %2180 = vmatprep.subr.mxu0 0.0
        %2181 = vmatpush1.msra.mxu0 0.0
        %2182 = vmatprep.subr.mxu0 0.0
        %2183 = vmatpush1.msra.mxu0 0.0
        %2184 = vmatprep.subr.mxu0 0.0
        %2185 = vmatpush1.msra.mxu0 0.0
        %2186 = vmatprep.subr.mxu0 0.0
        %2187 = vmatpush1.msra.mxu0 0.0
        %2188 = vmatprep.subr.mxu0 0.0
        %2189 = vmatpush1.msra.mxu0 0.0
        %2190 = vmatprep.subr.mxu0 0.0
        %2191 = vmatpush1.msra.mxu0 0.0
        %2192 = vmatprep.subr.mxu0 0.0
        %2193 = vmatpush1.msra.mxu0 0.0
        %2194 = vmatprep.subr.mxu0 0.0
        %2195 = vmatpush1.msra.mxu0 0.0
        %2196 = vmatprep.subr.mxu0 0.0
        %2197 = vmatpush1.msra.mxu0 0.0
        %2198 = vmatprep.subr.mxu0 0.0
        %2199 = vmatpush1.msra.mxu0 0.0
        %2200 = vmatprep.subr.mxu0 0.0
        %2201 = vmatpush1.msra.mxu0 0.0
        %2202 = vmatprep.subr.mxu0 0.0
        %2203 = vmatpush1.msra.mxu0 0.0
        %2204 = vmatprep.subr.mxu0 0.0
        %2205 = vmatpush1.msra.mxu0 0.0
        %2206 = vmatprep.subr.mxu0 0.0
        %2207 = vmatpush1.msra.mxu0 0.0
        %2208 = vmatprep.subr.mxu0 0.0
        %2209 = vmatpush1.msra.mxu0 0.0
        %2210 = vmatprep.subr.mxu0 0.0
        %2211 = vmatpush1.msra.mxu0 0.0
        %2212 = vmatprep.subr.mxu0 0.0
        %2213 = vmatpush1.msra.mxu0 0.0
        %2214 = vmatprep.subr.mxu0 0.0
        %2215 = vmatpush1.msra.mxu0 0.0
        %2216 = vmatprep.subr.mxu0 0.0
        %2217 = vmatpush1.msra.mxu0 0.0
        %2218 = vmatprep.subr.mxu0 0.0
        %2219 = vmatpush1.msra.mxu0 0.0
        %2220 = vmatprep.mubr.f32.mxu0 0.0
        %2221 = vmatmul.mubr.f32.gmra.mrb[0].mxu0 %v2075
        %v2222 = vpop.f32.mrb[0].mxu0
        %v2223 = vadd.f32 0.0, %v2222
        %v2224 = vpop.f32.mrb[0].mxu0
        %2225 = vdwg.mxu0
        %v2226 = vmax.f32 %v2144, %v2223
        %v2227 = vld [vmem:[%s14] sm:$0xff]
        %v2228 = vld [vmem:[%s14 + $0x8] sm:$0xff]
        %v2229 = vld [vmem:[%s14 + $0x10] sm:$0xff]
        %v2230 = vld [vmem:[%s14 + $0x18] sm:$0xff]
        %v2231 = vld [vmem:[%s15] sm:$0x1]
        %v2233 = vlaneseq
        %v2234 = vshrl.u32 %v2233, 7
        %v2235 = vsub.s32 0, %v2234
        %v2236 = vrot.slane %v2231, %v2235
        %vm2238 = vcmask 261120
        %v2240 = vsel %vm2238, %v2226, 0
        %2242 = vmatprep.subr.mxu0 0.0
        %2243 = vmatpush1.msra.mxu0 %v2227
        %2244 = vmatprep.subr.mxu0 0.0
        %2245 = vmatpush1.msra.mxu0 %v2228
        %2246 = vmatprep.subr.mxu0 0.0
        %2247 = vmatpush1.msra.mxu0 %v2229
        %2248 = vmatprep.subr.mxu0 0.0
        %2249 = vmatpush1.msra.mxu0 %v2230
        %2250 = vmatprep.subr.mxu0 0.0
        %2251 = vmatpush1.msra.mxu0 0.0
        %2252 = vmatprep.subr.mxu0 0.0
        %2253 = vmatpush1.msra.mxu0 0.0
        %2254 = vmatprep.subr.mxu0 0.0
        %2255 = vmatpush1.msra.mxu0 0.0
        %2256 = vmatprep.subr.mxu0 0.0
        %2257 = vmatpush1.msra.mxu0 0.0
        %2258 = vmatprep.subr.mxu0 0.0
        %2259 = vmatpush1.msra.mxu0 0.0
        %2260 = vmatprep.subr.mxu0 0.0
        %2261 = vmatpush1.msra.mxu0 0.0
        %2262 = vmatprep.subr.mxu0 0.0
        %2263 = vmatpush1.msra.mxu0 0.0
        %2264 = vmatprep.subr.mxu0 0.0
        %2265 = vmatpush1.msra.mxu0 0.0
        %2266 = vmatprep.subr.mxu0 0.0
        %2267 = vmatpush1.msra.mxu0 0.0
        %2268 = vmatprep.subr.mxu0 0.0
        %2269 = vmatpush1.msra.mxu0 0.0
        %2270 = vmatprep.subr.mxu0 0.0
        %2271 = vmatpush1.msra.mxu0 0.0
        %2272 = vmatprep.subr.mxu0 0.0
        %2273 = vmatpush1.msra.mxu0 0.0
        %2274 = vmatprep.subr.mxu0 0.0
        %2275 = vmatpush1.msra.mxu0 0.0
        %2276 = vmatprep.subr.mxu0 0.0
        %2277 = vmatpush1.msra.mxu0 0.0
        %2278 = vmatprep.subr.mxu0 0.0
        %2279 = vmatpush1.msra.mxu0 0.0
        %2280 = vmatprep.subr.mxu0 0.0
        %2281 = vmatpush1.msra.mxu0 0.0
        %2282 = vmatprep.subr.mxu0 0.0
        %2283 = vmatpush1.msra.mxu0 0.0
        %2284 = vmatprep.subr.mxu0 0.0
        %2285 = vmatpush1.msra.mxu0 0.0
        %2286 = vmatprep.subr.mxu0 0.0
        %2287 = vmatpush1.msra.mxu0 0.0
        %2288 = vmatprep.subr.mxu0 0.0
        %2289 = vmatpush1.msra.mxu0 0.0
        %2290 = vmatprep.subr.mxu0 0.0
        %2291 = vmatpush1.msra.mxu0 0.0
        %2292 = vmatprep.subr.mxu0 0.0
        %2293 = vmatpush1.msra.mxu0 0.0
        %2294 = vmatprep.subr.mxu0 0.0
        %2295 = vmatpush1.msra.mxu0 0.0
        %2296 = vmatprep.subr.mxu0 0.0
        %2297 = vmatpush1.msra.mxu0 0.0
        %2298 = vmatprep.subr.mxu0 0.0
        %2299 = vmatpush1.msra.mxu0 0.0
        %2300 = vmatprep.subr.mxu0 0.0
        %2301 = vmatpush1.msra.mxu0 0.0
        %2302 = vmatprep.subr.mxu0 0.0
        %2303 = vmatpush1.msra.mxu0 0.0
        %2304 = vmatprep.subr.mxu0 0.0
        %2305 = vmatpush1.msra.mxu0 0.0
        %2306 = vmatprep.mubr.f32.mxu0 0.0
        %2307 = vmatmul.mubr.f32.gmra.mrb[0].mxu0 %v2240
        %v2308 = vpop.f32.mrb[0].mxu0
        %v2309 = vadd.f32 %v2236, %v2308
        %v2310 = vpop.f32.mrb[0].mxu0
        %2311 = vdwg.mxu0
        %vm2312 = vcmask 257024
        %2313 = vst.msk [vmem:[%s607] sm:$0xf] %vm2312, %v2309
        %v2314 = vld [vmem:[%s620] sm:$0x1]
        %v2315 = vld [vmem:[%s16] sm:$0xff]
        %v2316 = vld [vmem:[%s16 + $0x8] sm:$0xff]
        %v2318 = vsel %vm629, %v2314, 0
        %2320 = vmatprep.subr.mxu0 0.0
        %2321 = vmatpush1.msra.mxu0 %v2315
        %2322 = vmatprep.subr.mxu0 0.0
        %2323 = vmatpush1.msra.mxu0 %v2316
        %2324 = vmatprep.subr.mxu0 0.0
        %2325 = vmatpush1.msra.mxu0 0.0
        %2326 = vmatprep.subr.mxu0 0.0
        %2327 = vmatpush1.msra.mxu0 0.0
        %2328 = vmatprep.subr.mxu0 0.0
        %2329 = vmatpush1.msra.mxu0 0.0
        %2330 = vmatprep.subr.mxu0 0.0
        %2331 = vmatpush1.msra.mxu0 0.0
        %2332 = vmatprep.subr.mxu0 0.0
        %2333 = vmatpush1.msra.mxu0 0.0
        %2334 = vmatprep.subr.mxu0 0.0
        %2335 = vmatpush1.msra.mxu0 0.0
        %2336 = vmatprep.subr.mxu0 0.0
        %2337 = vmatpush1.msra.mxu0 0.0
        %2338 = vmatprep.subr.mxu0 0.0
        %2339 = vmatpush1.msra.mxu0 0.0
        %2340 = vmatprep.subr.mxu0 0.0
        %2341 = vmatpush1.msra.mxu0 0.0
        %2342 = vmatprep.subr.mxu0 0.0
        %2343 = vmatpush1.msra.mxu0 0.0
        %2344 = vmatprep.subr.mxu0 0.0
        %2345 = vmatpush1.msra.mxu0 0.0
        %2346 = vmatprep.subr.mxu0 0.0
        %2347 = vmatpush1.msra.mxu0 0.0
        %2348 = vmatprep.subr.mxu0 0.0
        %2349 = vmatpush1.msra.mxu0 0.0
        %2350 = vmatprep.subr.mxu0 0.0
        %2351 = vmatpush1.msra.mxu0 0.0
        %2352 = vmatprep.subr.mxu0 0.0
        %2353 = vmatpush1.msra.mxu0 0.0
        %2354 = vmatprep.subr.mxu0 0.0
        %2355 = vmatpush1.msra.mxu0 0.0
        %2356 = vmatprep.subr.mxu0 0.0
        %2357 = vmatpush1.msra.mxu0 0.0
        %2358 = vmatprep.subr.mxu0 0.0
        %2359 = vmatpush1.msra.mxu0 0.0
        %2360 = vmatprep.subr.mxu0 0.0
        %2361 = vmatpush1.msra.mxu0 0.0
        %2362 = vmatprep.subr.mxu0 0.0
        %2363 = vmatpush1.msra.mxu0 0.0
        %2364 = vmatprep.subr.mxu0 0.0
        %2365 = vmatpush1.msra.mxu0 0.0
        %2366 = vmatprep.subr.mxu0 0.0
        %2367 = vmatpush1.msra.mxu0 0.0
        %2368 = vmatprep.subr.mxu0 0.0
        %2369 = vmatpush1.msra.mxu0 0.0
        %2370 = vmatprep.subr.mxu0 0.0
        %2371 = vmatpush1.msra.mxu0 0.0
        %2372 = vmatprep.subr.mxu0 0.0
        %2373 = vmatpush1.msra.mxu0 0.0
        %2374 = vmatprep.subr.mxu0 0.0
        %2375 = vmatpush1.msra.mxu0 0.0
        %2376 = vmatprep.subr.mxu0 0.0
        %2377 = vmatpush1.msra.mxu0 0.0
        %2378 = vmatprep.subr.mxu0 0.0
        %2379 = vmatpush1.msra.mxu0 0.0
        %2380 = vmatprep.subr.mxu0 0.0
        %2381 = vmatpush1.msra.mxu0 0.0
        %2382 = vmatprep.subr.mxu0 0.0
        %2383 = vmatpush1.msra.mxu0 0.0
        %2384 = vmatprep.mubr.f32.mxu0 0.0
        %2385 = vmatmul.mubr.f32.gmra.mrb[0].mxu0 %v2318
        %v2386 = vpop.f32.mrb[0].mxu0
        %v2387 = vadd.f32 0.0, %v2386
        %v2388 = vpop.f32.mrb[0].mxu0
        %2389 = vdwg.mxu0
        %s2390 = scalar_lea.vmem %s16, 16
        %v2391 = vld [vmem:[%s2390] sm:$0xff]
        %v2392 = vld [vmem:[%s2390 + $0x8] sm:$0xff]
        %2393 = vmatprep.subr.mxu0 0.0
        %2394 = vmatpush1.msra.mxu0 %v2391
        %2395 = vmatprep.subr.mxu0 0.0
        %2396 = vmatpush1.msra.mxu0 %v2392
        %2397 = vmatprep.subr.mxu0 0.0
        %2398 = vmatpush1.msra.mxu0 0.0
        %2399 = vmatprep.subr.mxu0 0.0
        %2400 = vmatpush1.msra.mxu0 0.0
        %2401 = vmatprep.subr.mxu0 0.0
        %2402 = vmatpush1.msra.mxu0 0.0
        %2403 = vmatprep.subr.mxu0 0.0
        %2404 = vmatpush1.msra.mxu0 0.0
        %2405 = vmatprep.subr.mxu0 0.0
        %2406 = vmatpush1.msra.mxu0 0.0
        %2407 = vmatprep.subr.mxu0 0.0
        %2408 = vmatpush1.msra.mxu0 0.0
        %2409 = vmatprep.subr.mxu0 0.0
        %2410 = vmatpush1.msra.mxu0 0.0
        %2411 = vmatprep.subr.mxu0 0.0
        %2412 = vmatpush1.msra.mxu0 0.0
        %2413 = vmatprep.subr.mxu0 0.0
        %2414 = vmatpush1.msra.mxu0 0.0
        %2415 = vmatprep.subr.mxu0 0.0
        %2416 = vmatpush1.msra.mxu0 0.0
        %2417 = vmatprep.subr.mxu0 0.0
        %2418 = vmatpush1.msra.mxu0 0.0
        %2419 = vmatprep.subr.mxu0 0.0
        %2420 = vmatpush1.msra.mxu0 0.0
        %2421 = vmatprep.subr.mxu0 0.0
        %2422 = vmatpush1.msra.mxu0 0.0
        %2423 = vmatprep.subr.mxu0 0.0
        %2424 = vmatpush1.msra.mxu0 0.0
        %2425 = vmatprep.subr.mxu0 0.0
        %2426 = vmatpush1.msra.mxu0 0.0
        %2427 = vmatprep.subr.mxu0 0.0
        %2428 = vmatpush1.msra.mxu0 0.0
        %2429 = vmatprep.subr.mxu0 0.0
        %2430 = vmatpush1.msra.mxu0 0.0
        %2431 = vmatprep.subr.mxu0 0.0
        %2432 = vmatpush1.msra.mxu0 0.0
        %2433 = vmatprep.subr.mxu0 0.0
        %2434 = vmatpush1.msra.mxu0 0.0
        %2435 = vmatprep.subr.mxu0 0.0
        %2436 = vmatpush1.msra.mxu0 0.0
        %2437 = vmatprep.subr.mxu0 0.0
        %2438 = vmatpush1.msra.mxu0 0.0
        %2439 = vmatprep.subr.mxu0 0.0
        %2440 = vmatpush1.msra.mxu0 0.0
        %2441 = vmatprep.subr.mxu0 0.0
        %2442 = vmatpush1.msra.mxu0 0.0
        %2443 = vmatprep.subr.mxu0 0.0
        %2444 = vmatpush1.msra.mxu0 0.0
        %2445 = vmatprep.subr.mxu0 0.0
        %2446 = vmatpush1.msra.mxu0 0.0
        %2447 = vmatprep.subr.mxu0 0.0
        %2448 = vmatpush1.msra.mxu0 0.0
        %2449 = vmatprep.subr.mxu0 0.0
        %2450 = vmatpush1.msra.mxu0 0.0
        %2451 = vmatprep.subr.mxu0 0.0
        %2452 = vmatpush1.msra.mxu0 0.0
        %2453 = vmatprep.subr.mxu0 0.0
        %2454 = vmatpush1.msra.mxu0 0.0
        %2455 = vmatprep.subr.mxu0 0.0
        %2456 = vmatpush1.msra.mxu0 0.0
        %2457 = vmatprep.mubr.f32.mxu0 0.0
        %2458 = vmatmul.mubr.f32.gmra.mrb[0].mxu0 %v2318
        %v2459 = vpop.f32.mrb[0].mxu0
        %v2460 = vadd.f32 0.0, %v2459
        %v2461 = vpop.f32.mrb[0].mxu0
        %2462 = vdwg.mxu0
        %v2463 = vmax.f32 %v2387, %v2460
        %s2464 = scalar_lea.vmem %s16, 32
        %v2465 = vld [vmem:[%s2464] sm:$0xff]
        %v2466 = vld [vmem:[%s2464 + $0x8] sm:$0xff]
        %2467 = vmatprep.subr.mxu0 0.0
        %2468 = vmatpush1.msra.mxu0 %v2465
        %2469 = vmatprep.subr.mxu0 0.0
        %2470 = vmatpush1.msra.mxu0 %v2466
        %2471 = vmatprep.subr.mxu0 0.0
        %2472 = vmatpush1.msra.mxu0 0.0
        %2473 = vmatprep.subr.mxu0 0.0
        %2474 = vmatpush1.msra.mxu0 0.0
        %2475 = vmatprep.subr.mxu0 0.0
        %2476 = vmatpush1.msra.mxu0 0.0
        %2477 = vmatprep.subr.mxu0 0.0
        %2478 = vmatpush1.msra.mxu0 0.0
        %2479 = vmatprep.subr.mxu0 0.0
        %2480 = vmatpush1.msra.mxu0 0.0
        %2481 = vmatprep.subr.mxu0 0.0
        %2482 = vmatpush1.msra.mxu0 0.0
        %2483 = vmatprep.subr.mxu0 0.0
        %2484 = vmatpush1.msra.mxu0 0.0
        %2485 = vmatprep.subr.mxu0 0.0
        %2486 = vmatpush1.msra.mxu0 0.0
        %2487 = vmatprep.subr.mxu0 0.0
        %2488 = vmatpush1.msra.mxu0 0.0
        %2489 = vmatprep.subr.mxu0 0.0
        %2490 = vmatpush1.msra.mxu0 0.0
        %2491 = vmatprep.subr.mxu0 0.0
        %2492 = vmatpush1.msra.mxu0 0.0
        %2493 = vmatprep.subr.mxu0 0.0
        %2494 = vmatpush1.msra.mxu0 0.0
        %2495 = vmatprep.subr.mxu0 0.0
        %2496 = vmatpush1.msra.mxu0 0.0
        %2497 = vmatprep.subr.mxu0 0.0
        %2498 = vmatpush1.msra.mxu0 0.0
        %2499 = vmatprep.subr.mxu0 0.0
        %2500 = vmatpush1.msra.mxu0 0.0
        %2501 = vmatprep.subr.mxu0 0.0
        %2502 = vmatpush1.msra.mxu0 0.0
        %2503 = vmatprep.subr.mxu0 0.0
        %2504 = vmatpush1.msra.mxu0 0.0
        %2505 = vmatprep.subr.mxu0 0.0
        %2506 = vmatpush1.msra.mxu0 0.0
        %2507 = vmatprep.subr.mxu0 0.0
        %2508 = vmatpush1.msra.mxu0 0.0
        %2509 = vmatprep.subr.mxu0 0.0
        %2510 = vmatpush1.msra.mxu0 0.0
        %2511 = vmatprep.subr.mxu0 0.0
        %2512 = vmatpush1.msra.mxu0 0.0
        %2513 = vmatprep.subr.mxu0 0.0
        %2514 = vmatpush1.msra.mxu0 0.0
        %2515 = vmatprep.subr.mxu0 0.0
        %2516 = vmatpush1.msra.mxu0 0.0
        %2517 = vmatprep.subr.mxu0 0.0
        %2518 = vmatpush1.msra.mxu0 0.0
        %2519 = vmatprep.subr.mxu0 0.0
        %2520 = vmatpush1.msra.mxu0 0.0
        %2521 = vmatprep.subr.mxu0 0.0
        %2522 = vmatpush1.msra.mxu0 0.0
        %2523 = vmatprep.subr.mxu0 0.0
        %2524 = vmatpush1.msra.mxu0 0.0
        %2525 = vmatprep.subr.mxu0 0.0
        %2526 = vmatpush1.msra.mxu0 0.0
        %2527 = vmatprep.subr.mxu0 0.0
        %2528 = vmatpush1.msra.mxu0 0.0
        %2529 = vmatprep.subr.mxu0 0.0
        %2530 = vmatpush1.msra.mxu0 0.0
        %2531 = vmatprep.mubr.f32.mxu0 0.0
        %2532 = vmatmul.mubr.f32.gmra.mrb[0].mxu0 %v2318
        %v2533 = vpop.f32.mrb[0].mxu0
        %v2534 = vadd.f32 0.0, %v2533
        %v2535 = vpop.f32.mrb[0].mxu0
        %2536 = vdwg.mxu0
        %v2537 = vmax.f32 %v2463, %v2534
        %v2538 = vld [vmem:[%s17] sm:$0xff]
        %vm2539 = vcmask 64512
        %v2541 = vsel %vm2539, %v2537, 0
        %2543 = vmatprep.subr.mxu0 0.0
        %2544 = vmatpush1.msra.mxu0 %v2538
        %2545 = vmatprep.subr.mxu0 0.0
        %2546 = vmatpush1.msra.mxu0 0.0
        %2547 = vmatprep.subr.mxu0 0.0
        %2548 = vmatpush1.msra.mxu0 0.0
        %2549 = vmatprep.subr.mxu0 0.0
        %2550 = vmatpush1.msra.mxu0 0.0
        %2551 = vmatprep.subr.mxu0 0.0
        %2552 = vmatpush1.msra.mxu0 0.0
        %2553 = vmatprep.subr.mxu0 0.0
        %2554 = vmatpush1.msra.mxu0 0.0
        %2555 = vmatprep.subr.mxu0 0.0
        %2556 = vmatpush1.msra.mxu0 0.0
        %2557 = vmatprep.subr.mxu0 0.0
        %2558 = vmatpush1.msra.mxu0 0.0
        %2559 = vmatprep.subr.mxu0 0.0
        %2560 = vmatpush1.msra.mxu0 0.0
        %2561 = vmatprep.subr.mxu0 0.0
        %2562 = vmatpush1.msra.mxu0 0.0
        %2563 = vmatprep.subr.mxu0 0.0
        %2564 = vmatpush1.msra.mxu0 0.0
        %2565 = vmatprep.subr.mxu0 0.0
        %2566 = vmatpush1.msra.mxu0 0.0
        %2567 = vmatprep.subr.mxu0 0.0
        %2568 = vmatpush1.msra.mxu0 0.0
        %2569 = vmatprep.subr.mxu0 0.0
        %2570 = vmatpush1.msra.mxu0 0.0
        %2571 = vmatprep.subr.mxu0 0.0
        %2572 = vmatpush1.msra.mxu0 0.0
        %2573 = vmatprep.subr.mxu0 0.0
        %2574 = vmatpush1.msra.mxu0 0.0
        %2575 = vmatprep.subr.mxu0 0.0
        %2576 = vmatpush1.msra.mxu0 0.0
        %2577 = vmatprep.subr.mxu0 0.0
        %2578 = vmatpush1.msra.mxu0 0.0
        %2579 = vmatprep.subr.mxu0 0.0
        %2580 = vmatpush1.msra.mxu0 0.0
        %2581 = vmatprep.subr.mxu0 0.0
        %2582 = vmatpush1.msra.mxu0 0.0
        %2583 = vmatprep.subr.mxu0 0.0
        %2584 = vmatpush1.msra.mxu0 0.0
        %2585 = vmatprep.subr.mxu0 0.0
        %2586 = vmatpush1.msra.mxu0 0.0
        %2587 = vmatprep.subr.mxu0 0.0
        %2588 = vmatpush1.msra.mxu0 0.0
        %2589 = vmatprep.subr.mxu0 0.0
        %2590 = vmatpush1.msra.mxu0 0.0
        %2591 = vmatprep.subr.mxu0 0.0
        %2592 = vmatpush1.msra.mxu0 0.0
        %2593 = vmatprep.subr.mxu0 0.0
        %2594 = vmatpush1.msra.mxu0 0.0
        %2595 = vmatprep.subr.mxu0 0.0
        %2596 = vmatpush1.msra.mxu0 0.0
        %2597 = vmatprep.subr.mxu0 0.0
        %2598 = vmatpush1.msra.mxu0 0.0
        %2599 = vmatprep.subr.mxu0 0.0
        %2600 = vmatpush1.msra.mxu0 0.0
        %2601 = vmatprep.subr.mxu0 0.0
        %2602 = vmatpush1.msra.mxu0 0.0
        %2603 = vmatprep.subr.mxu0 0.0
        %2604 = vmatpush1.msra.mxu0 0.0
        %2605 = vmatprep.subr.mxu0 0.0
        %2606 = vmatpush1.msra.mxu0 0.0
        %2607 = vmatprep.mubr.f32.mxu0 0.0
        %2608 = vmatmul.mubr.f32.gmra.mrb[0].mxu0 %v2541
        %v2609 = vpop.f32.mrb[0].mxu0
        %v2610 = vadd.f32 0.0, %v2609
        %v2611 = vpop.f32.mrb[0].mxu0
        %2612 = vdwg.mxu0
        %s2613 = scalar_lea.vmem %s17, 8
        %v2614 = vld [vmem:[%s2613] sm:$0xff]
        %2615 = vmatprep.subr.mxu0 0.0
        %2616 = vmatpush1.msra.mxu0 %v2614
        %2617 = vmatprep.subr.mxu0 0.0
        %2618 = vmatpush1.msra.mxu0 0.0
        %2619 = vmatprep.subr.mxu0 0.0
        %2620 = vmatpush1.msra.mxu0 0.0
        %2621 = vmatprep.subr.mxu0 0.0
        %2622 = vmatpush1.msra.mxu0 0.0
        %2623 = vmatprep.subr.mxu0 0.0
        %2624 = vmatpush1.msra.mxu0 0.0
        %2625 = vmatprep.subr.mxu0 0.0
        %2626 = vmatpush1.msra.mxu0 0.0
        %2627 = vmatprep.subr.mxu0 0.0
        %2628 = vmatpush1.msra.mxu0 0.0
        %2629 = vmatprep.subr.mxu0 0.0
        %2630 = vmatpush1.msra.mxu0 0.0
        %2631 = vmatprep.subr.mxu0 0.0
        %2632 = vmatpush1.msra.mxu0 0.0
        %2633 = vmatprep.subr.mxu0 0.0
        %2634 = vmatpush1.msra.mxu0 0.0
        %2635 = vmatprep.subr.mxu0 0.0
        %2636 = vmatpush1.msra.mxu0 0.0
        %2637 = vmatprep.subr.mxu0 0.0
        %2638 = vmatpush1.msra.mxu0 0.0
        %2639 = vmatprep.subr.mxu0 0.0
        %2640 = vmatpush1.msra.mxu0 0.0
        %2641 = vmatprep.subr.mxu0 0.0
        %2642 = vmatpush1.msra.mxu0 0.0
        %2643 = vmatprep.subr.mxu0 0.0
        %2644 = vmatpush1.msra.mxu0 0.0
        %2645 = vmatprep.subr.mxu0 0.0
        %2646 = vmatpush1.msra.mxu0 0.0
        %2647 = vmatprep.subr.mxu0 0.0
        %2648 = vmatpush1.msra.mxu0 0.0
        %2649 = vmatprep.subr.mxu0 0.0
        %2650 = vmatpush1.msra.mxu0 0.0
        %2651 = vmatprep.subr.mxu0 0.0
        %2652 = vmatpush1.msra.mxu0 0.0
        %2653 = vmatprep.subr.mxu0 0.0
        %2654 = vmatpush1.msra.mxu0 0.0
        %2655 = vmatprep.subr.mxu0 0.0
        %2656 = vmatpush1.msra.mxu0 0.0
        %2657 = vmatprep.subr.mxu0 0.0
        %2658 = vmatpush1.msra.mxu0 0.0
        %2659 = vmatprep.subr.mxu0 0.0
        %2660 = vmatpush1.msra.mxu0 0.0
        %2661 = vmatprep.subr.mxu0 0.0
        %2662 = vmatpush1.msra.mxu0 0.0
        %2663 = vmatprep.subr.mxu0 0.0
        %2664 = vmatpush1.msra.mxu0 0.0
        %2665 = vmatprep.subr.mxu0 0.0
        %2666 = vmatpush1.msra.mxu0 0.0
        %2667 = vmatprep.subr.mxu0 0.0
        %2668 = vmatpush1.msra.mxu0 0.0
        %2669 = vmatprep.subr.mxu0 0.0
        %2670 = vmatpush1.msra.mxu0 0.0
        %2671 = vmatprep.subr.mxu0 0.0
        %2672 = vmatpush1.msra.mxu0 0.0
        %2673 = vmatprep.subr.mxu0 0.0
        %2674 = vmatpush1.msra.mxu0 0.0
        %2675 = vmatprep.subr.mxu0 0.0
        %2676 = vmatpush1.msra.mxu0 0.0
        %2677 = vmatprep.subr.mxu0 0.0
        %2678 = vmatpush1.msra.mxu0 0.0
        %2679 = vmatprep.mubr.f32.mxu0 0.0
        %2680 = vmatmul.mubr.f32.gmra.mrb[0].mxu0 %v2541
        %v2681 = vpop.f32.mrb[0].mxu0
        %v2682 = vadd.f32 0.0, %v2681
        %v2683 = vpop.f32.mrb[0].mxu0
        %2684 = vdwg.mxu0
        %v2685 = vmax.f32 %v2610, %v2682
        %s2686 = scalar_lea.vmem %s17, 16
        %v2687 = vld [vmem:[%s2686] sm:$0xff]
        %2688 = vmatprep.subr.mxu0 0.0
        %2689 = vmatpush1.msra.mxu0 %v2687
        %2690 = vmatprep.subr.mxu0 0.0
        %2691 = vmatpush1.msra.mxu0 0.0
        %2692 = vmatprep.subr.mxu0 0.0
        %2693 = vmatpush1.msra.mxu0 0.0
        %2694 = vmatprep.subr.mxu0 0.0
        %2695 = vmatpush1.msra.mxu0 0.0
        %2696 = vmatprep.subr.mxu0 0.0
        %2697 = vmatpush1.msra.mxu0 0.0
        %2698 = vmatprep.subr.mxu0 0.0
        %2699 = vmatpush1.msra.mxu0 0.0
        %2700 = vmatprep.subr.mxu0 0.0
        %2701 = vmatpush1.msra.mxu0 0.0
        %2702 = vmatprep.subr.mxu0 0.0
        %2703 = vmatpush1.msra.mxu0 0.0
        %2704 = vmatprep.subr.mxu0 0.0
        %2705 = vmatpush1.msra.mxu0 0.0
        %2706 = vmatprep.subr.mxu0 0.0
        %2707 = vmatpush1.msra.mxu0 0.0
        %2708 = vmatprep.subr.mxu0 0.0
        %2709 = vmatpush1.msra.mxu0 0.0
        %2710 = vmatprep.subr.mxu0 0.0
        %2711 = vmatpush1.msra.mxu0 0.0
        %2712 = vmatprep.subr.mxu0 0.0
        %2713 = vmatpush1.msra.mxu0 0.0
        %2714 = vmatprep.subr.mxu0 0.0
        %2715 = vmatpush1.msra.mxu0 0.0
        %2716 = vmatprep.subr.mxu0 0.0
        %2717 = vmatpush1.msra.mxu0 0.0
        %2718 = vmatprep.subr.mxu0 0.0
        %2719 = vmatpush1.msra.mxu0 0.0
        %2720 = vmatprep.subr.mxu0 0.0
        %2721 = vmatpush1.msra.mxu0 0.0
        %2722 = vmatprep.subr.mxu0 0.0
        %2723 = vmatpush1.msra.mxu0 0.0
        %2724 = vmatprep.subr.mxu0 0.0
        %2725 = vmatpush1.msra.mxu0 0.0
        %2726 = vmatprep.subr.mxu0 0.0
        %2727 = vmatpush1.msra.mxu0 0.0
        %2728 = vmatprep.subr.mxu0 0.0
        %2729 = vmatpush1.msra.mxu0 0.0
        %2730 = vmatprep.subr.mxu0 0.0
        %2731 = vmatpush1.msra.mxu0 0.0
        %2732 = vmatprep.subr.mxu0 0.0
        %2733 = vmatpush1.msra.mxu0 0.0
        %2734 = vmatprep.subr.mxu0 0.0
        %2735 = vmatpush1.msra.mxu0 0.0
        %2736 = vmatprep.subr.mxu0 0.0
        %2737 = vmatpush1.msra.mxu0 0.0
        %2738 = vmatprep.subr.mxu0 0.0
        %2739 = vmatpush1.msra.mxu0 0.0
        %2740 = vmatprep.subr.mxu0 0.0
        %2741 = vmatpush1.msra.mxu0 0.0
        %2742 = vmatprep.subr.mxu0 0.0
        %2743 = vmatpush1.msra.mxu0 0.0
        %2744 = vmatprep.subr.mxu0 0.0
        %2745 = vmatpush1.msra.mxu0 0.0
        %2746 = vmatprep.subr.mxu0 0.0
        %2747 = vmatpush1.msra.mxu0 0.0
        %2748 = vmatprep.subr.mxu0 0.0
        %2749 = vmatpush1.msra.mxu0 0.0
        %2750 = vmatprep.subr.mxu0 0.0
        %2751 = vmatpush1.msra.mxu0 0.0
        %2752 = vmatprep.mubr.f32.mxu0 0.0
        %2753 = vmatmul.mubr.f32.gmra.mrb[0].mxu0 %v2541
        %v2754 = vpop.f32.mrb[0].mxu0
        %v2755 = vadd.f32 0.0, %v2754
        %v2756 = vpop.f32.mrb[0].mxu0
        %2757 = vdwg.mxu0
        %v2758 = vmax.f32 %v2685, %v2755
        %vm2759 = vcmask 24576
        %2760 = vst.msk [vmem:[%s623] sm:$0x1] %vm2759, %v2758
        %s2761 = sand.u32 %s430, 1
        %s2762 = scalar_lea.sflag [#allocation9], %s2761
        %s2763 = sand.u32 %s430, 1
        %s2764 = smul.addr %s2763, 4
        %s2765 = scalar_lea.vmem [#allocation8], %s2764
        %p2766 = scmp.lt.s32.totalorder %s34, 1
        %s2767 = scalar_select %p2766, %s34, 1
        %s2768 = scalar_lea.vmem %s19, %s2767
        // Predicated region
        $region93: #{_lambda_.1} parent=91 // pred_check
          %p2769 = pneg %p440
        $region94: #{_lambda_.1} parent=91 // pred_check_branch
          %2771 = sbr.rel (%p2769) target = $region96
        $region95: #{_lambda_.1} parent=91 // pred_region
          %s2773 = ssub.s32 64, 64
          %2774 = vsyncadd %s2762, %s2773
          %s2775 = smul.addr %s34, 64
          %s2776 = scalar_lea.hbm %s18, %s2775
          %s2778 = sshll.u32 %s2765, 4
          %s2779 = int_to_ptr.vmem [resolvable:$true] %s2778
          %2781 = dma.vmem_to_hbm [thread:$0]  %s2779, 64, %s2776, %s2762
        $region96: #{_lambda_.1} parent=91 // pred_fallthru
          _
        // Predicated region
        $region97: #{_lambda_.1} parent=91 // pred_check
          %p2782 = pneg %p466
        $region98: #{_lambda_.1} parent=91 // pred_check_branch
          %2784 = sbr.rel (%p2782) target = $region100
        $region99: #{_lambda_.1} parent=91 // pred_region
          _
        $region100: #{_lambda_.1} parent=91 // pred_fallthru
          _
      $region92: #{_lambda_.1} parent=5 // pred_fallthru
        _
      %p2785 = scmp.le.s32.totalorder 2, %s29
      // Predicated region
      $region101: #{_lambda_.1} parent=5 // pred_check
        %p2786 = pneg %p2785
      $region102: #{_lambda_.1} parent=5 // pred_check_branch
        %2788 = sbr.rel (%p2786) target = $region104
      $region103: #{_lambda_.1} parent=5 // pred_region
        %s2789 = ssub.s32 %s29, 2
        // Predicated region
        $region105: #{_lambda_.1} parent=103 // pred_check
          %p2790 = pneg %p446
        $region106: #{_lambda_.1} parent=103 // pred_check_branch
          %2792 = sbr.rel (%p2790) target = $region108
        $region107: #{_lambda_.1} parent=103 // pred_region
          %s2793 = sand.u32 %s431, 1
          %s2794 = scalar_lea.sflag [#allocation9], %s2793
          %s2795 = sand.u32 %s431, 1
          %s2796 = smul.addr %s2795, 4
          %s2797 = scalar_lea.vmem [#allocation8], %s2796
          %2798 = dma.done %s2794, 64
        $region108: #{_lambda_.1} parent=103 // pred_fallthru
          _
        // Predicated region
        $region109: #{_lambda_.1} parent=103 // pred_check
          %p2799 = pneg %p472
        $region110: #{_lambda_.1} parent=103 // pred_check_branch
          %2801 = sbr.rel (%p2799) target = $region112
        $region111: #{_lambda_.1} parent=103 // pred_region
          %p2802 = scmp.lt.s32.totalorder %s35, 1
          %s2803 = scalar_select %p2802, %s35, 1
          %s2804 = scalar_lea.vmem %s19, %s2803
        $region112: #{_lambda_.1} parent=103 // pred_fallthru
          _
      $region104: #{_lambda_.1} parent=5 // pred_fallthru
        _
    $region6: #{_lambda_.1} parent=1 // loop_footer
      %s33 = sadd.s32 1, %s29
    $region7: #{_lambda_.1} parent=1 // loop_footer_branch
      %28 = sbr.rel target = $region3
    $region8: #{_lambda_.1} parent=1 // loop_exit
      _
    %2805 = vsyncpa [#allocation9], 1
    %s2806 = scalar_lea.sflag [#allocation9], 1
    %2807 = vsyncpa %s2806, 1

</llo_original>
